<compile_context>
chip_gen: v5e
topology: v5e:2x2
jax: 0.10.0
libtpu: 0.0.40
codegen_flags: <defaults>
</compile_context>

<pallas_src>
import jax
import jax.numpy as jnp
from jax import lax
from jax.experimental import pallas as pl
from jax.experimental.pallas import tpu as pltpu

# "yolov8n" configuration from the reference module
IN_FEATURES = 256          # backbone output channels
OUT_FEATURES = 256
HIDDEN_DIM = OUT_FEATURES * 2
BN_EPS = 1e-5
INV_SQRT2 = 0.7071067811865476


# ----------------------------------------------------------------------------
# Fused kernel: augment (x2) -> backbone stub -> pool -> Linear -> BN -> GELU
# -> Linear -> BN, all in VMEM, single invocation, both views together.
# ----------------------------------------------------------------------------
def _fused_kernel(aug_ref, x_ref, wb_ref, pool_ref, vsel_ref,
                  w1_ref, g1_ref, b1_ref, w2_ref, b2_ref, o_ref):
    x = x_ref[...]                                   # [B, HW, Cin] f32
    B_, HW, Cin = x.shape

    # Per-image mean (stand-in for ColorJitter's grayscale-mean blend).
    m = jnp.mean(x, axis=2, keepdims=True)           # [B, HW, 1]
    m = jnp.mean(m, axis=1, keepdims=True)           # [B, 1, 1]

    def augment(view):
        bright = aug_ref[view, 0]
        contr = aug_ref[view, 1]
        xa = jnp.clip((x - m) * contr + m * bright, 0.0, 1.0)
        return xa.reshape(B_ * HW, Cin)              # lane-dense-ish 2D view

    # Both views stacked along rows (view 0 first) -> one big MXU contraction.
    xa_all = jnp.concatenate([augment(0), augment(1)], axis=0)  # [2B*HW, Cin]

    # ---- backbone stub: 1x1 conv (K=Cin) + ReLU on the MXU ----------------
    feat = jnp.maximum(
        jnp.dot(xa_all, wb_ref[...], preferred_element_type=jnp.float32), 0.0
    )                                                # [2B*HW, Cf], lane-dense

    # ---- AdaptiveAvgPool2d((1,1)) + Flatten as an MXU matmul --------------
    # pool_ref is block-diagonal with 1/HW entries: [2B, 2B*HW].
    pooled = jnp.dot(pool_ref[...], feat,
                     preferred_element_type=jnp.float32)        # [2B, Cf]

    # ---- Linear(Cf -> HIDDEN, bias=False) ----------------------------------
    z1 = jnp.dot(pooled, w1_ref[...],
                 preferred_element_type=jnp.float32)            # [2B, HIDDEN]

    # ---- BatchNorm1d(HIDDEN), train mode, per-view batch statistics --------
    # vsel_ref is block-diagonal with 1/B entries: [2B, 2B]; S @ z puts each
    # row's view-mean in that row (reductions stay on the MXU, no reshapes).
    S = vsel_ref[...]
    mu1 = jnp.dot(S, z1, preferred_element_type=jnp.float32)
    d1 = z1 - mu1
    var1 = jnp.dot(S, d1 * d1, preferred_element_type=jnp.float32)
    z1n = d1 * lax.rsqrt(var1 + BN_EPS) * g1_ref[...] + b1_ref[...]

    # ---- GELU (exact erf form, PyTorch default) ----------------------------
    a = 0.5 * z1n * (1.0 + lax.erf(z1n * INV_SQRT2))

    # ---- Linear(HIDDEN -> OUT, bias=True) -----------------------------------
    z2 = jnp.dot(a, w2_ref[...],
                 preferred_element_type=jnp.float32) + b2_ref[...]   # [2B, OUT]

    # ---- BatchNorm1d(OUT, affine=False), per-view batch statistics ---------
    mu2 = jnp.dot(S, z2, preferred_element_type=jnp.float32)
    d2 = z2 - mu2
    var2 = jnp.dot(S, d2 * d2, preferred_element_type=jnp.float32)
    o_ref[...] = d2 * lax.rsqrt(var2 + BN_EPS)


def ssl_forward(params, x_nchw, aug_scalars):
    B, Cin, H, W = x_nchw.shape
    HW = H * W

    # Layout plumbing in the wrapper (tiny): NCHW -> [B, HW, Cin].
    x_bhwc = jnp.transpose(x_nchw.reshape(B, Cin, HW), (0, 2, 1))

    # Constant MXU operands: global-avg-pool matrix (1/HW folded in, so no
    # in-kernel scale pass) and per-view BN averaging matrix.
    pool_mat = jnp.kron(jnp.eye(2 * B, dtype=jnp.float32),
                        jnp.full((1, HW), 1.0 / HW, jnp.float32))   # [2B, 2B*HW]
    view_mat = jnp.kron(jnp.eye(2, dtype=jnp.float32),
                        jnp.full((B, B), 1.0 / B, jnp.float32))     # [2B, 2B]

    vmem_spec = pl.BlockSpec(memory_space=pltpu.MemorySpace.VMEM)
    out = pl.pallas_call(
        _fused_kernel,
        out_shape=jax.ShapeDtypeStruct((2 * B, OUT_FEATURES), jnp.float32),
        in_specs=[
            pl.BlockSpec(memory_space=pltpu.MemorySpace.SMEM),   # aug scalars
            vmem_spec,                                           # x [B,HW,Cin]
            vmem_spec,                                           # wb [Cin,Cf]
            vmem_spec,                                           # pool matrix
            vmem_spec,                                           # view matrix
            vmem_spec,                                           # w1
            vmem_spec,                                           # bn1 gamma
            vmem_spec,                                           # bn1 beta
            vmem_spec,                                           # w2
            vmem_spec,                                           # b2
        ],
        out_specs=vmem_spec,
        compiler_params=pltpu.CompilerParams(
            # Right-sized: resident footprint at these shapes is a few MiB.
            vmem_limit_bytes=16 * 1024 * 1024,
        ),
    )(aug_scalars, x_bhwc, params["w_backbone"], pool_mat, view_mat,
      params["w1"], params["bn1_gamma"], params["bn1_beta"],
      params["w2"], params["b2"])
    return out[:B], out[B:]


# ----------------------------------------------------------------------------
# Augmentation stand-in scalars.
# TODO(synk): RandomResizedCrop / RandomRotation resampling not implemented;
# only a deterministic ColorJitter-like brightness/contrast jitter per view.
# ----------------------------------------------------------------------------
def make_aug_scalars(key):
    u = jax.random.uniform(key, (2, 2), dtype=jnp.float32)
    brightness = 1.0 + (u[:, 0] * 0.2 - 0.1)     # [0.9, 1.1)
    contrast = 1.0 + (u[:, 1] * 0.4 - 0.2)       # [0.8, 1.2)
    return jnp.stack([brightness, contrast], axis=1)   # [2, 2]


# ----------------------------------------------------------------------------
# Parameter init (deterministic, mirrors the PyTorch __init__ shapes).
# TODO(synk): the real YOLOv8 backbone is external; a 1x1 conv + ReLU stub
# producing 256 channels stands in for it.
# TODO(synk): BatchNorm running_mean/running_var buffers (train-mode side
# effect in PyTorch) are not tracked; only batch statistics are applied.
# ----------------------------------------------------------------------------
def init_params(key, c_in):
    k0, k1, k2, k3 = jax.random.split(key, 4)
    return {
        # backbone stub: 1x1 conv weight, pre-transposed to [in_ch, out_ch]
        "w_backbone": jax.random.normal(k0, (c_in, IN_FEATURES), jnp.float32) * 0.1,
        # head weights kept f32 for parity with the PyTorch reference
        "w1": jax.random.normal(k1, (IN_FEATURES, HIDDEN_DIM), jnp.float32)
              * (1.0 / jnp.sqrt(IN_FEATURES)),
        "bn1_gamma": jnp.ones((1, HIDDEN_DIM), jnp.float32),
        "bn1_beta": jnp.zeros((1, HIDDEN_DIM), jnp.float32),
        "w2": jax.random.normal(k2, (HIDDEN_DIM, OUT_FEATURES), jnp.float32)
              * (1.0 / jnp.sqrt(HIDDEN_DIM)),
        "b2": jax.random.normal(k3, (1, OUT_FEATURES), jnp.float32) * 0.01,
    }


def forward(params, x_nchw, aug_key):
    aug = make_aug_scalars(aug_key)
    return ssl_forward(params, x_nchw, aug)


if __name__ == "__main__":
    B, Cin, H, W = 2, 4, 16, 16
    x = jax.random.uniform(jax.random.PRNGKey(0), (B, Cin, H, W),
                           dtype=jnp.float32)   # NCHW like PyTorch
    params = init_params(jax.random.PRNGKey(1), Cin)

    out1, out2 = jax.jit(forward)(params, x, jax.random.PRNGKey(2))
    jax.block_until_ready((out1, out2))

    assert out1.shape == (B, OUT_FEATURES) and out2.shape == (B, OUT_FEATURES)
    assert out1.dtype == jnp.float32 and out2.dtype == jnp.float32
    assert bool(jnp.all(jnp.isfinite(out1))) and bool(jnp.all(jnp.isfinite(out2)))
    print("KERNEL_OK")
</pallas_src>

<mosaic_0001>
module attributes {stable_mosaic.version = 11 : i64} {
  func.func @_fused_kernel(%arg0: memref<2x2xf32, #tpu.memory_space<smem>>, %arg1: memref<2x256x4xf32, #tpu.memory_space<vmem>>, %arg2: memref<4x256xf32, #tpu.memory_space<vmem>>, %arg3: memref<4x1024xf32, #tpu.memory_space<vmem>>, %arg4: memref<4x4xf32, #tpu.memory_space<vmem>>, %arg5: memref<256x512xf32, #tpu.memory_space<vmem>>, %arg6: memref<1x512xf32, #tpu.memory_space<vmem>>, %arg7: memref<1x512xf32, #tpu.memory_space<vmem>>, %arg8: memref<512x256xf32, #tpu.memory_space<vmem>>, %arg9: memref<1x256xf32, #tpu.memory_space<vmem>>, %arg10: memref<4x256xf32, #tpu.memory_space<vmem>>) attributes {dimension_semantics = [], scalar_prefetch = 0 : i64, scratch_operands = 0 : i64, tpu.core_type = #tpu.core_type<tc>} {
    %c0 = arith.constant 0 : index
    %c0_0 = arith.constant 0 : index
    %c0_1 = arith.constant 0 : index
    %0 = vector.load %arg1[%c0, %c0_0, %c0_1] : memref<2x256x4xf32, #tpu.memory_space<vmem>>, vector<2x256x4xf32>
    %cst = arith.constant dense<0.000000e+00> : vector<2x256xf32>
    %1 = vector.multi_reduction <add>, %0, %cst [2] : vector<2x256x4xf32> to vector<2x256xf32>
    %2 = vector.shape_cast %1 : vector<2x256xf32> to vector<2x256x1xf32>
    %cst_2 = arith.constant 4.000000e+00 : f32
    %3 = vector.broadcast %cst_2 : f32 to vector<2x256x1xf32>
    %4 = arith.divf %2, %3 : vector<2x256x1xf32>
    %cst_3 = arith.constant dense<0.000000e+00> : vector<2x1xf32>
    %5 = vector.multi_reduction <add>, %4, %cst_3 [1] : vector<2x256x1xf32> to vector<2x1xf32>
    %6 = vector.shape_cast %5 : vector<2x1xf32> to vector<2x1x1xf32>
    %cst_4 = arith.constant 2.560000e+02 : f32
    %7 = vector.broadcast %cst_4 : f32 to vector<2x1x1xf32>
    %8 = arith.divf %6, %7 : vector<2x1x1xf32>
    %c0_5 = arith.constant 0 : index
    %c0_6 = arith.constant 0 : index
    %9 = memref.load %arg0[%c0_5, %c0_6] : memref<2x2xf32, #tpu.memory_space<smem>>
    %c0_7 = arith.constant 0 : index
    %c1 = arith.constant 1 : index
    %10 = memref.load %arg0[%c0_7, %c1] : memref<2x2xf32, #tpu.memory_space<smem>>
    %11 = vector.broadcast %8 : vector<2x1x1xf32> to vector<2x256x4xf32>
    %12 = arith.subf %0, %11 : vector<2x256x4xf32>
    %13 = vector.broadcast %10 : f32 to vector<2x256x4xf32>
    %14 = arith.mulf %12, %13 : vector<2x256x4xf32>
    %15 = vector.broadcast %9 : f32 to vector<2x1x1xf32>
    %16 = arith.mulf %8, %15 : vector<2x1x1xf32>
    %17 = vector.broadcast %16 : vector<2x1x1xf32> to vector<2x256x4xf32>
    %18 = arith.addf %14, %17 : vector<2x256x4xf32>
    %cst_8 = arith.constant 0.000000e+00 : f32
    %cst_9 = arith.constant 1.000000e+00 : f32
    %19 = vector.broadcast %cst_8 : f32 to vector<2x256x4xf32>
    %20 = arith.maximumf %19, %18 : vector<2x256x4xf32>
    %21 = vector.broadcast %cst_9 : f32 to vector<2x256x4xf32>
    %22 = arith.minimumf %21, %20 : vector<2x256x4xf32>
    %23 = vector.shape_cast %22 : vector<2x256x4xf32> to vector<512x4xf32>
    %c1_10 = arith.constant 1 : index
    %c0_11 = arith.constant 0 : index
    %24 = memref.load %arg0[%c1_10, %c0_11] : memref<2x2xf32, #tpu.memory_space<smem>>
    %c1_12 = arith.constant 1 : index
    %c1_13 = arith.constant 1 : index
    %25 = memref.load %arg0[%c1_12, %c1_13] : memref<2x2xf32, #tpu.memory_space<smem>>
    %26 = vector.broadcast %8 : vector<2x1x1xf32> to vector<2x256x4xf32>
    %27 = arith.subf %0, %26 : vector<2x256x4xf32>
    %28 = vector.broadcast %25 : f32 to vector<2x256x4xf32>
    %29 = arith.mulf %27, %28 : vector<2x256x4xf32>
    %30 = vector.broadcast %24 : f32 to vector<2x1x1xf32>
    %31 = arith.mulf %8, %30 : vector<2x1x1xf32>
    %32 = vector.broadcast %31 : vector<2x1x1xf32> to vector<2x256x4xf32>
    %33 = arith.addf %29, %32 : vector<2x256x4xf32>
    %cst_14 = arith.constant 0.000000e+00 : f32
    %cst_15 = arith.constant 1.000000e+00 : f32
    %34 = vector.broadcast %cst_14 : f32 to vector<2x256x4xf32>
    %35 = arith.maximumf %34, %33 : vector<2x256x4xf32>
    %36 = vector.broadcast %cst_15 : f32 to vector<2x256x4xf32>
    %37 = arith.minimumf %36, %35 : vector<2x256x4xf32>
    %38 = vector.shape_cast %37 : vector<2x256x4xf32> to vector<512x4xf32>
    %39 = tpu.concatenate %23, %38 in 0 : vector<512x4xf32>, vector<512x4xf32> -> vector<1024x4xf32>
    %c0_16 = arith.constant 0 : index
    %c0_17 = arith.constant 0 : index
    %40 = vector.load %arg2[%c0_16, %c0_17] : memref<4x256xf32, #tpu.memory_space<vmem>>, vector<4x256xf32>
    %cst_18 = arith.constant dense<0.000000e+00> : vector<1024x256xf32>
    %41 = tpu.matmul %39, %40, %cst_18 {dimension_numbers = #tpu.dot_dimension_numbers<[1], [0], [0], [1], [0, 0, 1, 1], [], []>} : vector<1024x4xf32>, vector<4x256xf32>, vector<1024x256xf32> -> vector<1024x256xf32>
    %cst_19 = arith.constant 0.000000e+00 : f32
    %42 = vector.broadcast %cst_19 : f32 to vector<1024x256xf32>
    %43 = arith.maximumf %41, %42 : vector<1024x256xf32>
    %c0_20 = arith.constant 0 : index
    %c0_21 = arith.constant 0 : index
    %44 = vector.load %arg3[%c0_20, %c0_21] : memref<4x1024xf32, #tpu.memory_space<vmem>>, vector<4x1024xf32>
    %cst_22 = arith.constant dense<0.000000e+00> : vector<4x256xf32>
    %45 = tpu.matmul %44, %43, %cst_22 {dimension_numbers = #tpu.dot_dimension_numbers<[1], [0], [0], [1], [0, 0, 1, 1], [], []>} : vector<4x1024xf32>, vector<1024x256xf32>, vector<4x256xf32> -> vector<4x256xf32>
    %c0_23 = arith.constant 0 : index
    %c0_24 = arith.constant 0 : index
    %46 = vector.load %arg5[%c0_23, %c0_24] : memref<256x512xf32, #tpu.memory_space<vmem>>, vector<256x512xf32>
    %cst_25 = arith.constant dense<0.000000e+00> : vector<4x512xf32>
    %47 = tpu.matmul %45, %46, %cst_25 {dimension_numbers = #tpu.dot_dimension_numbers<[1], [0], [0], [1], [0, 0, 1, 1], [], []>} : vector<4x256xf32>, vector<256x512xf32>, vector<4x512xf32> -> vector<4x512xf32>
    %c0_26 = arith.constant 0 : index
    %c0_27 = arith.constant 0 : index
    %48 = vector.load %arg4[%c0_26, %c0_27] : memref<4x4xf32, #tpu.memory_space<vmem>>, vector<4x4xf32>
    %cst_28 = arith.constant dense<0.000000e+00> : vector<4x512xf32>
    %49 = tpu.matmul %48, %47, %cst_28 {dimension_numbers = #tpu.dot_dimension_numbers<[1], [0], [0], [1], [0, 0, 1, 1], [], []>} : vector<4x4xf32>, vector<4x512xf32>, vector<4x512xf32> -> vector<4x512xf32>
    %50 = arith.subf %47, %49 : vector<4x512xf32>
    %51 = arith.mulf %50, %50 : vector<4x512xf32>
    %cst_29 = arith.constant dense<0.000000e+00> : vector<4x512xf32>
    %52 = tpu.matmul %48, %51, %cst_29 {dimension_numbers = #tpu.dot_dimension_numbers<[1], [0], [0], [1], [0, 0, 1, 1], [], []>} : vector<4x4xf32>, vector<4x512xf32>, vector<4x512xf32> -> vector<4x512xf32>
    %cst_30 = arith.constant 9.99999974E-6 : f32
    %53 = vector.broadcast %cst_30 : f32 to vector<4x512xf32>
    %54 = arith.addf %52, %53 : vector<4x512xf32>
    %55 = math.rsqrt %54 : vector<4x512xf32>
    %56 = arith.mulf %50, %55 : vector<4x512xf32>
    %c0_31 = arith.constant 0 : index
    %c0_32 = arith.constant 0 : index
    %57 = vector.load %arg6[%c0_31, %c0_32] : memref<1x512xf32, #tpu.memory_space<vmem>>, vector<1x512xf32>
    %58 = vector.broadcast %57 : vector<1x512xf32> to vector<4x512xf32>
    %59 = arith.mulf %56, %58 : vector<4x512xf32>
    %c0_33 = arith.constant 0 : index
    %c0_34 = arith.constant 0 : index
    %60 = vector.load %arg7[%c0_33, %c0_34] : memref<1x512xf32, #tpu.memory_space<vmem>>, vector<1x512xf32>
    %61 = vector.broadcast %60 : vector<1x512xf32> to vector<4x512xf32>
    %62 = arith.addf %59, %61 : vector<4x512xf32>
    %cst_35 = arith.constant 5.000000e-01 : f32
    %63 = vector.broadcast %cst_35 : f32 to vector<4x512xf32>
    %64 = arith.mulf %63, %62 : vector<4x512xf32>
    %cst_36 = arith.constant 0.707106769 : f32
    %65 = vector.broadcast %cst_36 : f32 to vector<4x512xf32>
    %66 = arith.mulf %62, %65 : vector<4x512xf32>
    %67 = math.erf %66 : vector<4x512xf32>
    %cst_37 = arith.constant 1.000000e+00 : f32
    %68 = vector.broadcast %cst_37 : f32 to vector<4x512xf32>
    %69 = arith.addf %68, %67 : vector<4x512xf32>
    %70 = arith.mulf %64, %69 : vector<4x512xf32>
    %c0_38 = arith.constant 0 : index
    %c0_39 = arith.constant 0 : index
    %71 = vector.load %arg8[%c0_38, %c0_39] : memref<512x256xf32, #tpu.memory_space<vmem>>, vector<512x256xf32>
    %cst_40 = arith.constant dense<0.000000e+00> : vector<4x256xf32>
    %72 = tpu.matmul %70, %71, %cst_40 {dimension_numbers = #tpu.dot_dimension_numbers<[1], [0], [0], [1], [0, 0, 1, 1], [], []>} : vector<4x512xf32>, vector<512x256xf32>, vector<4x256xf32> -> vector<4x256xf32>
    %c0_41 = arith.constant 0 : index
    %c0_42 = arith.constant 0 : index
    %73 = vector.load %arg9[%c0_41, %c0_42] : memref<1x256xf32, #tpu.memory_space<vmem>>, vector<1x256xf32>
    %74 = vector.broadcast %73 : vector<1x256xf32> to vector<4x256xf32>
    %75 = arith.addf %72, %74 : vector<4x256xf32>
    %cst_43 = arith.constant dense<0.000000e+00> : vector<4x256xf32>
    %76 = tpu.matmul %48, %75, %cst_43 {dimension_numbers = #tpu.dot_dimension_numbers<[1], [0], [0], [1], [0, 0, 1, 1], [], []>} : vector<4x4xf32>, vector<4x256xf32>, vector<4x256xf32> -> vector<4x256xf32>
    %77 = arith.subf %75, %76 : vector<4x256xf32>
    %78 = arith.mulf %77, %77 : vector<4x256xf32>
    %cst_44 = arith.constant dense<0.000000e+00> : vector<4x256xf32>
    %79 = tpu.matmul %48, %78, %cst_44 {dimension_numbers = #tpu.dot_dimension_numbers<[1], [0], [0], [1], [0, 0, 1, 1], [], []>} : vector<4x4xf32>, vector<4x256xf32>, vector<4x256xf32> -> vector<4x256xf32>
    %cst_45 = arith.constant 9.99999974E-6 : f32
    %80 = vector.broadcast %cst_45 : f32 to vector<4x256xf32>
    %81 = arith.addf %79, %80 : vector<4x256xf32>
    %82 = math.rsqrt %81 : vector<4x256xf32>
    %83 = arith.mulf %77, %82 : vector<4x256xf32>
    %c0_46 = arith.constant 0 : index
    %c0_47 = arith.constant 0 : index
    %84 = vector.load %arg10[%c0_46, %c0_47] : memref<4x256xf32, #tpu.memory_space<vmem>>, vector<4x256xf32>
    tpu.vector_store %arg10[%c0_46, %c0_47], %83 {strides = array<i32>} : memref<4x256xf32, #tpu.memory_space<vmem>>, vector<4x256xf32>,
    return
  }
}

</mosaic_0001>

<llo_original>
// kernel: forward.1
$region0: #{forward.1}
  #allocation0 [shape = 'u32[]', space=smem, size = 0x4, offset = 0x4, fixed_abs, tag = 'smem constant byte address 0x4 - core index']
  #allocation1 [shape = 'u32[72,128]{1,0:T(1,128)}', space=vmem, size = 0x9000, scoped, tag = 'internal scratch']
  %s0 = inlined_call_operand.vmem [shape: f32[2,2], index: 0, kind: input, shape index: {}]
  %s1 = inlined_call_operand.vmem [shape: f32[2,256,4], index: 1, kind: input, shape index: {}]
  %s2 = inlined_call_operand.vmem [shape: f32[4,256], index: 2, kind: input, shape index: {}]
  %s3 = inlined_call_operand.vmem [shape: f32[4,1024], index: 3, kind: input, shape index: {}]
  %s4 = inlined_call_operand.vmem [shape: f32[4,4], index: 4, kind: input, shape index: {}]
  %s5 = inlined_call_operand.hbm [shape: f32[256,512], index: 5, kind: input, shape index: {}]
  %s6 = inlined_call_operand.vmem [shape: f32[1,512], index: 6, kind: input, shape index: {}]
  %s7 = inlined_call_operand.vmem [shape: f32[1,512], index: 7, kind: input, shape index: {}]
  %s8 = inlined_call_operand.hbm [shape: f32[512,256], index: 8, kind: input, shape index: {}]
  %s9 = inlined_call_operand.vmem [shape: f32[1,256], index: 9, kind: input, shape index: {}]
  %s10 = inlined_call_operand.vmem [shape: f32[4,256], index: 10, kind: output, shape index: {}]
  %s11 = sld [smem:[#allocation0]]
  $region62: #{forward.1} parent=0
    _
  %s13 = ssub.s32 1, %s11
  %s14 = scalar_select 0, %s13, %s11
  $region1: #{forward.1} parent=0
    #allocation2 [shape = 'u8[1024]{0}', space=smem, size = 0x400, scoped, tag = 'input window, operand 0, single buffered']
    #allocation3 [shape = 's32[1]{0}', space=sflag, size = 0x4, scoped, tag = 'scoped memory for forward.1']
    #allocation4 [shape = 's32[1]{0}', space=sflag, size = 0x4, scoped, tag = 'scoped memory for forward.1']
    #allocation5 [shape = 'u8[524288]{0}', space=vmem, size = 0x80000, scoped, tag = 'input window, operand 5, single buffered']
    #allocation6 [shape = 'u8[524288]{0}', space=vmem, size = 0x80000, scoped, tag = 'input window, operand 8, single buffered']
    #allocation7 [shape = 's32[1]{0}', space=sflag, size = 0x4, scoped, tag = 'scoped memory for forward.1']
    %15 = vsyncpa [#allocation4], 0
    %16 = vsyncpa [#allocation3], 0
    %17 = vsyncpa [#allocation7], 0
    // Predicated region
    $region2: #{forward.1} parent=1 // pred_check
      _
    $region3: #{forward.1} parent=1 // pred_check_branch
      %19 = sbr.rel (0) target = $region5
    $region4: #{forward.1} parent=1 // pred_region
      %21 = vsyncadd [#allocation4], 0
      %s23 = sshll.u32 %s0, 4
      %s24 = int_to_ptr.vmem [resolvable:$true] %s23
      %26 = dma.vmem_to_smem %s24, 32, [#allocation2], [#allocation4]
    $region5: #{forward.1} parent=1 // pred_fallthru
      _
    // Predicated region
    $region6: #{forward.1} parent=1 // pred_check
      _
    $region7: #{forward.1} parent=1 // pred_check_branch
      %28 = sbr.rel (0) target = $region9
    $region8: #{forward.1} parent=1 // pred_region
      _
    $region9: #{forward.1} parent=1 // pred_fallthru
      _
    // Predicated region
    $region10: #{forward.1} parent=1 // pred_check
      _
    $region11: #{forward.1} parent=1 // pred_check_branch
      %30 = sbr.rel (0) target = $region13
    $region12: #{forward.1} parent=1 // pred_region
      _
    $region13: #{forward.1} parent=1 // pred_fallthru
      _
    // Predicated region
    $region14: #{forward.1} parent=1 // pred_check
      _
    $region15: #{forward.1} parent=1 // pred_check_branch
      %32 = sbr.rel (0) target = $region17
    $region16: #{forward.1} parent=1 // pred_region
      _
    $region17: #{forward.1} parent=1 // pred_fallthru
      _
    // Predicated region
    $region18: #{forward.1} parent=1 // pred_check
      _
    $region19: #{forward.1} parent=1 // pred_check_branch
      %34 = sbr.rel (0) target = $region21
    $region20: #{forward.1} parent=1 // pred_region
      _
    $region21: #{forward.1} parent=1 // pred_fallthru
      _
    // Predicated region
    $region22: #{forward.1} parent=1 // pred_check
      _
    $region23: #{forward.1} parent=1 // pred_check_branch
      %36 = sbr.rel (0) target = $region25
    $region24: #{forward.1} parent=1 // pred_region
      %38 = vsyncadd [#allocation3], 0
      %s39 = sshll.u32 %s5, 4
      %s40 = int_to_ptr.hbm [resolvable:$true] %s39
      %s41 = sshll.u32 [#allocation5], 4
      %s42 = int_to_ptr.vmem [resolvable:$true] %s41
      %47 = dma.hbm_to_vmem [thread:$0]  %s40, 16384, %s42, [#allocation3], 512, 512, 32
    $region25: #{forward.1} parent=1 // pred_fallthru
      _
    // Predicated region
    $region26: #{forward.1} parent=1 // pred_check
      _
    $region27: #{forward.1} parent=1 // pred_check_branch
      %49 = sbr.rel (0) target = $region29
    $region28: #{forward.1} parent=1 // pred_region
      _
    $region29: #{forward.1} parent=1 // pred_fallthru
      _
    // Predicated region
    $region30: #{forward.1} parent=1 // pred_check
      _
    $region31: #{forward.1} parent=1 // pred_check_branch
      %51 = sbr.rel (0) target = $region33
    $region32: #{forward.1} parent=1 // pred_region
      _
    $region33: #{forward.1} parent=1 // pred_fallthru
      _
    // Predicated region
    $region34: #{forward.1} parent=1 // pred_check
      _
    $region35: #{forward.1} parent=1 // pred_check_branch
      %53 = sbr.rel (0) target = $region37
    $region36: #{forward.1} parent=1 // pred_region
      %55 = vsyncadd [#allocation7], 0
      %s56 = sshll.u32 %s8, 4
      %s57 = int_to_ptr.hbm [resolvable:$true] %s56
      %s58 = sshll.u32 [#allocation6], 4
      %s59 = int_to_ptr.vmem [resolvable:$true] %s58
      %64 = dma.hbm_to_vmem [thread:$0]  %s57, 16384, %s59, [#allocation7], 256, 256, 16
    $region37: #{forward.1} parent=1 // pred_fallthru
      _
    // Predicated region
    $region38: #{forward.1} parent=1 // pred_check
      _
    $region39: #{forward.1} parent=1 // pred_check_branch
      %66 = sbr.rel (0) target = $region41
    $region40: #{forward.1} parent=1 // pred_region
      _
    $region41: #{forward.1} parent=1 // pred_fallthru
      _
    // Predicated region
    $region42: #{forward.1} parent=1 // pred_check
      _
    $region43: #{forward.1} parent=1 // pred_check_branch
      %68 = sbr.rel (0) target = $region45
    $region44: #{forward.1} parent=1 // pred_region
      %70 = dma.done [#allocation4], 32
    $region45: #{forward.1} parent=1 // pred_fallthru
      _
    // Predicated region
    $region46: #{forward.1} parent=1 // pred_check
      _
    $region47: #{forward.1} parent=1 // pred_check_branch
      %72 = sbr.rel (0) target = $region49
    $region48: #{forward.1} parent=1 // pred_region
      %74 = dma.done [#allocation3], 16384
    $region49: #{forward.1} parent=1 // pred_fallthru
      _
    // Predicated region
    $region50: #{forward.1} parent=1 // pred_check
      _
    $region51: #{forward.1} parent=1 // pred_check_branch
      %76 = sbr.rel (0) target = $region53
    $region52: #{forward.1} parent=1 // pred_region
      %78 = dma.done [#allocation7], 16384
    $region53: #{forward.1} parent=1 // pred_fallthru
      _
    %79 = sfence
    %v80 = vld [vmem:[%s1] sm:$0xff]
    %v81 = vld [vmem:[%s1 + $0x8] sm:$0xff]
    %v82 = vld [vmem:[%s1 + $0x10] sm:$0xff]
    %v83 = vld [vmem:[%s1 + $0x18] sm:$0xff]
    %v84 = vld [vmem:[%s1 + $0x20] sm:$0xff]
    %v85 = vld [vmem:[%s1 + $0x28] sm:$0xff]
    %v86 = vld [vmem:[%s1 + $0x30] sm:$0xff]
    %v87 = vld [vmem:[%s1 + $0x38] sm:$0xff]
    %v88 = vld [vmem:[%s1 + $0x40] sm:$0xff]
    %v89 = vld [vmem:[%s1 + $0x48] sm:$0xff]
    %v90 = vld [vmem:[%s1 + $0x50] sm:$0xff]
    %v91 = vld [vmem:[%s1 + $0x58] sm:$0xff]
    %v92 = vld [vmem:[%s1 + $0x60] sm:$0xff]
    %v93 = vld [vmem:[%s1 + $0x68] sm:$0xff]
    %v94 = vld [vmem:[%s1 + $0x70] sm:$0xff]
    %v95 = vld [vmem:[%s1 + $0x78] sm:$0xff]
    %v96 = vld [vmem:[%s1 + $0x80] sm:$0xff]
    %v97 = vld [vmem:[%s1 + $0x88] sm:$0xff]
    %v98 = vld [vmem:[%s1 + $0x90] sm:$0xff]
    %v99 = vld [vmem:[%s1 + $0x98] sm:$0xff]
    %v100 = vld [vmem:[%s1 + $0xa0] sm:$0xff]
    %v101 = vld [vmem:[%s1 + $0xa8] sm:$0xff]
    %v102 = vld [vmem:[%s1 + $0xb0] sm:$0xff]
    %v103 = vld [vmem:[%s1 + $0xb8] sm:$0xff]
    %v104 = vld [vmem:[%s1 + $0xc0] sm:$0xff]
    %v105 = vld [vmem:[%s1 + $0xc8] sm:$0xff]
    %v106 = vld [vmem:[%s1 + $0xd0] sm:$0xff]
    %v107 = vld [vmem:[%s1 + $0xd8] sm:$0xff]
    %v108 = vld [vmem:[%s1 + $0xe0] sm:$0xff]
    %v109 = vld [vmem:[%s1 + $0xe8] sm:$0xff]
    %v110 = vld [vmem:[%s1 + $0xf0] sm:$0xff]
    %v111 = vld [vmem:[%s1 + $0xf8] sm:$0xff]
    %v112 = vld [vmem:[%s1 + $0x100] sm:$0xff]
    %v113 = vld [vmem:[%s1 + $0x108] sm:$0xff]
    %v114 = vld [vmem:[%s1 + $0x110] sm:$0xff]
    %v115 = vld [vmem:[%s1 + $0x118] sm:$0xff]
    %v116 = vld [vmem:[%s1 + $0x120] sm:$0xff]
    %v117 = vld [vmem:[%s1 + $0x128] sm:$0xff]
    %v118 = vld [vmem:[%s1 + $0x130] sm:$0xff]
    %v119 = vld [vmem:[%s1 + $0x138] sm:$0xff]
    %v120 = vld [vmem:[%s1 + $0x140] sm:$0xff]
    %v121 = vld [vmem:[%s1 + $0x148] sm:$0xff]
    %v122 = vld [vmem:[%s1 + $0x150] sm:$0xff]
    %v123 = vld [vmem:[%s1 + $0x158] sm:$0xff]
    %v124 = vld [vmem:[%s1 + $0x160] sm:$0xff]
    %v125 = vld [vmem:[%s1 + $0x168] sm:$0xff]
    %v126 = vld [vmem:[%s1 + $0x170] sm:$0xff]
    %v127 = vld [vmem:[%s1 + $0x178] sm:$0xff]
    %v128 = vld [vmem:[%s1 + $0x180] sm:$0xff]
    %v129 = vld [vmem:[%s1 + $0x188] sm:$0xff]
    %v130 = vld [vmem:[%s1 + $0x190] sm:$0xff]
    %v131 = vld [vmem:[%s1 + $0x198] sm:$0xff]
    %v132 = vld [vmem:[%s1 + $0x1a0] sm:$0xff]
    %v133 = vld [vmem:[%s1 + $0x1a8] sm:$0xff]
    %v134 = vld [vmem:[%s1 + $0x1b0] sm:$0xff]
    %v135 = vld [vmem:[%s1 + $0x1b8] sm:$0xff]
    %v136 = vld [vmem:[%s1 + $0x1c0] sm:$0xff]
    %v137 = vld [vmem:[%s1 + $0x1c8] sm:$0xff]
    %v138 = vld [vmem:[%s1 + $0x1d0] sm:$0xff]
    %v139 = vld [vmem:[%s1 + $0x1d8] sm:$0xff]
    %v140 = vld [vmem:[%s1 + $0x1e0] sm:$0xff]
    %v141 = vld [vmem:[%s1 + $0x1e8] sm:$0xff]
    %v142 = vld [vmem:[%s1 + $0x1f0] sm:$0xff]
    %v143 = vld [vmem:[%s1 + $0x1f8] sm:$0xff]
    %vm144 = vcmask 31744
    %v145 = vsel %vm144, %v80, 0.0
    %146 = vadd.xlane.f32.xlu0 %v145
    %v147 = vpop.xlane.xlu0 %146
    %v148 = vsel %vm144, %v81, 0.0
    %149 = vadd.xlane.f32.xlu0 %v148
    %v150 = vpop.xlane.xlu0 %149
    %v151 = vsel %vm144, %v82, 0.0
    %152 = vadd.xlane.f32.xlu0 %v151
    %v153 = vpop.xlane.xlu0 %152
    %v154 = vsel %vm144, %v83, 0.0
    %155 = vadd.xlane.f32.xlu0 %v154
    %v156 = vpop.xlane.xlu0 %155
    %v157 = vsel %vm144, %v84, 0.0
    %158 = vadd.xlane.f32.xlu0 %v157
    %v159 = vpop.xlane.xlu0 %158
    %v160 = vsel %vm144, %v85, 0.0
    %161 = vadd.xlane.f32.xlu0 %v160
    %v162 = vpop.xlane.xlu0 %161
    %v163 = vsel %vm144, %v86, 0.0
    %164 = vadd.xlane.f32.xlu0 %v163
    %v165 = vpop.xlane.xlu0 %164
    %v166 = vsel %vm144, %v87, 0.0
    %167 = vadd.xlane.f32.xlu0 %v166
    %v168 = vpop.xlane.xlu0 %167
    %v169 = vsel %vm144, %v88, 0.0
    %170 = vadd.xlane.f32.xlu0 %v169
    %v171 = vpop.xlane.xlu0 %170
    %v172 = vsel %vm144, %v89, 0.0
    %173 = vadd.xlane.f32.xlu0 %v172
    %v174 = vpop.xlane.xlu0 %173
    %v175 = vsel %vm144, %v90, 0.0
    %176 = vadd.xlane.f32.xlu0 %v175
    %v177 = vpop.xlane.xlu0 %176
    %v178 = vsel %vm144, %v91, 0.0
    %179 = vadd.xlane.f32.xlu0 %v178
    %v180 = vpop.xlane.xlu0 %179
    %v181 = vsel %vm144, %v92, 0.0
    %182 = vadd.xlane.f32.xlu0 %v181
    %v183 = vpop.xlane.xlu0 %182
    %v184 = vsel %vm144, %v93, 0.0
    %185 = vadd.xlane.f32.xlu0 %v184
    %v186 = vpop.xlane.xlu0 %185
    %v187 = vsel %vm144, %v94, 0.0
    %188 = vadd.xlane.f32.xlu0 %v187
    %v189 = vpop.xlane.xlu0 %188
    %v190 = vsel %vm144, %v95, 0.0
    %191 = vadd.xlane.f32.xlu0 %v190
    %v192 = vpop.xlane.xlu0 %191
    %v193 = vsel %vm144, %v96, 0.0
    %194 = vadd.xlane.f32.xlu0 %v193
    %v195 = vpop.xlane.xlu0 %194
    %v196 = vsel %vm144, %v97, 0.0
    %197 = vadd.xlane.f32.xlu0 %v196
    %v198 = vpop.xlane.xlu0 %197
    %v199 = vsel %vm144, %v98, 0.0
    %200 = vadd.xlane.f32.xlu0 %v199
    %v201 = vpop.xlane.xlu0 %200
    %v202 = vsel %vm144, %v99, 0.0
    %203 = vadd.xlane.f32.xlu0 %v202
    %v204 = vpop.xlane.xlu0 %203
    %v205 = vsel %vm144, %v100, 0.0
    %206 = vadd.xlane.f32.xlu0 %v205
    %v207 = vpop.xlane.xlu0 %206
    %v208 = vsel %vm144, %v101, 0.0
    %209 = vadd.xlane.f32.xlu0 %v208
    %v210 = vpop.xlane.xlu0 %209
    %v211 = vsel %vm144, %v102, 0.0
    %212 = vadd.xlane.f32.xlu0 %v211
    %v213 = vpop.xlane.xlu0 %212
    %v214 = vsel %vm144, %v103, 0.0
    %215 = vadd.xlane.f32.xlu0 %v214
    %v216 = vpop.xlane.xlu0 %215
    %v217 = vsel %vm144, %v104, 0.0
    %218 = vadd.xlane.f32.xlu0 %v217
    %v219 = vpop.xlane.xlu0 %218
    %v220 = vsel %vm144, %v105, 0.0
    %221 = vadd.xlane.f32.xlu0 %v220
    %v222 = vpop.xlane.xlu0 %221
    %v223 = vsel %vm144, %v106, 0.0
    %224 = vadd.xlane.f32.xlu0 %v223
    %v225 = vpop.xlane.xlu0 %224
    %v226 = vsel %vm144, %v107, 0.0
    %227 = vadd.xlane.f32.xlu0 %v226
    %v228 = vpop.xlane.xlu0 %227
    %v229 = vsel %vm144, %v108, 0.0
    %230 = vadd.xlane.f32.xlu0 %v229
    %v231 = vpop.xlane.xlu0 %230
    %v232 = vsel %vm144, %v109, 0.0
    %233 = vadd.xlane.f32.xlu0 %v232
    %v234 = vpop.xlane.xlu0 %233
    %v235 = vsel %vm144, %v110, 0.0
    %236 = vadd.xlane.f32.xlu0 %v235
    %v237 = vpop.xlane.xlu0 %236
    %v238 = vsel %vm144, %v111, 0.0
    %239 = vadd.xlane.f32.xlu0 %v238
    %v240 = vpop.xlane.xlu0 %239
    %v241 = vsel %vm144, %v112, 0.0
    %242 = vadd.xlane.f32.xlu0 %v241
    %v243 = vpop.xlane.xlu0 %242
    %v244 = vsel %vm144, %v113, 0.0
    %245 = vadd.xlane.f32.xlu0 %v244
    %v246 = vpop.xlane.xlu0 %245
    %v247 = vsel %vm144, %v114, 0.0
    %248 = vadd.xlane.f32.xlu0 %v247
    %v249 = vpop.xlane.xlu0 %248
    %v250 = vsel %vm144, %v115, 0.0
    %251 = vadd.xlane.f32.xlu0 %v250
    %v252 = vpop.xlane.xlu0 %251
    %v253 = vsel %vm144, %v116, 0.0
    %254 = vadd.xlane.f32.xlu0 %v253
    %v255 = vpop.xlane.xlu0 %254
    %v256 = vsel %vm144, %v117, 0.0
    %257 = vadd.xlane.f32.xlu0 %v256
    %v258 = vpop.xlane.xlu0 %257
    %v259 = vsel %vm144, %v118, 0.0
    %260 = vadd.xlane.f32.xlu0 %v259
    %v261 = vpop.xlane.xlu0 %260
    %v262 = vsel %vm144, %v119, 0.0
    %263 = vadd.xlane.f32.xlu0 %v262
    %v264 = vpop.xlane.xlu0 %263
    %v265 = vsel %vm144, %v120, 0.0
    %266 = vadd.xlane.f32.xlu0 %v265
    %v267 = vpop.xlane.xlu0 %266
    %v268 = vsel %vm144, %v121, 0.0
    %269 = vadd.xlane.f32.xlu0 %v268
    %v270 = vpop.xlane.xlu0 %269
    %v271 = vsel %vm144, %v122, 0.0
    %272 = vadd.xlane.f32.xlu0 %v271
    %v273 = vpop.xlane.xlu0 %272
    %v274 = vsel %vm144, %v123, 0.0
    %275 = vadd.xlane.f32.xlu0 %v274
    %v276 = vpop.xlane.xlu0 %275
    %v277 = vsel %vm144, %v124, 0.0
    %278 = vadd.xlane.f32.xlu0 %v277
    %v279 = vpop.xlane.xlu0 %278
    %v280 = vsel %vm144, %v125, 0.0
    %281 = vadd.xlane.f32.xlu0 %v280
    %v282 = vpop.xlane.xlu0 %281
    %v283 = vsel %vm144, %v126, 0.0
    %284 = vadd.xlane.f32.xlu0 %v283
    %v285 = vpop.xlane.xlu0 %284
    %v286 = vsel %vm144, %v127, 0.0
    %287 = vadd.xlane.f32.xlu0 %v286
    %v288 = vpop.xlane.xlu0 %287
    %v289 = vsel %vm144, %v128, 0.0
    %290 = vadd.xlane.f32.xlu0 %v289
    %v291 = vpop.xlane.xlu0 %290
    %v292 = vsel %vm144, %v129, 0.0
    %293 = vadd.xlane.f32.xlu0 %v292
    %v294 = vpop.xlane.xlu0 %293
    %v295 = vsel %vm144, %v130, 0.0
    %296 = vadd.xlane.f32.xlu0 %v295
    %v297 = vpop.xlane.xlu0 %296
    %v298 = vsel %vm144, %v131, 0.0
    %299 = vadd.xlane.f32.xlu0 %v298
    %v300 = vpop.xlane.xlu0 %299
    %v301 = vsel %vm144, %v132, 0.0
    %302 = vadd.xlane.f32.xlu0 %v301
    %v303 = vpop.xlane.xlu0 %302
    %v304 = vsel %vm144, %v133, 0.0
    %305 = vadd.xlane.f32.xlu0 %v304
    %v306 = vpop.xlane.xlu0 %305
    %v307 = vsel %vm144, %v134, 0.0
    %308 = vadd.xlane.f32.xlu0 %v307
    %v309 = vpop.xlane.xlu0 %308
    %v310 = vsel %vm144, %v135, 0.0
    %311 = vadd.xlane.f32.xlu0 %v310
    %v312 = vpop.xlane.xlu0 %311
    %v313 = vsel %vm144, %v136, 0.0
    %314 = vadd.xlane.f32.xlu0 %v313
    %v315 = vpop.xlane.xlu0 %314
    %v316 = vsel %vm144, %v137, 0.0
    %317 = vadd.xlane.f32.xlu0 %v316
    %v318 = vpop.xlane.xlu0 %317
    %v319 = vsel %vm144, %v138, 0.0
    %320 = vadd.xlane.f32.xlu0 %v319
    %v321 = vpop.xlane.xlu0 %320
    %v322 = vsel %vm144, %v139, 0.0
    %323 = vadd.xlane.f32.xlu0 %v322
    %v324 = vpop.xlane.xlu0 %323
    %v325 = vsel %vm144, %v140, 0.0
    %326 = vadd.xlane.f32.xlu0 %v325
    %v327 = vpop.xlane.xlu0 %326
    %v328 = vsel %vm144, %v141, 0.0
    %329 = vadd.xlane.f32.xlu0 %v328
    %v330 = vpop.xlane.xlu0 %329
    %v331 = vsel %vm144, %v142, 0.0
    %332 = vadd.xlane.f32.xlu0 %v331
    %v333 = vpop.xlane.xlu0 %332
    %v334 = vsel %vm144, %v143, 0.0
    %335 = vadd.xlane.f32.xlu0 %v334
    %v336 = vpop.xlane.xlu0 %335
    %v337 = vrcp.pop 4.0
    %v338 = vmul.f32 4.0, %v337
    %v339 = vsub.f32 1.0, %v338
    %v340 = vmul.f32 %v337, %v339
    %v341 = vadd.f32 %v337, %v340
    %vm342 = vweird.f32 %v337
    %v343 = vsel %vm342, %v337, %v341
    %v344 = vmul.f32 %v147, %v343
    %v345 = vmul.f32 %v150, %v343
    %v346 = vmul.f32 %v153, %v343
    %v347 = vmul.f32 %v156, %v343
    %v348 = vmul.f32 %v159, %v343
    %v349 = vmul.f32 %v162, %v343
    %v350 = vmul.f32 %v165, %v343
    %v351 = vmul.f32 %v168, %v343
    %v352 = vmul.f32 %v171, %v343
    %v353 = vmul.f32 %v174, %v343
    %v354 = vmul.f32 %v177, %v343
    %v355 = vmul.f32 %v180, %v343
    %v356 = vmul.f32 %v183, %v343
    %v357 = vmul.f32 %v186, %v343
    %v358 = vmul.f32 %v189, %v343
    %v359 = vmul.f32 %v192, %v343
    %v360 = vmul.f32 %v195, %v343
    %v361 = vmul.f32 %v198, %v343
    %v362 = vmul.f32 %v201, %v343
    %v363 = vmul.f32 %v204, %v343
    %v364 = vmul.f32 %v207, %v343
    %v365 = vmul.f32 %v210, %v343
    %v366 = vmul.f32 %v213, %v343
    %v367 = vmul.f32 %v216, %v343
    %v368 = vmul.f32 %v219, %v343
    %v369 = vmul.f32 %v222, %v343
    %v370 = vmul.f32 %v225, %v343
    %v371 = vmul.f32 %v228, %v343
    %v372 = vmul.f32 %v231, %v343
    %v373 = vmul.f32 %v234, %v343
    %v374 = vmul.f32 %v237, %v343
    %v375 = vmul.f32 %v240, %v343
    %v376 = vmul.f32 %v243, %v343
    %v377 = vmul.f32 %v246, %v343
    %v378 = vmul.f32 %v249, %v343
    %v379 = vmul.f32 %v252, %v343
    %v380 = vmul.f32 %v255, %v343
    %v381 = vmul.f32 %v258, %v343
    %v382 = vmul.f32 %v261, %v343
    %v383 = vmul.f32 %v264, %v343
    %v384 = vmul.f32 %v267, %v343
    %v385 = vmul.f32 %v270, %v343
    %v386 = vmul.f32 %v273, %v343
    %v387 = vmul.f32 %v276, %v343
    %v388 = vmul.f32 %v279, %v343
    %v389 = vmul.f32 %v282, %v343
    %v390 = vmul.f32 %v285, %v343
    %v391 = vmul.f32 %v288, %v343
    %v392 = vmul.f32 %v291, %v343
    %v393 = vmul.f32 %v294, %v343
    %v394 = vmul.f32 %v297, %v343
    %v395 = vmul.f32 %v300, %v343
    %v396 = vmul.f32 %v303, %v343
    %v397 = vmul.f32 %v306, %v343
    %v398 = vmul.f32 %v309, %v343
    %v399 = vmul.f32 %v312, %v343
    %v400 = vmul.f32 %v315, %v343
    %v401 = vmul.f32 %v318, %v343
    %v402 = vmul.f32 %v321, %v343
    %v403 = vmul.f32 %v324, %v343
    %v404 = vmul.f32 %v327, %v343
    %v405 = vmul.f32 %v330, %v343
    %v406 = vmul.f32 %v333, %v343
    %v407 = vmul.f32 %v336, %v343
    %v408 = vadd.f32 %v344, %v345
    %v409 = vadd.f32 %v408, %v346
    %v410 = vadd.f32 %v409, %v347
    %v411 = vadd.f32 %v410, %v348
    %v412 = vadd.f32 %v411, %v349
    %v413 = vadd.f32 %v412, %v350
    %v414 = vadd.f32 %v413, %v351
    %v415 = vadd.f32 %v414, %v352
    %v416 = vadd.f32 %v415, %v353
    %v417 = vadd.f32 %v416, %v354
    %v418 = vadd.f32 %v417, %v355
    %v419 = vadd.f32 %v418, %v356
    %v420 = vadd.f32 %v419, %v357
    %v421 = vadd.f32 %v420, %v358
    %v422 = vadd.f32 %v421, %v359
    %v423 = vadd.f32 %v422, %v360
    %v424 = vadd.f32 %v423, %v361
    %v425 = vadd.f32 %v424, %v362
    %v426 = vadd.f32 %v425, %v363
    %v427 = vadd.f32 %v426, %v364
    %v428 = vadd.f32 %v427, %v365
    %v429 = vadd.f32 %v428, %v366
    %v430 = vadd.f32 %v429, %v367
    %v431 = vadd.f32 %v430, %v368
    %v432 = vadd.f32 %v431, %v369
    %v433 = vadd.f32 %v432, %v370
    %v434 = vadd.f32 %v433, %v371
    %v435 = vadd.f32 %v434, %v372
    %v436 = vadd.f32 %v435, %v373
    %v437 = vadd.f32 %v436, %v374
    %v438 = vadd.f32 %v437, %v375
    %v439 = vrot.slane %v438, 4
    %v440 = vadd.f32 %v438, %v439
    %v441 = vrot.slane %v440, 2
    %v442 = vadd.f32 %v440, %v441
    %v443 = vrot.slane %v442, 1
    %v444 = vadd.f32 %v442, %v443
    %v445 = vadd.f32 %v376, %v377
    %v446 = vadd.f32 %v445, %v378
    %v447 = vadd.f32 %v446, %v379
    %v448 = vadd.f32 %v447, %v380
    %v449 = vadd.f32 %v448, %v381
    %v450 = vadd.f32 %v449, %v382
    %v451 = vadd.f32 %v450, %v383
    %v452 = vadd.f32 %v451, %v384
    %v453 = vadd.f32 %v452, %v385
    %v454 = vadd.f32 %v453, %v386
    %v455 = vadd.f32 %v454, %v387
    %v456 = vadd.f32 %v455, %v388
    %v457 = vadd.f32 %v456, %v389
    %v458 = vadd.f32 %v457, %v390
    %v459 = vadd.f32 %v458, %v391
    %v460 = vadd.f32 %v459, %v392
    %v461 = vadd.f32 %v460, %v393
    %v462 = vadd.f32 %v461, %v394
    %v463 = vadd.f32 %v462, %v395
    %v464 = vadd.f32 %v463, %v396
    %v465 = vadd.f32 %v464, %v397
    %v466 = vadd.f32 %v465, %v398
    %v467 = vadd.f32 %v466, %v399
    %v468 = vadd.f32 %v467, %v400
    %v469 = vadd.f32 %v468, %v401
    %v470 = vadd.f32 %v469, %v402
    %v471 = vadd.f32 %v470, %v403
    %v472 = vadd.f32 %v471, %v404
    %v473 = vadd.f32 %v472, %v405
    %v474 = vadd.f32 %v473, %v406
    %v475 = vadd.f32 %v474, %v407
    %v476 = vrot.slane %v475, 4
    %v477 = vadd.f32 %v475, %v476
    %v478 = vrot.slane %v477, 2
    %v479 = vadd.f32 %v477, %v478
    %v480 = vrot.slane %v479, 1
    %v481 = vadd.f32 %v479, %v480
    %v482 = vrcp.pop 256.0
    %v483 = vmul.f32 256.0, %v482
    %v484 = vsub.f32 1.0, %v483
    %v485 = vmul.f32 %v482, %v484
    %v486 = vadd.f32 %v482, %v485
    %vm487 = vweird.f32 %v482
    %v488 = vsel %vm487, %v482, %v486
    %v489 = vmul.f32 %v444, %v488
    %v490 = vmul.f32 %v481, %v488
    %s491 = sld [smem:[#allocation2]]
    %s492 = sld [smem:[#allocation2 + $0x1]]
    %v493 = vsub.f32 %v80, %v489
    %v494 = vsub.f32 %v81, %v489
    %v495 = vsub.f32 %v82, %v489
    %v496 = vsub.f32 %v83, %v489
    %v497 = vsub.f32 %v84, %v489
    %v498 = vsub.f32 %v85, %v489
    %v499 = vsub.f32 %v86, %v489
    %v500 = vsub.f32 %v87, %v489
    %v501 = vsub.f32 %v88, %v489
    %v502 = vsub.f32 %v89, %v489
    %v503 = vsub.f32 %v90, %v489
    %v504 = vsub.f32 %v91, %v489
    %v505 = vsub.f32 %v92, %v489
    %v506 = vsub.f32 %v93, %v489
    %v507 = vsub.f32 %v94, %v489
    %v508 = vsub.f32 %v95, %v489
    %v509 = vsub.f32 %v96, %v489
    %v510 = vsub.f32 %v97, %v489
    %v511 = vsub.f32 %v98, %v489
    %v512 = vsub.f32 %v99, %v489
    %v513 = vsub.f32 %v100, %v489
    %v514 = vsub.f32 %v101, %v489
    %v515 = vsub.f32 %v102, %v489
    %v516 = vsub.f32 %v103, %v489
    %v517 = vsub.f32 %v104, %v489
    %v518 = vsub.f32 %v105, %v489
    %v519 = vsub.f32 %v106, %v489
    %v520 = vsub.f32 %v107, %v489
    %v521 = vsub.f32 %v108, %v489
    %v522 = vsub.f32 %v109, %v489
    %v523 = vsub.f32 %v110, %v489
    %v524 = vsub.f32 %v111, %v489
    %v525 = vsub.f32 %v112, %v490
    %v526 = vsub.f32 %v113, %v490
    %v527 = vsub.f32 %v114, %v490
    %v528 = vsub.f32 %v115, %v490
    %v529 = vsub.f32 %v116, %v490
    %v530 = vsub.f32 %v117, %v490
    %v531 = vsub.f32 %v118, %v490
    %v532 = vsub.f32 %v119, %v490
    %v533 = vsub.f32 %v120, %v490
    %v534 = vsub.f32 %v121, %v490
    %v535 = vsub.f32 %v122, %v490
    %v536 = vsub.f32 %v123, %v490
    %v537 = vsub.f32 %v124, %v490
    %v538 = vsub.f32 %v125, %v490
    %v539 = vsub.f32 %v126, %v490
    %v540 = vsub.f32 %v127, %v490
    %v541 = vsub.f32 %v128, %v490
    %v542 = vsub.f32 %v129, %v490
    %v543 = vsub.f32 %v130, %v490
    %v544 = vsub.f32 %v131, %v490
    %v545 = vsub.f32 %v132, %v490
    %v546 = vsub.f32 %v133, %v490
    %v547 = vsub.f32 %v134, %v490
    %v548 = vsub.f32 %v135, %v490
    %v549 = vsub.f32 %v136, %v490
    %v550 = vsub.f32 %v137, %v490
    %v551 = vsub.f32 %v138, %v490
    %v552 = vsub.f32 %v139, %v490
    %v553 = vsub.f32 %v140, %v490
    %v554 = vsub.f32 %v141, %v490
    %v555 = vsub.f32 %v142, %v490
    %v556 = vsub.f32 %v143, %v490
    %v557 = vstv %s492
    %v558 = vmul.f32 %v493, %v557
    %v559 = vmul.f32 %v494, %v557
    %v560 = vmul.f32 %v495, %v557
    %v561 = vmul.f32 %v496, %v557
    %v562 = vmul.f32 %v497, %v557
    %v563 = vmul.f32 %v498, %v557
    %v564 = vmul.f32 %v499, %v557
    %v565 = vmul.f32 %v500, %v557
    %v566 = vmul.f32 %v501, %v557
    %v567 = vmul.f32 %v502, %v557
    %v568 = vmul.f32 %v503, %v557
    %v569 = vmul.f32 %v504, %v557
    %v570 = vmul.f32 %v505, %v557
    %v571 = vmul.f32 %v506, %v557
    %v572 = vmul.f32 %v507, %v557
    %v573 = vmul.f32 %v508, %v557
    %v574 = vmul.f32 %v509, %v557
    %v575 = vmul.f32 %v510, %v557
    %v576 = vmul.f32 %v511, %v557
    %v577 = vmul.f32 %v512, %v557
    %v578 = vmul.f32 %v513, %v557
    %v579 = vmul.f32 %v514, %v557
    %v580 = vmul.f32 %v515, %v557
    %v581 = vmul.f32 %v516, %v557
    %v582 = vmul.f32 %v517, %v557
    %v583 = vmul.f32 %v518, %v557
    %v584 = vmul.f32 %v519, %v557
    %v585 = vmul.f32 %v520, %v557
    %v586 = vmul.f32 %v521, %v557
    %v587 = vmul.f32 %v522, %v557
    %v588 = vmul.f32 %v523, %v557
    %v589 = vmul.f32 %v524, %v557
    %v590 = vmul.f32 %v525, %v557
    %v591 = vmul.f32 %v526, %v557
    %v592 = vmul.f32 %v527, %v557
    %v593 = vmul.f32 %v528, %v557
    %v594 = vmul.f32 %v529, %v557
    %v595 = vmul.f32 %v530, %v557
    %v596 = vmul.f32 %v531, %v557
    %v597 = vmul.f32 %v532, %v557
    %v598 = vmul.f32 %v533, %v557
    %v599 = vmul.f32 %v534, %v557
    %v600 = vmul.f32 %v535, %v557
    %v601 = vmul.f32 %v536, %v557
    %v602 = vmul.f32 %v537, %v557
    %v603 = vmul.f32 %v538, %v557
    %v604 = vmul.f32 %v539, %v557
    %v605 = vmul.f32 %v540, %v557
    %v606 = vmul.f32 %v541, %v557
    %v607 = vmul.f32 %v542, %v557
    %v608 = vmul.f32 %v543, %v557
    %v609 = vmul.f32 %v544, %v557
    %v610 = vmul.f32 %v545, %v557
    %v611 = vmul.f32 %v546, %v557
    %v612 = vmul.f32 %v547, %v557
    %v613 = vmul.f32 %v548, %v557
    %v614 = vmul.f32 %v549, %v557
    %v615 = vmul.f32 %v550, %v557
    %v616 = vmul.f32 %v551, %v557
    %v617 = vmul.f32 %v552, %v557
    %v618 = vmul.f32 %v553, %v557
    %v619 = vmul.f32 %v554, %v557
    %v620 = vmul.f32 %v555, %v557
    %v621 = vmul.f32 %v556, %v557
    %v622 = vstv %s491
    %v623 = vmul.f32 %v489, %v622
    %v624 = vmul.f32 %v490, %v622
    %v625 = vadd.f32 %v558, %v623
    %v626 = vadd.f32 %v559, %v623
    %v627 = vadd.f32 %v560, %v623
    %v628 = vadd.f32 %v561, %v623
    %v629 = vadd.f32 %v562, %v623
    %v630 = vadd.f32 %v563, %v623
    %v631 = vadd.f32 %v564, %v623
    %v632 = vadd.f32 %v565, %v623
    %v633 = vadd.f32 %v566, %v623
    %v634 = vadd.f32 %v567, %v623
    %v635 = vadd.f32 %v568, %v623
    %v636 = vadd.f32 %v569, %v623
    %v637 = vadd.f32 %v570, %v623
    %v638 = vadd.f32 %v571, %v623
    %v639 = vadd.f32 %v572, %v623
    %v640 = vadd.f32 %v573, %v623
    %v641 = vadd.f32 %v574, %v623
    %v642 = vadd.f32 %v575, %v623
    %v643 = vadd.f32 %v576, %v623
    %v644 = vadd.f32 %v577, %v623
    %v645 = vadd.f32 %v578, %v623
    %v646 = vadd.f32 %v579, %v623
    %v647 = vadd.f32 %v580, %v623
    %v648 = vadd.f32 %v581, %v623
    %v649 = vadd.f32 %v582, %v623
    %v650 = vadd.f32 %v583, %v623
    %v651 = vadd.f32 %v584, %v623
    %v652 = vadd.f32 %v585, %v623
    %v653 = vadd.f32 %v586, %v623
    %v654 = vadd.f32 %v587, %v623
    %v655 = vadd.f32 %v588, %v623
    %v656 = vadd.f32 %v589, %v623
    %v657 = vadd.f32 %v590, %v624
    %v658 = vadd.f32 %v591, %v624
    %v659 = vadd.f32 %v592, %v624
    %v660 = vadd.f32 %v593, %v624
    %v661 = vadd.f32 %v594, %v624
    %v662 = vadd.f32 %v595, %v624
    %v663 = vadd.f32 %v596, %v624
    %v664 = vadd.f32 %v597, %v624
    %v665 = vadd.f32 %v598, %v624
    %v666 = vadd.f32 %v599, %v624
    %v667 = vadd.f32 %v600, %v624
    %v668 = vadd.f32 %v601, %v624
    %v669 = vadd.f32 %v602, %v624
    %v670 = vadd.f32 %v603, %v624
    %v671 = vadd.f32 %v604, %v624
    %v672 = vadd.f32 %v605, %v624
    %v673 = vadd.f32 %v606, %v624
    %v674 = vadd.f32 %v607, %v624
    %v675 = vadd.f32 %v608, %v624
    %v676 = vadd.f32 %v609, %v624
    %v677 = vadd.f32 %v610, %v624
    %v678 = vadd.f32 %v611, %v624
    %v679 = vadd.f32 %v612, %v624
    %v680 = vadd.f32 %v613, %v624
    %v681 = vadd.f32 %v614, %v624
    %v682 = vadd.f32 %v615, %v624
    %v683 = vadd.f32 %v616, %v624
    %v684 = vadd.f32 %v617, %v624
    %v685 = vadd.f32 %v618, %v624
    %v686 = vadd.f32 %v619, %v624
    %v687 = vadd.f32 %v620, %v624
    %v688 = vadd.f32 %v621, %v624
    %v689 = vmax.f32 %v625, 0.0
    %v690 = vmax.f32 %v626, 0.0
    %v691 = vmax.f32 %v627, 0.0
    %v692 = vmax.f32 %v628, 0.0
    %v693 = vmax.f32 %v629, 0.0
    %v694 = vmax.f32 %v630, 0.0
    %v695 = vmax.f32 %v631, 0.0
    %v696 = vmax.f32 %v632, 0.0
    %v697 = vmax.f32 %v633, 0.0
    %v698 = vmax.f32 %v634, 0.0
    %v699 = vmax.f32 %v635, 0.0
    %v700 = vmax.f32 %v636, 0.0
    %v701 = vmax.f32 %v637, 0.0
    %v702 = vmax.f32 %v638, 0.0
    %v703 = vmax.f32 %v639, 0.0
    %v704 = vmax.f32 %v640, 0.0
    %v705 = vmax.f32 %v641, 0.0
    %v706 = vmax.f32 %v642, 0.0
    %v707 = vmax.f32 %v643, 0.0
    %v708 = vmax.f32 %v644, 0.0
    %v709 = vmax.f32 %v645, 0.0
    %v710 = vmax.f32 %v646, 0.0
    %v711 = vmax.f32 %v647, 0.0
    %v712 = vmax.f32 %v648, 0.0
    %v713 = vmax.f32 %v649, 0.0
    %v714 = vmax.f32 %v650, 0.0
    %v715 = vmax.f32 %v651, 0.0
    %v716 = vmax.f32 %v652, 0.0
    %v717 = vmax.f32 %v653, 0.0
    %v718 = vmax.f32 %v654, 0.0
    %v719 = vmax.f32 %v655, 0.0
    %v720 = vmax.f32 %v656, 0.0
    %v721 = vmax.f32 %v657, 0.0
    %v722 = vmax.f32 %v658, 0.0
    %v723 = vmax.f32 %v659, 0.0
    %v724 = vmax.f32 %v660, 0.0
    %v725 = vmax.f32 %v661, 0.0
    %v726 = vmax.f32 %v662, 0.0
    %v727 = vmax.f32 %v663, 0.0
    %v728 = vmax.f32 %v664, 0.0
    %v729 = vmax.f32 %v665, 0.0
    %v730 = vmax.f32 %v666, 0.0
    %v731 = vmax.f32 %v667, 0.0
    %v732 = vmax.f32 %v668, 0.0
    %v733 = vmax.f32 %v669, 0.0
    %v734 = vmax.f32 %v670, 0.0
    %v735 = vmax.f32 %v671, 0.0
    %v736 = vmax.f32 %v672, 0.0
    %v737 = vmax.f32 %v673, 0.0
    %v738 = vmax.f32 %v674, 0.0
    %v739 = vmax.f32 %v675, 0.0
    %v740 = vmax.f32 %v676, 0.0
    %v741 = vmax.f32 %v677, 0.0
    %v742 = vmax.f32 %v678, 0.0
    %v743 = vmax.f32 %v679, 0.0
    %v744 = vmax.f32 %v680, 0.0
    %v745 = vmax.f32 %v681, 0.0
    %v746 = vmax.f32 %v682, 0.0
    %v747 = vmax.f32 %v683, 0.0
    %v748 = vmax.f32 %v684, 0.0
    %v749 = vmax.f32 %v685, 0.0
    %v750 = vmax.f32 %v686, 0.0
    %v751 = vmax.f32 %v687, 0.0
    %v752 = vmax.f32 %v688, 0.0
    %v753 = vmin.f32 %v689, 1.0
    %v754 = vmin.f32 %v690, 1.0
    %v755 = vmin.f32 %v691, 1.0
    %v756 = vmin.f32 %v692, 1.0
    %v757 = vmin.f32 %v693, 1.0
    %v758 = vmin.f32 %v694, 1.0
    %v759 = vmin.f32 %v695, 1.0
    %v760 = vmin.f32 %v696, 1.0
    %v761 = vmin.f32 %v697, 1.0
    %v762 = vmin.f32 %v698, 1.0
    %v763 = vmin.f32 %v699, 1.0
    %v764 = vmin.f32 %v700, 1.0
    %v765 = vmin.f32 %v701, 1.0
    %v766 = vmin.f32 %v702, 1.0
    %v767 = vmin.f32 %v703, 1.0
    %v768 = vmin.f32 %v704, 1.0
    %v769 = vmin.f32 %v705, 1.0
    %v770 = vmin.f32 %v706, 1.0
    %v771 = vmin.f32 %v707, 1.0
    %v772 = vmin.f32 %v708, 1.0
    %v773 = vmin.f32 %v709, 1.0
    %v774 = vmin.f32 %v710, 1.0
    %v775 = vmin.f32 %v711, 1.0
    %v776 = vmin.f32 %v712, 1.0
    %v777 = vmin.f32 %v713, 1.0
    %v778 = vmin.f32 %v714, 1.0
    %v779 = vmin.f32 %v715, 1.0
    %v780 = vmin.f32 %v716, 1.0
    %v781 = vmin.f32 %v717, 1.0
    %v782 = vmin.f32 %v718, 1.0
    %v783 = vmin.f32 %v719, 1.0
    %v784 = vmin.f32 %v720, 1.0
    %v785 = vmin.f32 %v721, 1.0
    %v786 = vmin.f32 %v722, 1.0
    %v787 = vmin.f32 %v723, 1.0
    %v788 = vmin.f32 %v724, 1.0
    %v789 = vmin.f32 %v725, 1.0
    %v790 = vmin.f32 %v726, 1.0
    %v791 = vmin.f32 %v727, 1.0
    %v792 = vmin.f32 %v728, 1.0
    %v793 = vmin.f32 %v729, 1.0
    %v794 = vmin.f32 %v730, 1.0
    %v795 = vmin.f32 %v731, 1.0
    %v796 = vmin.f32 %v732, 1.0
    %v797 = vmin.f32 %v733, 1.0
    %v798 = vmin.f32 %v734, 1.0
    %v799 = vmin.f32 %v735, 1.0
    %v800 = vmin.f32 %v736, 1.0
    %v801 = vmin.f32 %v737, 1.0
    %v802 = vmin.f32 %v738, 1.0
    %v803 = vmin.f32 %v739, 1.0
    %v804 = vmin.f32 %v740, 1.0
    %v805 = vmin.f32 %v741, 1.0
    %v806 = vmin.f32 %v742, 1.0
    %v807 = vmin.f32 %v743, 1.0
    %v808 = vmin.f32 %v744, 1.0
    %v809 = vmin.f32 %v745, 1.0
    %v810 = vmin.f32 %v746, 1.0
    %v811 = vmin.f32 %v747, 1.0
    %v812 = vmin.f32 %v748, 1.0
    %v813 = vmin.f32 %v749, 1.0
    %v814 = vmin.f32 %v750, 1.0
    %v815 = vmin.f32 %v751, 1.0
    %v816 = vmin.f32 %v752, 1.0
    %s817 = sld [smem:[#allocation2 + $0x80]]
    %s818 = sld [smem:[#allocation2 + $0x81]]
    %v819 = vstv %s818
    %v820 = vmul.f32 %v493, %v819
    %v821 = vmul.f32 %v494, %v819
    %v822 = vmul.f32 %v495, %v819
    %v823 = vmul.f32 %v496, %v819
    %v824 = vmul.f32 %v497, %v819
    %v825 = vmul.f32 %v498, %v819
    %v826 = vmul.f32 %v499, %v819
    %v827 = vmul.f32 %v500, %v819
    %v828 = vmul.f32 %v501, %v819
    %v829 = vmul.f32 %v502, %v819
    %v830 = vmul.f32 %v503, %v819
    %v831 = vmul.f32 %v504, %v819
    %v832 = vmul.f32 %v505, %v819
    %v833 = vmul.f32 %v506, %v819
    %v834 = vmul.f32 %v507, %v819
    %v835 = vmul.f32 %v508, %v819
    %v836 = vmul.f32 %v509, %v819
    %v837 = vmul.f32 %v510, %v819
    %v838 = vmul.f32 %v511, %v819
    %v839 = vmul.f32 %v512, %v819
    %v840 = vmul.f32 %v513, %v819
    %v841 = vmul.f32 %v514, %v819
    %v842 = vmul.f32 %v515, %v819
    %v843 = vmul.f32 %v516, %v819
    %v844 = vmul.f32 %v517, %v819
    %v845 = vmul.f32 %v518, %v819
    %v846 = vmul.f32 %v519, %v819
    %v847 = vmul.f32 %v520, %v819
    %v848 = vmul.f32 %v521, %v819
    %v849 = vmul.f32 %v522, %v819
    %v850 = vmul.f32 %v523, %v819
    %v851 = vmul.f32 %v524, %v819
    %v852 = vmul.f32 %v525, %v819
    %v853 = vmul.f32 %v526, %v819
    %v854 = vmul.f32 %v527, %v819
    %v855 = vmul.f32 %v528, %v819
    %v856 = vmul.f32 %v529, %v819
    %v857 = vmul.f32 %v530, %v819
    %v858 = vmul.f32 %v531, %v819
    %v859 = vmul.f32 %v532, %v819
    %v860 = vmul.f32 %v533, %v819
    %v861 = vmul.f32 %v534, %v819
    %v862 = vmul.f32 %v535, %v819
    %v863 = vmul.f32 %v536, %v819
    %v864 = vmul.f32 %v537, %v819
    %v865 = vmul.f32 %v538, %v819
    %v866 = vmul.f32 %v539, %v819
    %v867 = vmul.f32 %v540, %v819
    %v868 = vmul.f32 %v541, %v819
    %v869 = vmul.f32 %v542, %v819
    %v870 = vmul.f32 %v543, %v819
    %v871 = vmul.f32 %v544, %v819
    %v872 = vmul.f32 %v545, %v819
    %v873 = vmul.f32 %v546, %v819
    %v874 = vmul.f32 %v547, %v819
    %v875 = vmul.f32 %v548, %v819
    %v876 = vmul.f32 %v549, %v819
    %v877 = vmul.f32 %v550, %v819
    %v878 = vmul.f32 %v551, %v819
    %v879 = vmul.f32 %v552, %v819
    %v880 = vmul.f32 %v553, %v819
    %v881 = vmul.f32 %v554, %v819
    %v882 = vmul.f32 %v555, %v819
    %v883 = vmul.f32 %v556, %v819
    %v884 = vstv %s817
    %v885 = vmul.f32 %v489, %v884
    %v886 = vmul.f32 %v490, %v884
    %v887 = vadd.f32 %v820, %v885
    %v888 = vadd.f32 %v821, %v885
    %v889 = vadd.f32 %v822, %v885
    %v890 = vadd.f32 %v823, %v885
    %v891 = vadd.f32 %v824, %v885
    %v892 = vadd.f32 %v825, %v885
    %v893 = vadd.f32 %v826, %v885
    %v894 = vadd.f32 %v827, %v885
    %v895 = vadd.f32 %v828, %v885
    %v896 = vadd.f32 %v829, %v885
    %v897 = vadd.f32 %v830, %v885
    %v898 = vadd.f32 %v831, %v885
    %v899 = vadd.f32 %v832, %v885
    %v900 = vadd.f32 %v833, %v885
    %v901 = vadd.f32 %v834, %v885
    %v902 = vadd.f32 %v835, %v885
    %v903 = vadd.f32 %v836, %v885
    %v904 = vadd.f32 %v837, %v885
    %v905 = vadd.f32 %v838, %v885
    %v906 = vadd.f32 %v839, %v885
    %v907 = vadd.f32 %v840, %v885
    %v908 = vadd.f32 %v841, %v885
    %v909 = vadd.f32 %v842, %v885
    %v910 = vadd.f32 %v843, %v885
    %v911 = vadd.f32 %v844, %v885
    %v912 = vadd.f32 %v845, %v885
    %v913 = vadd.f32 %v846, %v885
    %v914 = vadd.f32 %v847, %v885
    %v915 = vadd.f32 %v848, %v885
    %v916 = vadd.f32 %v849, %v885
    %v917 = vadd.f32 %v850, %v885
    %v918 = vadd.f32 %v851, %v885
    %v919 = vadd.f32 %v852, %v886
    %v920 = vadd.f32 %v853, %v886
    %v921 = vadd.f32 %v854, %v886
    %v922 = vadd.f32 %v855, %v886
    %v923 = vadd.f32 %v856, %v886
    %v924 = vadd.f32 %v857, %v886
    %v925 = vadd.f32 %v858, %v886
    %v926 = vadd.f32 %v859, %v886
    %v927 = vadd.f32 %v860, %v886
    %v928 = vadd.f32 %v861, %v886
    %v929 = vadd.f32 %v862, %v886
    %v930 = vadd.f32 %v863, %v886
    %v931 = vadd.f32 %v864, %v886
    %v932 = vadd.f32 %v865, %v886
    %v933 = vadd.f32 %v866, %v886
    %v934 = vadd.f32 %v867, %v886
    %v935 = vadd.f32 %v868, %v886
    %v936 = vadd.f32 %v869, %v886
    %v937 = vadd.f32 %v870, %v886
    %v938 = vadd.f32 %v871, %v886
    %v939 = vadd.f32 %v872, %v886
    %v940 = vadd.f32 %v873, %v886
    %v941 = vadd.f32 %v874, %v886
    %v942 = vadd.f32 %v875, %v886
    %v943 = vadd.f32 %v876, %v886
    %v944 = vadd.f32 %v877, %v886
    %v945 = vadd.f32 %v878, %v886
    %v946 = vadd.f32 %v879, %v886
    %v947 = vadd.f32 %v880, %v886
    %v948 = vadd.f32 %v881, %v886
    %v949 = vadd.f32 %v882, %v886
    %v950 = vadd.f32 %v883, %v886
    %v951 = vmax.f32 %v887, 0.0
    %v952 = vmax.f32 %v888, 0.0
    %v953 = vmax.f32 %v889, 0.0
    %v954 = vmax.f32 %v890, 0.0
    %v955 = vmax.f32 %v891, 0.0
    %v956 = vmax.f32 %v892, 0.0
    %v957 = vmax.f32 %v893, 0.0
    %v958 = vmax.f32 %v894, 0.0
    %v959 = vmax.f32 %v895, 0.0
    %v960 = vmax.f32 %v896, 0.0
    %v961 = vmax.f32 %v897, 0.0
    %v962 = vmax.f32 %v898, 0.0
    %v963 = vmax.f32 %v899, 0.0
    %v964 = vmax.f32 %v900, 0.0
    %v965 = vmax.f32 %v901, 0.0
    %v966 = vmax.f32 %v902, 0.0
    %v967 = vmax.f32 %v903, 0.0
    %v968 = vmax.f32 %v904, 0.0
    %v969 = vmax.f32 %v905, 0.0
    %v970 = vmax.f32 %v906, 0.0
    %v971 = vmax.f32 %v907, 0.0
    %v972 = vmax.f32 %v908, 0.0
    %v973 = vmax.f32 %v909, 0.0
    %v974 = vmax.f32 %v910, 0.0
    %v975 = vmax.f32 %v911, 0.0
    %v976 = vmax.f32 %v912, 0.0
    %v977 = vmax.f32 %v913, 0.0
    %v978 = vmax.f32 %v914, 0.0
    %v979 = vmax.f32 %v915, 0.0
    %v980 = vmax.f32 %v916, 0.0
    %v981 = vmax.f32 %v917, 0.0
    %v982 = vmax.f32 %v918, 0.0
    %v983 = vmax.f32 %v919, 0.0
    %v984 = vmax.f32 %v920, 0.0
    %v985 = vmax.f32 %v921, 0.0
    %v986 = vmax.f32 %v922, 0.0
    %v987 = vmax.f32 %v923, 0.0
    %v988 = vmax.f32 %v924, 0.0
    %v989 = vmax.f32 %v925, 0.0
    %v990 = vmax.f32 %v926, 0.0
    %v991 = vmax.f32 %v927, 0.0
    %v992 = vmax.f32 %v928, 0.0
    %v993 = vmax.f32 %v929, 0.0
    %v994 = vmax.f32 %v930, 0.0
    %v995 = vmax.f32 %v931, 0.0
    %v996 = vmax.f32 %v932, 0.0
    %v997 = vmax.f32 %v933, 0.0
    %v998 = vmax.f32 %v934, 0.0
    %v999 = vmax.f32 %v935, 0.0
    %v1000 = vmax.f32 %v936, 0.0
    %v1001 = vmax.f32 %v937, 0.0
    %v1002 = vmax.f32 %v938, 0.0
    %v1003 = vmax.f32 %v939, 0.0
    %v1004 = vmax.f32 %v940, 0.0
    %v1005 = vmax.f32 %v941, 0.0
    %v1006 = vmax.f32 %v942, 0.0
    %v1007 = vmax.f32 %v943, 0.0
    %v1008 = vmax.f32 %v944, 0.0
    %v1009 = vmax.f32 %v945, 0.0
    %v1010 = vmax.f32 %v946, 0.0
    %v1011 = vmax.f32 %v947, 0.0
    %v1012 = vmax.f32 %v948, 0.0
    %v1013 = vmax.f32 %v949, 0.0
    %v1014 = vmax.f32 %v950, 0.0
    %v1015 = vmin.f32 %v951, 1.0
    %v1016 = vmin.f32 %v952, 1.0
    %v1017 = vmin.f32 %v953, 1.0
    %v1018 = vmin.f32 %v954, 1.0
    %v1019 = vmin.f32 %v955, 1.0
    %v1020 = vmin.f32 %v956, 1.0
    %v1021 = vmin.f32 %v957, 1.0
    %v1022 = vmin.f32 %v958, 1.0
    %v1023 = vmin.f32 %v959, 1.0
    %v1024 = vmin.f32 %v960, 1.0
    %v1025 = vmin.f32 %v961, 1.0
    %v1026 = vmin.f32 %v962, 1.0
    %v1027 = vmin.f32 %v963, 1.0
    %v1028 = vmin.f32 %v964, 1.0
    %v1029 = vmin.f32 %v965, 1.0
    %v1030 = vmin.f32 %v966, 1.0
    %v1031 = vmin.f32 %v967, 1.0
    %v1032 = vmin.f32 %v968, 1.0
    %v1033 = vmin.f32 %v969, 1.0
    %v1034 = vmin.f32 %v970, 1.0
    %v1035 = vmin.f32 %v971, 1.0
    %v1036 = vmin.f32 %v972, 1.0
    %v1037 = vmin.f32 %v973, 1.0
    %v1038 = vmin.f32 %v974, 1.0
    %v1039 = vmin.f32 %v975, 1.0
    %v1040 = vmin.f32 %v976, 1.0
    %v1041 = vmin.f32 %v977, 1.0
    %v1042 = vmin.f32 %v978, 1.0
    %v1043 = vmin.f32 %v979, 1.0
    %v1044 = vmin.f32 %v980, 1.0
    %v1045 = vmin.f32 %v981, 1.0
    %v1046 = vmin.f32 %v982, 1.0
    %v1047 = vmin.f32 %v983, 1.0
    %v1048 = vmin.f32 %v984, 1.0
    %v1049 = vmin.f32 %v985, 1.0
    %v1050 = vmin.f32 %v986, 1.0
    %v1051 = vmin.f32 %v987, 1.0
    %v1052 = vmin.f32 %v988, 1.0
    %v1053 = vmin.f32 %v989, 1.0
    %v1054 = vmin.f32 %v990, 1.0
    %v1055 = vmin.f32 %v991, 1.0
    %v1056 = vmin.f32 %v992, 1.0
    %v1057 = vmin.f32 %v993, 1.0
    %v1058 = vmin.f32 %v994, 1.0
    %v1059 = vmin.f32 %v995, 1.0
    %v1060 = vmin.f32 %v996, 1.0
    %v1061 = vmin.f32 %v997, 1.0
    %v1062 = vmin.f32 %v998, 1.0
    %v1063 = vmin.f32 %v999, 1.0
    %v1064 = vmin.f32 %v1000, 1.0
    %v1065 = vmin.f32 %v1001, 1.0
    %v1066 = vmin.f32 %v1002, 1.0
    %v1067 = vmin.f32 %v1003, 1.0
    %v1068 = vmin.f32 %v1004, 1.0
    %v1069 = vmin.f32 %v1005, 1.0
    %v1070 = vmin.f32 %v1006, 1.0
    %v1071 = vmin.f32 %v1007, 1.0
    %v1072 = vmin.f32 %v1008, 1.0
    %v1073 = vmin.f32 %v1009, 1.0
    %v1074 = vmin.f32 %v1010, 1.0
    %v1075 = vmin.f32 %v1011, 1.0
    %v1076 = vmin.f32 %v1012, 1.0
    %v1077 = vmin.f32 %v1013, 1.0
    %v1078 = vmin.f32 %v1014, 1.0
    %v1079 = vld [vmem:[%s2] sm:$0xff]
    %1081 = vst [vmem:[#allocation1] ss:$2 sm:$0xff] %v1079
    %v1082 = vld.sshfl [vmem:[#allocation1] sm:$0xff pattern:$0x75316420]
    %v1083 = vld.sshfl [vmem:[#allocation1 + $0x8] sm:$0xff pattern:$0x75316420]
    %v1085 = vsel %vm144, %v753, 0
    %v1088 = vsel %vm144, %v754, 0
    %v1091 = vsel %vm144, %v755, 0
    %v1094 = vsel %vm144, %v756, 0
    %v1097 = vsel %vm144, %v757, 0
    %v1100 = vsel %vm144, %v758, 0
    %v1103 = vsel %vm144, %v759, 0
    %v1106 = vsel %vm144, %v760, 0
    %v1109 = vsel %vm144, %v761, 0
    %v1112 = vsel %vm144, %v762, 0
    %v1115 = vsel %vm144, %v763, 0
    %v1118 = vsel %vm144, %v764, 0
    %v1121 = vsel %vm144, %v765, 0
    %v1124 = vsel %vm144, %v766, 0
    %v1127 = vsel %vm144, %v767, 0
    %v1130 = vsel %vm144, %v768, 0
    %v1133 = vsel %vm144, %v769, 0
    %v1136 = vsel %vm144, %v770, 0
    %v1139 = vsel %vm144, %v771, 0
    %v1142 = vsel %vm144, %v772, 0
    %v1145 = vsel %vm144, %v773, 0
    %v1148 = vsel %vm144, %v774, 0
    %v1151 = vsel %vm144, %v775, 0
    %v1154 = vsel %vm144, %v776, 0
    %v1157 = vsel %vm144, %v777, 0
    %v1160 = vsel %vm144, %v778, 0
    %v1163 = vsel %vm144, %v779, 0
    %v1166 = vsel %vm144, %v780, 0
    %v1169 = vsel %vm144, %v781, 0
    %v1172 = vsel %vm144, %v782, 0
    %v1175 = vsel %vm144, %v783, 0
    %v1178 = vsel %vm144, %v784, 0
    %v1181 = vsel %vm144, %v785, 0
    %v1184 = vsel %vm144, %v786, 0
    %v1187 = vsel %vm144, %v787, 0
    %v1190 = vsel %vm144, %v788, 0
    %v1193 = vsel %vm144, %v789, 0
    %v1196 = vsel %vm144, %v790, 0
    %v1199 = vsel %vm144, %v791, 0
    %v1202 = vsel %vm144, %v792, 0
    %v1205 = vsel %vm144, %v793, 0
    %v1208 = vsel %vm144, %v794, 0
    %v1211 = vsel %vm144, %v795, 0
    %v1214 = vsel %vm144, %v796, 0
    %v1217 = vsel %vm144, %v797, 0
    %v1220 = vsel %vm144, %v798, 0
    %v1223 = vsel %vm144, %v799, 0
    %v1226 = vsel %vm144, %v800, 0
    %v1229 = vsel %vm144, %v801, 0
    %v1232 = vsel %vm144, %v802, 0
    %v1235 = vsel %vm144, %v803, 0
    %v1238 = vsel %vm144, %v804, 0
    %v1241 = vsel %vm144, %v805, 0
    %v1244 = vsel %vm144, %v806, 0
    %v1247 = vsel %vm144, %v807, 0
    %v1250 = vsel %vm144, %v808, 0
    %v1253 = vsel %vm144, %v809, 0
    %v1256 = vsel %vm144, %v810, 0
    %v1259 = vsel %vm144, %v811, 0
    %v1262 = vsel %vm144, %v812, 0
    %v1265 = vsel %vm144, %v813, 0
    %v1268 = vsel %vm144, %v814, 0
    %v1271 = vsel %vm144, %v815, 0
    %v1274 = vsel %vm144, %v816, 0
    %v1277 = vsel %vm144, %v1015, 0
    %v1280 = vsel %vm144, %v1016, 0
    %v1283 = vsel %vm144, %v1017, 0
    %v1286 = vsel %vm144, %v1018, 0
    %v1289 = vsel %vm144, %v1019, 0
    %v1292 = vsel %vm144, %v1020, 0
    %v1295 = vsel %vm144, %v1021, 0
    %v1298 = vsel %vm144, %v1022, 0
    %v1301 = vsel %vm144, %v1023, 0
    %v1304 = vsel %vm144, %v1024, 0
    %v1307 = vsel %vm144, %v1025, 0
    %v1310 = vsel %vm144, %v1026, 0
    %v1313 = vsel %vm144, %v1027, 0
    %v1316 = vsel %vm144, %v1028, 0
    %v1319 = vsel %vm144, %v1029, 0
    %v1322 = vsel %vm144, %v1030, 0
    %v1325 = vsel %vm144, %v1031, 0
    %v1328 = vsel %vm144, %v1032, 0
    %v1331 = vsel %vm144, %v1033, 0
    %v1334 = vsel %vm144, %v1034, 0
    %v1337 = vsel %vm144, %v1035, 0
    %v1340 = vsel %vm144, %v1036, 0
    %v1343 = vsel %vm144, %v1037, 0
    %v1346 = vsel %vm144, %v1038, 0
    %v1349 = vsel %vm144, %v1039, 0
    %v1352 = vsel %vm144, %v1040, 0
    %v1355 = vsel %vm144, %v1041, 0
    %v1358 = vsel %vm144, %v1042, 0
    %v1361 = vsel %vm144, %v1043, 0
    %v1364 = vsel %vm144, %v1044, 0
    %v1367 = vsel %vm144, %v1045, 0
    %v1370 = vsel %vm144, %v1046, 0
    %v1373 = vsel %vm144, %v1047, 0
    %v1376 = vsel %vm144, %v1048, 0
    %v1379 = vsel %vm144, %v1049, 0
    %v1382 = vsel %vm144, %v1050, 0
    %v1385 = vsel %vm144, %v1051, 0
    %v1388 = vsel %vm144, %v1052, 0
    %v1391 = vsel %vm144, %v1053, 0
    %v1394 = vsel %vm144, %v1054, 0
    %v1397 = vsel %vm144, %v1055, 0
    %v1400 = vsel %vm144, %v1056, 0
    %v1403 = vsel %vm144, %v1057, 0
    %v1406 = vsel %vm144, %v1058, 0
    %v1409 = vsel %vm144, %v1059, 0
    %v1412 = vsel %vm144, %v1060, 0
    %v1415 = vsel %vm144, %v1061, 0
    %v1418 = vsel %vm144, %v1062, 0
    %v1421 = vsel %vm144, %v1063, 0
    %v1424 = vsel %vm144, %v1064, 0
    %v1427 = vsel %vm144, %v1065, 0
    %v1430 = vsel %vm144, %v1066, 0
    %v1433 = vsel %vm144, %v1067, 0
    %v1436 = vsel %vm144, %v1068, 0
    %v1439 = vsel %vm144, %v1069, 0
    %v1442 = vsel %vm144, %v1070, 0
    %v1445 = vsel %vm144, %v1071, 0
    %v1448 = vsel %vm144, %v1072, 0
    %v1451 = vsel %vm144, %v1073, 0
    %v1454 = vsel %vm144, %v1074, 0
    %v1457 = vsel %vm144, %v1075, 0
    %v1460 = vsel %vm144, %v1076, 0
    %v1463 = vsel %vm144, %v1077, 0
    %v1466 = vsel %vm144, %v1078, 0
    %vm1468 = vcmask 1043456
    %v1469 = vsel %vm1468, %v1082, 0
    %v1471 = vsel %vm1468, %v1083, 0
    %1473 = vmatpush.msra.mxu0 0.0
    %1474 = vmatpush.msra.mxu0 0.0
    %1475 = vmatpush.msra.mxu0 0.0
    %1476 = vmatpush.msra.mxu0 0.0
    %1477 = vmatpush.msra.mxu0 0.0
    %1478 = vmatpush.msra.mxu0 0.0
    %1479 = vmatpush.msra.mxu0 0.0
    %1480 = vmatpush.msra.mxu0 0.0
    %1481 = vmatpush.msra.mxu0 0.0
    %1482 = vmatpush.msra.mxu0 0.0
    %1483 = vmatpush.msra.mxu0 0.0
    %1484 = vmatpush.msra.mxu0 0.0
    %1485 = vmatpush.msra.mxu0 0.0
    %1486 = vmatpush.msra.mxu0 0.0
    %1487 = vmatpush.msra.mxu0 0.0
    %1488 = vmatpush.msra.mxu0 %v1469
    %1489 = vmatmul.f32.gmra.mxu0 %v1085
    %v1490 = vpop.f32.mrf.mxu0
    %v1491 = vadd.f32 0.0, %v1490
    %1492 = vmatmul.f32.gmra.mxu0 %v1088
    %v1493 = vpop.f32.mrf.mxu0
    %v1494 = vadd.f32 0.0, %v1493
    %1495 = vmatmul.f32.gmra.mxu0 %v1091
    %v1496 = vpop.f32.mrf.mxu0
    %v1497 = vadd.f32 0.0, %v1496
    %1498 = vmatmul.f32.gmra.mxu0 %v1094
    %v1499 = vpop.f32.mrf.mxu0
    %v1500 = vadd.f32 0.0, %v1499
    %1501 = vmatmul.f32.gmra.mxu0 %v1097
    %v1502 = vpop.f32.mrf.mxu0
    %v1503 = vadd.f32 0.0, %v1502
    %1504 = vmatmul.f32.gmra.mxu0 %v1100
    %v1505 = vpop.f32.mrf.mxu0
    %v1506 = vadd.f32 0.0, %v1505
    %1507 = vmatmul.f32.gmra.mxu0 %v1103
    %v1508 = vpop.f32.mrf.mxu0
    %v1509 = vadd.f32 0.0, %v1508
    %1510 = vmatmul.f32.gmra.mxu0 %v1106
    %v1511 = vpop.f32.mrf.mxu0
    %v1512 = vadd.f32 0.0, %v1511
    %1513 = vmatmul.f32.gmra.mxu0 %v1109
    %v1514 = vpop.f32.mrf.mxu0
    %v1515 = vadd.f32 0.0, %v1514
    %1516 = vmatmul.f32.gmra.mxu0 %v1112
    %v1517 = vpop.f32.mrf.mxu0
    %v1518 = vadd.f32 0.0, %v1517
    %1519 = vmatmul.f32.gmra.mxu0 %v1115
    %v1520 = vpop.f32.mrf.mxu0
    %v1521 = vadd.f32 0.0, %v1520
    %1522 = vmatmul.f32.gmra.mxu0 %v1118
    %v1523 = vpop.f32.mrf.mxu0
    %v1524 = vadd.f32 0.0, %v1523
    %1525 = vmatmul.f32.gmra.mxu0 %v1121
    %v1526 = vpop.f32.mrf.mxu0
    %v1527 = vadd.f32 0.0, %v1526
    %1528 = vmatmul.f32.gmra.mxu0 %v1124
    %v1529 = vpop.f32.mrf.mxu0
    %v1530 = vadd.f32 0.0, %v1529
    %1531 = vmatmul.f32.gmra.mxu0 %v1127
    %v1532 = vpop.f32.mrf.mxu0
    %v1533 = vadd.f32 0.0, %v1532
    %1534 = vmatmul.f32.gmra.mxu0 %v1130
    %v1535 = vpop.f32.mrf.mxu0
    %v1536 = vadd.f32 0.0, %v1535
    %1537 = vmatmul.f32.gmra.mxu0 %v1133
    %v1538 = vpop.f32.mrf.mxu0
    %v1539 = vadd.f32 0.0, %v1538
    %1540 = vmatmul.f32.gmra.mxu0 %v1136
    %v1541 = vpop.f32.mrf.mxu0
    %v1542 = vadd.f32 0.0, %v1541
    %1543 = vmatmul.f32.gmra.mxu0 %v1139
    %v1544 = vpop.f32.mrf.mxu0
    %v1545 = vadd.f32 0.0, %v1544
    %1546 = vmatmul.f32.gmra.mxu0 %v1142
    %v1547 = vpop.f32.mrf.mxu0
    %v1548 = vadd.f32 0.0, %v1547
    %1549 = vmatmul.f32.gmra.mxu0 %v1145
    %v1550 = vpop.f32.mrf.mxu0
    %v1551 = vadd.f32 0.0, %v1550
    %1552 = vmatmul.f32.gmra.mxu0 %v1148
    %v1553 = vpop.f32.mrf.mxu0
    %v1554 = vadd.f32 0.0, %v1553
    %1555 = vmatmul.f32.gmra.mxu0 %v1151
    %v1556 = vpop.f32.mrf.mxu0
    %v1557 = vadd.f32 0.0, %v1556
    %1558 = vmatmul.f32.gmra.mxu0 %v1154
    %v1559 = vpop.f32.mrf.mxu0
    %v1560 = vadd.f32 0.0, %v1559
    %1561 = vmatmul.f32.gmra.mxu0 %v1157
    %v1562 = vpop.f32.mrf.mxu0
    %v1563 = vadd.f32 0.0, %v1562
    %1564 = vmatmul.f32.gmra.mxu0 %v1160
    %v1565 = vpop.f32.mrf.mxu0
    %v1566 = vadd.f32 0.0, %v1565
    %1567 = vmatmul.f32.gmra.mxu0 %v1163
    %v1568 = vpop.f32.mrf.mxu0
    %v1569 = vadd.f32 0.0, %v1568
    %1570 = vmatmul.f32.gmra.mxu0 %v1166
    %v1571 = vpop.f32.mrf.mxu0
    %v1572 = vadd.f32 0.0, %v1571
    %1573 = vmatmul.f32.gmra.mxu0 %v1169
    %v1574 = vpop.f32.mrf.mxu0
    %v1575 = vadd.f32 0.0, %v1574
    %1576 = vmatmul.f32.gmra.mxu0 %v1172
    %v1577 = vpop.f32.mrf.mxu0
    %v1578 = vadd.f32 0.0, %v1577
    %1579 = vmatmul.f32.gmra.mxu0 %v1175
    %v1580 = vpop.f32.mrf.mxu0
    %v1581 = vadd.f32 0.0, %v1580
    %1582 = vmatmul.f32.gmra.mxu0 %v1178
    %v1583 = vpop.f32.mrf.mxu0
    %v1584 = vadd.f32 0.0, %v1583
    %1585 = vmatmul.f32.gmra.mxu0 %v1181
    %v1586 = vpop.f32.mrf.mxu0
    %v1587 = vadd.f32 0.0, %v1586
    %1588 = vmatmul.f32.gmra.mxu0 %v1184
    %v1589 = vpop.f32.mrf.mxu0
    %v1590 = vadd.f32 0.0, %v1589
    %1591 = vmatmul.f32.gmra.mxu0 %v1187
    %v1592 = vpop.f32.mrf.mxu0
    %v1593 = vadd.f32 0.0, %v1592
    %1594 = vmatmul.f32.gmra.mxu0 %v1190
    %v1595 = vpop.f32.mrf.mxu0
    %v1596 = vadd.f32 0.0, %v1595
    %1597 = vmatmul.f32.gmra.mxu0 %v1193
    %v1598 = vpop.f32.mrf.mxu0
    %v1599 = vadd.f32 0.0, %v1598
    %1600 = vmatmul.f32.gmra.mxu0 %v1196
    %v1601 = vpop.f32.mrf.mxu0
    %v1602 = vadd.f32 0.0, %v1601
    %1603 = vmatmul.f32.gmra.mxu0 %v1199
    %v1604 = vpop.f32.mrf.mxu0
    %v1605 = vadd.f32 0.0, %v1604
    %1606 = vmatmul.f32.gmra.mxu0 %v1202
    %v1607 = vpop.f32.mrf.mxu0
    %v1608 = vadd.f32 0.0, %v1607
    %1609 = vmatmul.f32.gmra.mxu0 %v1205
    %v1610 = vpop.f32.mrf.mxu0
    %v1611 = vadd.f32 0.0, %v1610
    %1612 = vmatmul.f32.gmra.mxu0 %v1208
    %v1613 = vpop.f32.mrf.mxu0
    %v1614 = vadd.f32 0.0, %v1613
    %1615 = vmatmul.f32.gmra.mxu0 %v1211
    %v1616 = vpop.f32.mrf.mxu0
    %v1617 = vadd.f32 0.0, %v1616
    %1618 = vmatmul.f32.gmra.mxu0 %v1214
    %v1619 = vpop.f32.mrf.mxu0
    %v1620 = vadd.f32 0.0, %v1619
    %1621 = vmatmul.f32.gmra.mxu0 %v1217
    %v1622 = vpop.f32.mrf.mxu0
    %v1623 = vadd.f32 0.0, %v1622
    %1624 = vmatmul.f32.gmra.mxu0 %v1220
    %v1625 = vpop.f32.mrf.mxu0
    %v1626 = vadd.f32 0.0, %v1625
    %1627 = vmatmul.f32.gmra.mxu0 %v1223
    %v1628 = vpop.f32.mrf.mxu0
    %v1629 = vadd.f32 0.0, %v1628
    %1630 = vmatmul.f32.gmra.mxu0 %v1226
    %v1631 = vpop.f32.mrf.mxu0
    %v1632 = vadd.f32 0.0, %v1631
    %1633 = vmatmul.f32.gmra.mxu0 %v1229
    %v1634 = vpop.f32.mrf.mxu0
    %v1635 = vadd.f32 0.0, %v1634
    %1636 = vmatmul.f32.gmra.mxu0 %v1232
    %v1637 = vpop.f32.mrf.mxu0
    %v1638 = vadd.f32 0.0, %v1637
    %1639 = vmatmul.f32.gmra.mxu0 %v1235
    %v1640 = vpop.f32.mrf.mxu0
    %v1641 = vadd.f32 0.0, %v1640
    %1642 = vmatmul.f32.gmra.mxu0 %v1238
    %v1643 = vpop.f32.mrf.mxu0
    %v1644 = vadd.f32 0.0, %v1643
    %1645 = vmatmul.f32.gmra.mxu0 %v1241
    %v1646 = vpop.f32.mrf.mxu0
    %v1647 = vadd.f32 0.0, %v1646
    %1648 = vmatmul.f32.gmra.mxu0 %v1244
    %v1649 = vpop.f32.mrf.mxu0
    %v1650 = vadd.f32 0.0, %v1649
    %1651 = vmatmul.f32.gmra.mxu0 %v1247
    %v1652 = vpop.f32.mrf.mxu0
    %v1653 = vadd.f32 0.0, %v1652
    %1654 = vmatmul.f32.gmra.mxu0 %v1250
    %v1655 = vpop.f32.mrf.mxu0
    %v1656 = vadd.f32 0.0, %v1655
    %1657 = vmatmul.f32.gmra.mxu0 %v1253
    %v1658 = vpop.f32.mrf.mxu0
    %v1659 = vadd.f32 0.0, %v1658
    %1660 = vmatmul.f32.gmra.mxu0 %v1256
    %v1661 = vpop.f32.mrf.mxu0
    %v1662 = vadd.f32 0.0, %v1661
    %1663 = vmatmul.f32.gmra.mxu0 %v1259
    %v1664 = vpop.f32.mrf.mxu0
    %v1665 = vadd.f32 0.0, %v1664
    %1666 = vmatmul.f32.gmra.mxu0 %v1262
    %v1667 = vpop.f32.mrf.mxu0
    %v1668 = vadd.f32 0.0, %v1667
    %1669 = vmatmul.f32.gmra.mxu0 %v1265
    %v1670 = vpop.f32.mrf.mxu0
    %v1671 = vadd.f32 0.0, %v1670
    %1672 = vmatmul.f32.gmra.mxu0 %v1268
    %v1673 = vpop.f32.mrf.mxu0
    %v1674 = vadd.f32 0.0, %v1673
    %1675 = vmatmul.f32.gmra.mxu0 %v1271
    %v1676 = vpop.f32.mrf.mxu0
    %v1677 = vadd.f32 0.0, %v1676
    %1678 = vmatmul.f32.gmra.mxu0 %v1274
    %v1679 = vpop.f32.mrf.mxu0
    %v1680 = vadd.f32 0.0, %v1679
    %1681 = vmatmul.f32.gmra.mxu0 %v1277
    %v1682 = vpop.f32.mrf.mxu0
    %v1683 = vadd.f32 0.0, %v1682
    %1684 = vmatmul.f32.gmra.mxu0 %v1280
    %v1685 = vpop.f32.mrf.mxu0
    %v1686 = vadd.f32 0.0, %v1685
    %1687 = vmatmul.f32.gmra.mxu0 %v1283
    %v1688 = vpop.f32.mrf.mxu0
    %v1689 = vadd.f32 0.0, %v1688
    %1690 = vmatmul.f32.gmra.mxu0 %v1286
    %v1691 = vpop.f32.mrf.mxu0
    %v1692 = vadd.f32 0.0, %v1691
    %1693 = vmatmul.f32.gmra.mxu0 %v1289
    %v1694 = vpop.f32.mrf.mxu0
    %v1695 = vadd.f32 0.0, %v1694
    %1696 = vmatmul.f32.gmra.mxu0 %v1292
    %v1697 = vpop.f32.mrf.mxu0
    %v1698 = vadd.f32 0.0, %v1697
    %1699 = vmatmul.f32.gmra.mxu0 %v1295
    %v1700 = vpop.f32.mrf.mxu0
    %v1701 = vadd.f32 0.0, %v1700
    %1702 = vmatmul.f32.gmra.mxu0 %v1298
    %v1703 = vpop.f32.mrf.mxu0
    %v1704 = vadd.f32 0.0, %v1703
    %1705 = vmatmul.f32.gmra.mxu0 %v1301
    %v1706 = vpop.f32.mrf.mxu0
    %v1707 = vadd.f32 0.0, %v1706
    %1708 = vmatmul.f32.gmra.mxu0 %v1304
    %v1709 = vpop.f32.mrf.mxu0
    %v1710 = vadd.f32 0.0, %v1709
    %1711 = vmatmul.f32.gmra.mxu0 %v1307
    %v1712 = vpop.f32.mrf.mxu0
    %v1713 = vadd.f32 0.0, %v1712
    %1714 = vmatmul.f32.gmra.mxu0 %v1310
    %v1715 = vpop.f32.mrf.mxu0
    %v1716 = vadd.f32 0.0, %v1715
    %1717 = vmatmul.f32.gmra.mxu0 %v1313
    %v1718 = vpop.f32.mrf.mxu0
    %v1719 = vadd.f32 0.0, %v1718
    %1720 = vmatmul.f32.gmra.mxu0 %v1316
    %v1721 = vpop.f32.mrf.mxu0
    %v1722 = vadd.f32 0.0, %v1721
    %1723 = vmatmul.f32.gmra.mxu0 %v1319
    %v1724 = vpop.f32.mrf.mxu0
    %v1725 = vadd.f32 0.0, %v1724
    %1726 = vmatmul.f32.gmra.mxu0 %v1322
    %v1727 = vpop.f32.mrf.mxu0
    %v1728 = vadd.f32 0.0, %v1727
    %1729 = vmatmul.f32.gmra.mxu0 %v1325
    %v1730 = vpop.f32.mrf.mxu0
    %v1731 = vadd.f32 0.0, %v1730
    %1732 = vmatmul.f32.gmra.mxu0 %v1328
    %v1733 = vpop.f32.mrf.mxu0
    %v1734 = vadd.f32 0.0, %v1733
    %1735 = vmatmul.f32.gmra.mxu0 %v1331
    %v1736 = vpop.f32.mrf.mxu0
    %v1737 = vadd.f32 0.0, %v1736
    %1738 = vmatmul.f32.gmra.mxu0 %v1334
    %v1739 = vpop.f32.mrf.mxu0
    %v1740 = vadd.f32 0.0, %v1739
    %1741 = vmatmul.f32.gmra.mxu0 %v1337
    %v1742 = vpop.f32.mrf.mxu0
    %v1743 = vadd.f32 0.0, %v1742
    %1744 = vmatmul.f32.gmra.mxu0 %v1340
    %v1745 = vpop.f32.mrf.mxu0
    %v1746 = vadd.f32 0.0, %v1745
    %1747 = vmatmul.f32.gmra.mxu0 %v1343
    %v1748 = vpop.f32.mrf.mxu0
    %v1749 = vadd.f32 0.0, %v1748
    %1750 = vmatmul.f32.gmra.mxu0 %v1346
    %v1751 = vpop.f32.mrf.mxu0
    %v1752 = vadd.f32 0.0, %v1751
    %1753 = vmatmul.f32.gmra.mxu0 %v1349
    %v1754 = vpop.f32.mrf.mxu0
    %v1755 = vadd.f32 0.0, %v1754
    %1756 = vmatmul.f32.gmra.mxu0 %v1352
    %v1757 = vpop.f32.mrf.mxu0
    %v1758 = vadd.f32 0.0, %v1757
    %1759 = vmatmul.f32.gmra.mxu0 %v1355
    %v1760 = vpop.f32.mrf.mxu0
    %v1761 = vadd.f32 0.0, %v1760
    %1762 = vmatmul.f32.gmra.mxu0 %v1358
    %v1763 = vpop.f32.mrf.mxu0
    %v1764 = vadd.f32 0.0, %v1763
    %1765 = vmatmul.f32.gmra.mxu0 %v1361
    %v1766 = vpop.f32.mrf.mxu0
    %v1767 = vadd.f32 0.0, %v1766
    %1768 = vmatmul.f32.gmra.mxu0 %v1364
    %v1769 = vpop.f32.mrf.mxu0
    %v1770 = vadd.f32 0.0, %v1769
    %1771 = vmatmul.f32.gmra.mxu0 %v1367
    %v1772 = vpop.f32.mrf.mxu0
    %v1773 = vadd.f32 0.0, %v1772
    %1774 = vmatmul.f32.gmra.mxu0 %v1370
    %v1775 = vpop.f32.mrf.mxu0
    %v1776 = vadd.f32 0.0, %v1775
    %1777 = vmatmul.f32.gmra.mxu0 %v1373
    %v1778 = vpop.f32.mrf.mxu0
    %v1779 = vadd.f32 0.0, %v1778
    %1780 = vmatmul.f32.gmra.mxu0 %v1376
    %v1781 = vpop.f32.mrf.mxu0
    %v1782 = vadd.f32 0.0, %v1781
    %1783 = vmatmul.f32.gmra.mxu0 %v1379
    %v1784 = vpop.f32.mrf.mxu0
    %v1785 = vadd.f32 0.0, %v1784
    %1786 = vmatmul.f32.gmra.mxu0 %v1382
    %v1787 = vpop.f32.mrf.mxu0
    %v1788 = vadd.f32 0.0, %v1787
    %1789 = vmatmul.f32.gmra.mxu0 %v1385
    %v1790 = vpop.f32.mrf.mxu0
    %v1791 = vadd.f32 0.0, %v1790
    %1792 = vmatmul.f32.gmra.mxu0 %v1388
    %v1793 = vpop.f32.mrf.mxu0
    %v1794 = vadd.f32 0.0, %v1793
    %1795 = vmatmul.f32.gmra.mxu0 %v1391
    %v1796 = vpop.f32.mrf.mxu0
    %v1797 = vadd.f32 0.0, %v1796
    %1798 = vmatmul.f32.gmra.mxu0 %v1394
    %v1799 = vpop.f32.mrf.mxu0
    %v1800 = vadd.f32 0.0, %v1799
    %1801 = vmatmul.f32.gmra.mxu0 %v1397
    %v1802 = vpop.f32.mrf.mxu0
    %v1803 = vadd.f32 0.0, %v1802
    %1804 = vmatmul.f32.gmra.mxu0 %v1400
    %v1805 = vpop.f32.mrf.mxu0
    %v1806 = vadd.f32 0.0, %v1805
    %1807 = vmatmul.f32.gmra.mxu0 %v1403
    %v1808 = vpop.f32.mrf.mxu0
    %v1809 = vadd.f32 0.0, %v1808
    %1810 = vmatmul.f32.gmra.mxu0 %v1406
    %v1811 = vpop.f32.mrf.mxu0
    %v1812 = vadd.f32 0.0, %v1811
    %1813 = vmatmul.f32.gmra.mxu0 %v1409
    %v1814 = vpop.f32.mrf.mxu0
    %v1815 = vadd.f32 0.0, %v1814
    %1816 = vmatmul.f32.gmra.mxu0 %v1412
    %v1817 = vpop.f32.mrf.mxu0
    %v1818 = vadd.f32 0.0, %v1817
    %1819 = vmatmul.f32.gmra.mxu0 %v1415
    %v1820 = vpop.f32.mrf.mxu0
    %v1821 = vadd.f32 0.0, %v1820
    %1822 = vmatmul.f32.gmra.mxu0 %v1418
    %v1823 = vpop.f32.mrf.mxu0
    %v1824 = vadd.f32 0.0, %v1823
    %1825 = vmatmul.f32.gmra.mxu0 %v1421
    %v1826 = vpop.f32.mrf.mxu0
    %v1827 = vadd.f32 0.0, %v1826
    %1828 = vmatmul.f32.gmra.mxu0 %v1424
    %v1829 = vpop.f32.mrf.mxu0
    %v1830 = vadd.f32 0.0, %v1829
    %1831 = vmatmul.f32.gmra.mxu0 %v1427
    %v1832 = vpop.f32.mrf.mxu0
    %v1833 = vadd.f32 0.0, %v1832
    %1834 = vmatmul.f32.gmra.mxu0 %v1430
    %v1835 = vpop.f32.mrf.mxu0
    %v1836 = vadd.f32 0.0, %v1835
    %1837 = vmatmul.f32.gmra.mxu0 %v1433
    %v1838 = vpop.f32.mrf.mxu0
    %v1839 = vadd.f32 0.0, %v1838
    %1840 = vmatmul.f32.gmra.mxu0 %v1436
    %v1841 = vpop.f32.mrf.mxu0
    %v1842 = vadd.f32 0.0, %v1841
    %1843 = vmatmul.f32.gmra.mxu0 %v1439
    %v1844 = vpop.f32.mrf.mxu0
    %v1845 = vadd.f32 0.0, %v1844
    %1846 = vmatmul.f32.gmra.mxu0 %v1442
    %v1847 = vpop.f32.mrf.mxu0
    %v1848 = vadd.f32 0.0, %v1847
    %1849 = vmatmul.f32.gmra.mxu0 %v1445
    %v1850 = vpop.f32.mrf.mxu0
    %v1851 = vadd.f32 0.0, %v1850
    %1852 = vmatmul.f32.gmra.mxu0 %v1448
    %v1853 = vpop.f32.mrf.mxu0
    %v1854 = vadd.f32 0.0, %v1853
    %1855 = vmatmul.f32.gmra.mxu0 %v1451
    %v1856 = vpop.f32.mrf.mxu0
    %v1857 = vadd.f32 0.0, %v1856
    %1858 = vmatmul.f32.gmra.mxu0 %v1454
    %v1859 = vpop.f32.mrf.mxu0
    %v1860 = vadd.f32 0.0, %v1859
    %1861 = vmatmul.f32.gmra.mxu0 %v1457
    %v1862 = vpop.f32.mrf.mxu0
    %v1863 = vadd.f32 0.0, %v1862
    %1864 = vmatmul.f32.gmra.mxu0 %v1460
    %v1865 = vpop.f32.mrf.mxu0
    %v1866 = vadd.f32 0.0, %v1865
    %1867 = vmatmul.f32.gmra.mxu0 %v1463
    %v1868 = vpop.f32.mrf.mxu0
    %v1869 = vadd.f32 0.0, %v1868
    %1870 = vmatmul.f32.gmra.mxu0 %v1466
    %v1871 = vpop.f32.mrf.mxu0
    %v1872 = vadd.f32 0.0, %v1871
    %1873 = vdwg.mxu0
    %1874 = vmatpush.msra.mxu0 0.0
    %1875 = vmatpush.msra.mxu0 0.0
    %1876 = vmatpush.msra.mxu0 0.0
    %1877 = vmatpush.msra.mxu0 0.0
    %1878 = vmatpush.msra.mxu0 0.0
    %1879 = vmatpush.msra.mxu0 0.0
    %1880 = vmatpush.msra.mxu0 0.0
    %1881 = vmatpush.msra.mxu0 0.0
    %1882 = vmatpush.msra.mxu0 0.0
    %1883 = vmatpush.msra.mxu0 0.0
    %1884 = vmatpush.msra.mxu0 0.0
    %1885 = vmatpush.msra.mxu0 0.0
    %1886 = vmatpush.msra.mxu0 0.0
    %1887 = vmatpush.msra.mxu0 0.0
    %1888 = vmatpush.msra.mxu0 0.0
    %1889 = vmatpush.msra.mxu0 %v1471
    %1890 = vmatmul.f32.gmra.mxu0 %v1085
    %v1891 = vpop.f32.mrf.mxu0
    %v1892 = vadd.f32 0.0, %v1891
    %1893 = vmatmul.f32.gmra.mxu0 %v1088
    %v1894 = vpop.f32.mrf.mxu0
    %v1895 = vadd.f32 0.0, %v1894
    %1896 = vmatmul.f32.gmra.mxu0 %v1091
    %v1897 = vpop.f32.mrf.mxu0
    %v1898 = vadd.f32 0.0, %v1897
    %1899 = vmatmul.f32.gmra.mxu0 %v1094
    %v1900 = vpop.f32.mrf.mxu0
    %v1901 = vadd.f32 0.0, %v1900
    %1902 = vmatmul.f32.gmra.mxu0 %v1097
    %v1903 = vpop.f32.mrf.mxu0
    %v1904 = vadd.f32 0.0, %v1903
    %1905 = vmatmul.f32.gmra.mxu0 %v1100
    %v1906 = vpop.f32.mrf.mxu0
    %v1907 = vadd.f32 0.0, %v1906
    %1908 = vmatmul.f32.gmra.mxu0 %v1103
    %v1909 = vpop.f32.mrf.mxu0
    %v1910 = vadd.f32 0.0, %v1909
    %1911 = vmatmul.f32.gmra.mxu0 %v1106
    %v1912 = vpop.f32.mrf.mxu0
    %v1913 = vadd.f32 0.0, %v1912
    %1914 = vmatmul.f32.gmra.mxu0 %v1109
    %v1915 = vpop.f32.mrf.mxu0
    %v1916 = vadd.f32 0.0, %v1915
    %1917 = vmatmul.f32.gmra.mxu0 %v1112
    %v1918 = vpop.f32.mrf.mxu0
    %v1919 = vadd.f32 0.0, %v1918
    %1920 = vmatmul.f32.gmra.mxu0 %v1115
    %v1921 = vpop.f32.mrf.mxu0
    %v1922 = vadd.f32 0.0, %v1921
    %1923 = vmatmul.f32.gmra.mxu0 %v1118
    %v1924 = vpop.f32.mrf.mxu0
    %v1925 = vadd.f32 0.0, %v1924
    %1926 = vmatmul.f32.gmra.mxu0 %v1121
    %v1927 = vpop.f32.mrf.mxu0
    %v1928 = vadd.f32 0.0, %v1927
    %1929 = vmatmul.f32.gmra.mxu0 %v1124
    %v1930 = vpop.f32.mrf.mxu0
    %v1931 = vadd.f32 0.0, %v1930
    %1932 = vmatmul.f32.gmra.mxu0 %v1127
    %v1933 = vpop.f32.mrf.mxu0
    %v1934 = vadd.f32 0.0, %v1933
    %1935 = vmatmul.f32.gmra.mxu0 %v1130
    %v1936 = vpop.f32.mrf.mxu0
    %v1937 = vadd.f32 0.0, %v1936
    %1938 = vmatmul.f32.gmra.mxu0 %v1133
    %v1939 = vpop.f32.mrf.mxu0
    %v1940 = vadd.f32 0.0, %v1939
    %1941 = vmatmul.f32.gmra.mxu0 %v1136
    %v1942 = vpop.f32.mrf.mxu0
    %v1943 = vadd.f32 0.0, %v1942
    %1944 = vmatmul.f32.gmra.mxu0 %v1139
    %v1945 = vpop.f32.mrf.mxu0
    %v1946 = vadd.f32 0.0, %v1945
    %1947 = vmatmul.f32.gmra.mxu0 %v1142
    %v1948 = vpop.f32.mrf.mxu0
    %v1949 = vadd.f32 0.0, %v1948
    %1950 = vmatmul.f32.gmra.mxu0 %v1145
    %v1951 = vpop.f32.mrf.mxu0
    %v1952 = vadd.f32 0.0, %v1951
    %1953 = vmatmul.f32.gmra.mxu0 %v1148
    %v1954 = vpop.f32.mrf.mxu0
    %v1955 = vadd.f32 0.0, %v1954
    %1956 = vmatmul.f32.gmra.mxu0 %v1151
    %v1957 = vpop.f32.mrf.mxu0
    %v1958 = vadd.f32 0.0, %v1957
    %1959 = vmatmul.f32.gmra.mxu0 %v1154
    %v1960 = vpop.f32.mrf.mxu0
    %v1961 = vadd.f32 0.0, %v1960
    %1962 = vmatmul.f32.gmra.mxu0 %v1157
    %v1963 = vpop.f32.mrf.mxu0
    %v1964 = vadd.f32 0.0, %v1963
    %1965 = vmatmul.f32.gmra.mxu0 %v1160
    %v1966 = vpop.f32.mrf.mxu0
    %v1967 = vadd.f32 0.0, %v1966
    %1968 = vmatmul.f32.gmra.mxu0 %v1163
    %v1969 = vpop.f32.mrf.mxu0
    %v1970 = vadd.f32 0.0, %v1969
    %1971 = vmatmul.f32.gmra.mxu0 %v1166
    %v1972 = vpop.f32.mrf.mxu0
    %v1973 = vadd.f32 0.0, %v1972
    %1974 = vmatmul.f32.gmra.mxu0 %v1169
    %v1975 = vpop.f32.mrf.mxu0
    %v1976 = vadd.f32 0.0, %v1975
    %1977 = vmatmul.f32.gmra.mxu0 %v1172
    %v1978 = vpop.f32.mrf.mxu0
    %v1979 = vadd.f32 0.0, %v1978
    %1980 = vmatmul.f32.gmra.mxu0 %v1175
    %v1981 = vpop.f32.mrf.mxu0
    %v1982 = vadd.f32 0.0, %v1981
    %1983 = vmatmul.f32.gmra.mxu0 %v1178
    %v1984 = vpop.f32.mrf.mxu0
    %v1985 = vadd.f32 0.0, %v1984
    %1986 = vmatmul.f32.gmra.mxu0 %v1181
    %v1987 = vpop.f32.mrf.mxu0
    %v1988 = vadd.f32 0.0, %v1987
    %1989 = vmatmul.f32.gmra.mxu0 %v1184
    %v1990 = vpop.f32.mrf.mxu0
    %v1991 = vadd.f32 0.0, %v1990
    %1992 = vmatmul.f32.gmra.mxu0 %v1187
    %v1993 = vpop.f32.mrf.mxu0
    %v1994 = vadd.f32 0.0, %v1993
    %1995 = vmatmul.f32.gmra.mxu0 %v1190
    %v1996 = vpop.f32.mrf.mxu0
    %v1997 = vadd.f32 0.0, %v1996
    %1998 = vmatmul.f32.gmra.mxu0 %v1193
    %v1999 = vpop.f32.mrf.mxu0
    %v2000 = vadd.f32 0.0, %v1999
    %2001 = vmatmul.f32.gmra.mxu0 %v1196
    %v2002 = vpop.f32.mrf.mxu0
    %v2003 = vadd.f32 0.0, %v2002
    %2004 = vmatmul.f32.gmra.mxu0 %v1199
    %v2005 = vpop.f32.mrf.mxu0
    %v2006 = vadd.f32 0.0, %v2005
    %2007 = vmatmul.f32.gmra.mxu0 %v1202
    %v2008 = vpop.f32.mrf.mxu0
    %v2009 = vadd.f32 0.0, %v2008
    %2010 = vmatmul.f32.gmra.mxu0 %v1205
    %v2011 = vpop.f32.mrf.mxu0
    %v2012 = vadd.f32 0.0, %v2011
    %2013 = vmatmul.f32.gmra.mxu0 %v1208
    %v2014 = vpop.f32.mrf.mxu0
    %v2015 = vadd.f32 0.0, %v2014
    %2016 = vmatmul.f32.gmra.mxu0 %v1211
    %v2017 = vpop.f32.mrf.mxu0
    %v2018 = vadd.f32 0.0, %v2017
    %2019 = vmatmul.f32.gmra.mxu0 %v1214
    %v2020 = vpop.f32.mrf.mxu0
    %v2021 = vadd.f32 0.0, %v2020
    %2022 = vmatmul.f32.gmra.mxu0 %v1217
    %v2023 = vpop.f32.mrf.mxu0
    %v2024 = vadd.f32 0.0, %v2023
    %2025 = vmatmul.f32.gmra.mxu0 %v1220
    %v2026 = vpop.f32.mrf.mxu0
    %v2027 = vadd.f32 0.0, %v2026
    %2028 = vmatmul.f32.gmra.mxu0 %v1223
    %v2029 = vpop.f32.mrf.mxu0
    %v2030 = vadd.f32 0.0, %v2029
    %2031 = vmatmul.f32.gmra.mxu0 %v1226
    %v2032 = vpop.f32.mrf.mxu0
    %v2033 = vadd.f32 0.0, %v2032
    %2034 = vmatmul.f32.gmra.mxu0 %v1229
    %v2035 = vpop.f32.mrf.mxu0
    %v2036 = vadd.f32 0.0, %v2035
    %2037 = vmatmul.f32.gmra.mxu0 %v1232
    %v2038 = vpop.f32.mrf.mxu0
    %v2039 = vadd.f32 0.0, %v2038
    %2040 = vmatmul.f32.gmra.mxu0 %v1235
    %v2041 = vpop.f32.mrf.mxu0
    %v2042 = vadd.f32 0.0, %v2041
    %2043 = vmatmul.f32.gmra.mxu0 %v1238
    %v2044 = vpop.f32.mrf.mxu0
    %v2045 = vadd.f32 0.0, %v2044
    %2046 = vmatmul.f32.gmra.mxu0 %v1241
    %v2047 = vpop.f32.mrf.mxu0
    %v2048 = vadd.f32 0.0, %v2047
    %2049 = vmatmul.f32.gmra.mxu0 %v1244
    %v2050 = vpop.f32.mrf.mxu0
    %v2051 = vadd.f32 0.0, %v2050
    %2052 = vmatmul.f32.gmra.mxu0 %v1247
    %v2053 = vpop.f32.mrf.mxu0
    %v2054 = vadd.f32 0.0, %v2053
    %2055 = vmatmul.f32.gmra.mxu0 %v1250
    %v2056 = vpop.f32.mrf.mxu0
    %v2057 = vadd.f32 0.0, %v2056
    %2058 = vmatmul.f32.gmra.mxu0 %v1253
    %v2059 = vpop.f32.mrf.mxu0
    %v2060 = vadd.f32 0.0, %v2059
    %2061 = vmatmul.f32.gmra.mxu0 %v1256
    %v2062 = vpop.f32.mrf.mxu0
    %v2063 = vadd.f32 0.0, %v2062
    %2064 = vmatmul.f32.gmra.mxu0 %v1259
    %v2065 = vpop.f32.mrf.mxu0
    %v2066 = vadd.f32 0.0, %v2065
    %2067 = vmatmul.f32.gmra.mxu0 %v1262
    %v2068 = vpop.f32.mrf.mxu0
    %v2069 = vadd.f32 0.0, %v2068
    %2070 = vmatmul.f32.gmra.mxu0 %v1265
    %v2071 = vpop.f32.mrf.mxu0
    %v2072 = vadd.f32 0.0, %v2071
    %2073 = vmatmul.f32.gmra.mxu0 %v1268
    %v2074 = vpop.f32.mrf.mxu0
    %v2075 = vadd.f32 0.0, %v2074
    %2076 = vmatmul.f32.gmra.mxu0 %v1271
    %v2077 = vpop.f32.mrf.mxu0
    %v2078 = vadd.f32 0.0, %v2077
    %2079 = vmatmul.f32.gmra.mxu0 %v1274
    %v2080 = vpop.f32.mrf.mxu0
    %v2081 = vadd.f32 0.0, %v2080
    %2082 = vmatmul.f32.gmra.mxu0 %v1277
    %v2083 = vpop.f32.mrf.mxu0
    %v2084 = vadd.f32 0.0, %v2083
    %2085 = vmatmul.f32.gmra.mxu0 %v1280
    %v2086 = vpop.f32.mrf.mxu0
    %v2087 = vadd.f32 0.0, %v2086
    %2088 = vmatmul.f32.gmra.mxu0 %v1283
    %v2089 = vpop.f32.mrf.mxu0
    %v2090 = vadd.f32 0.0, %v2089
    %2091 = vmatmul.f32.gmra.mxu0 %v1286
    %v2092 = vpop.f32.mrf.mxu0
    %v2093 = vadd.f32 0.0, %v2092
    %2094 = vmatmul.f32.gmra.mxu0 %v1289
    %v2095 = vpop.f32.mrf.mxu0
    %v2096 = vadd.f32 0.0, %v2095
    %2097 = vmatmul.f32.gmra.mxu0 %v1292
    %v2098 = vpop.f32.mrf.mxu0
    %v2099 = vadd.f32 0.0, %v2098
    %2100 = vmatmul.f32.gmra.mxu0 %v1295
    %v2101 = vpop.f32.mrf.mxu0
    %v2102 = vadd.f32 0.0, %v2101
    %2103 = vmatmul.f32.gmra.mxu0 %v1298
    %v2104 = vpop.f32.mrf.mxu0
    %v2105 = vadd.f32 0.0, %v2104
    %2106 = vmatmul.f32.gmra.mxu0 %v1301
    %v2107 = vpop.f32.mrf.mxu0
    %v2108 = vadd.f32 0.0, %v2107
    %2109 = vmatmul.f32.gmra.mxu0 %v1304
    %v2110 = vpop.f32.mrf.mxu0
    %v2111 = vadd.f32 0.0, %v2110
    %2112 = vmatmul.f32.gmra.mxu0 %v1307
    %v2113 = vpop.f32.mrf.mxu0
    %v2114 = vadd.f32 0.0, %v2113
    %2115 = vmatmul.f32.gmra.mxu0 %v1310
    %v2116 = vpop.f32.mrf.mxu0
    %v2117 = vadd.f32 0.0, %v2116
    %2118 = vmatmul.f32.gmra.mxu0 %v1313
    %v2119 = vpop.f32.mrf.mxu0
    %v2120 = vadd.f32 0.0, %v2119
    %2121 = vmatmul.f32.gmra.mxu0 %v1316
    %v2122 = vpop.f32.mrf.mxu0
    %v2123 = vadd.f32 0.0, %v2122
    %2124 = vmatmul.f32.gmra.mxu0 %v1319
    %v2125 = vpop.f32.mrf.mxu0
    %v2126 = vadd.f32 0.0, %v2125
    %2127 = vmatmul.f32.gmra.mxu0 %v1322
    %v2128 = vpop.f32.mrf.mxu0
    %v2129 = vadd.f32 0.0, %v2128
    %2130 = vmatmul.f32.gmra.mxu0 %v1325
    %v2131 = vpop.f32.mrf.mxu0
    %v2132 = vadd.f32 0.0, %v2131
    %2133 = vmatmul.f32.gmra.mxu0 %v1328
    %v2134 = vpop.f32.mrf.mxu0
    %v2135 = vadd.f32 0.0, %v2134
    %2136 = vmatmul.f32.gmra.mxu0 %v1331
    %v2137 = vpop.f32.mrf.mxu0
    %v2138 = vadd.f32 0.0, %v2137
    %2139 = vmatmul.f32.gmra.mxu0 %v1334
    %v2140 = vpop.f32.mrf.mxu0
    %v2141 = vadd.f32 0.0, %v2140
    %2142 = vmatmul.f32.gmra.mxu0 %v1337
    %v2143 = vpop.f32.mrf.mxu0
    %v2144 = vadd.f32 0.0, %v2143
    %2145 = vmatmul.f32.gmra.mxu0 %v1340
    %v2146 = vpop.f32.mrf.mxu0
    %v2147 = vadd.f32 0.0, %v2146
    %2148 = vmatmul.f32.gmra.mxu0 %v1343
    %v2149 = vpop.f32.mrf.mxu0
    %v2150 = vadd.f32 0.0, %v2149
    %2151 = vmatmul.f32.gmra.mxu0 %v1346
    %v2152 = vpop.f32.mrf.mxu0
    %v2153 = vadd.f32 0.0, %v2152
    %2154 = vmatmul.f32.gmra.mxu0 %v1349
    %v2155 = vpop.f32.mrf.mxu0
    %v2156 = vadd.f32 0.0, %v2155
    %2157 = vmatmul.f32.gmra.mxu0 %v1352
    %v2158 = vpop.f32.mrf.mxu0
    %v2159 = vadd.f32 0.0, %v2158
    %2160 = vmatmul.f32.gmra.mxu0 %v1355
    %v2161 = vpop.f32.mrf.mxu0
    %v2162 = vadd.f32 0.0, %v2161
    %2163 = vmatmul.f32.gmra.mxu0 %v1358
    %v2164 = vpop.f32.mrf.mxu0
    %v2165 = vadd.f32 0.0, %v2164
    %2166 = vmatmul.f32.gmra.mxu0 %v1361
    %v2167 = vpop.f32.mrf.mxu0
    %v2168 = vadd.f32 0.0, %v2167
    %2169 = vmatmul.f32.gmra.mxu0 %v1364
    %v2170 = vpop.f32.mrf.mxu0
    %v2171 = vadd.f32 0.0, %v2170
    %2172 = vmatmul.f32.gmra.mxu0 %v1367
    %v2173 = vpop.f32.mrf.mxu0
    %v2174 = vadd.f32 0.0, %v2173
    %2175 = vmatmul.f32.gmra.mxu0 %v1370
    %v2176 = vpop.f32.mrf.mxu0
    %v2177 = vadd.f32 0.0, %v2176
    %2178 = vmatmul.f32.gmra.mxu0 %v1373
    %v2179 = vpop.f32.mrf.mxu0
    %v2180 = vadd.f32 0.0, %v2179
    %2181 = vmatmul.f32.gmra.mxu0 %v1376
    %v2182 = vpop.f32.mrf.mxu0
    %v2183 = vadd.f32 0.0, %v2182
    %2184 = vmatmul.f32.gmra.mxu0 %v1379
    %v2185 = vpop.f32.mrf.mxu0
    %v2186 = vadd.f32 0.0, %v2185
    %2187 = vmatmul.f32.gmra.mxu0 %v1382
    %v2188 = vpop.f32.mrf.mxu0
    %v2189 = vadd.f32 0.0, %v2188
    %2190 = vmatmul.f32.gmra.mxu0 %v1385
    %v2191 = vpop.f32.mrf.mxu0
    %v2192 = vadd.f32 0.0, %v2191
    %2193 = vmatmul.f32.gmra.mxu0 %v1388
    %v2194 = vpop.f32.mrf.mxu0
    %v2195 = vadd.f32 0.0, %v2194
    %2196 = vmatmul.f32.gmra.mxu0 %v1391
    %v2197 = vpop.f32.mrf.mxu0
    %v2198 = vadd.f32 0.0, %v2197
    %2199 = vmatmul.f32.gmra.mxu0 %v1394
    %v2200 = vpop.f32.mrf.mxu0
    %v2201 = vadd.f32 0.0, %v2200
    %2202 = vmatmul.f32.gmra.mxu0 %v1397
    %v2203 = vpop.f32.mrf.mxu0
    %v2204 = vadd.f32 0.0, %v2203
    %2205 = vmatmul.f32.gmra.mxu0 %v1400
    %v2206 = vpop.f32.mrf.mxu0
    %v2207 = vadd.f32 0.0, %v2206
    %2208 = vmatmul.f32.gmra.mxu0 %v1403
    %v2209 = vpop.f32.mrf.mxu0
    %v2210 = vadd.f32 0.0, %v2209
    %2211 = vmatmul.f32.gmra.mxu0 %v1406
    %v2212 = vpop.f32.mrf.mxu0
    %v2213 = vadd.f32 0.0, %v2212
    %2214 = vmatmul.f32.gmra.mxu0 %v1409
    %v2215 = vpop.f32.mrf.mxu0
    %v2216 = vadd.f32 0.0, %v2215
    %2217 = vmatmul.f32.gmra.mxu0 %v1412
    %v2218 = vpop.f32.mrf.mxu0
    %v2219 = vadd.f32 0.0, %v2218
    %2220 = vmatmul.f32.gmra.mxu0 %v1415
    %v2221 = vpop.f32.mrf.mxu0
    %v2222 = vadd.f32 0.0, %v2221
    %2223 = vmatmul.f32.gmra.mxu0 %v1418
    %v2224 = vpop.f32.mrf.mxu0
    %v2225 = vadd.f32 0.0, %v2224
    %2226 = vmatmul.f32.gmra.mxu0 %v1421
    %v2227 = vpop.f32.mrf.mxu0
    %v2228 = vadd.f32 0.0, %v2227
    %2229 = vmatmul.f32.gmra.mxu0 %v1424
    %v2230 = vpop.f32.mrf.mxu0
    %v2231 = vadd.f32 0.0, %v2230
    %2232 = vmatmul.f32.gmra.mxu0 %v1427
    %v2233 = vpop.f32.mrf.mxu0
    %v2234 = vadd.f32 0.0, %v2233
    %2235 = vmatmul.f32.gmra.mxu0 %v1430
    %v2236 = vpop.f32.mrf.mxu0
    %v2237 = vadd.f32 0.0, %v2236
    %2238 = vmatmul.f32.gmra.mxu0 %v1433
    %v2239 = vpop.f32.mrf.mxu0
    %v2240 = vadd.f32 0.0, %v2239
    %2241 = vmatmul.f32.gmra.mxu0 %v1436
    %v2242 = vpop.f32.mrf.mxu0
    %v2243 = vadd.f32 0.0, %v2242
    %2244 = vmatmul.f32.gmra.mxu0 %v1439
    %v2245 = vpop.f32.mrf.mxu0
    %v2246 = vadd.f32 0.0, %v2245
    %2247 = vmatmul.f32.gmra.mxu0 %v1442
    %v2248 = vpop.f32.mrf.mxu0
    %v2249 = vadd.f32 0.0, %v2248
    %2250 = vmatmul.f32.gmra.mxu0 %v1445
    %v2251 = vpop.f32.mrf.mxu0
    %v2252 = vadd.f32 0.0, %v2251
    %2253 = vmatmul.f32.gmra.mxu0 %v1448
    %v2254 = vpop.f32.mrf.mxu0
    %v2255 = vadd.f32 0.0, %v2254
    %2256 = vmatmul.f32.gmra.mxu0 %v1451
    %v2257 = vpop.f32.mrf.mxu0
    %v2258 = vadd.f32 0.0, %v2257
    %2259 = vmatmul.f32.gmra.mxu0 %v1454
    %v2260 = vpop.f32.mrf.mxu0
    %v2261 = vadd.f32 0.0, %v2260
    %2262 = vmatmul.f32.gmra.mxu0 %v1457
    %v2263 = vpop.f32.mrf.mxu0
    %v2264 = vadd.f32 0.0, %v2263
    %2265 = vmatmul.f32.gmra.mxu0 %v1460
    %v2266 = vpop.f32.mrf.mxu0
    %v2267 = vadd.f32 0.0, %v2266
    %2268 = vmatmul.f32.gmra.mxu0 %v1463
    %v2269 = vpop.f32.mrf.mxu0
    %v2270 = vadd.f32 0.0, %v2269
    %2271 = vmatmul.f32.gmra.mxu0 %v1466
    %v2272 = vpop.f32.mrf.mxu0
    %v2273 = vadd.f32 0.0, %v2272
    %2274 = vdwg.mxu0
    %v2275 = vmax.f32 %v1491, 0.0
    %v2276 = vmax.f32 %v1892, 0.0
    %v2277 = vmax.f32 %v1494, 0.0
    %v2278 = vmax.f32 %v1895, 0.0
    %v2279 = vmax.f32 %v1497, 0.0
    %v2280 = vmax.f32 %v1898, 0.0
    %v2281 = vmax.f32 %v1500, 0.0
    %v2282 = vmax.f32 %v1901, 0.0
    %v2283 = vmax.f32 %v1503, 0.0
    %v2284 = vmax.f32 %v1904, 0.0
    %v2285 = vmax.f32 %v1506, 0.0
    %v2286 = vmax.f32 %v1907, 0.0
    %v2287 = vmax.f32 %v1509, 0.0
    %v2288 = vmax.f32 %v1910, 0.0
    %v2289 = vmax.f32 %v1512, 0.0
    %v2290 = vmax.f32 %v1913, 0.0
    %v2291 = vmax.f32 %v1515, 0.0
    %v2292 = vmax.f32 %v1916, 0.0
    %v2293 = vmax.f32 %v1518, 0.0
    %v2294 = vmax.f32 %v1919, 0.0
    %v2295 = vmax.f32 %v1521, 0.0
    %v2296 = vmax.f32 %v1922, 0.0
    %v2297 = vmax.f32 %v1524, 0.0
    %v2298 = vmax.f32 %v1925, 0.0
    %v2299 = vmax.f32 %v1527, 0.0
    %v2300 = vmax.f32 %v1928, 0.0
    %v2301 = vmax.f32 %v1530, 0.0
    %v2302 = vmax.f32 %v1931, 0.0
    %v2303 = vmax.f32 %v1533, 0.0
    %v2304 = vmax.f32 %v1934, 0.0
    %v2305 = vmax.f32 %v1536, 0.0
    %v2306 = vmax.f32 %v1937, 0.0
    %v2307 = vmax.f32 %v1539, 0.0
    %v2308 = vmax.f32 %v1940, 0.0
    %v2309 = vmax.f32 %v1542, 0.0
    %v2310 = vmax.f32 %v1943, 0.0
    %v2311 = vmax.f32 %v1545, 0.0
    %v2312 = vmax.f32 %v1946, 0.0
    %v2313 = vmax.f32 %v1548, 0.0
    %v2314 = vmax.f32 %v1949, 0.0
    %v2315 = vmax.f32 %v1551, 0.0
    %v2316 = vmax.f32 %v1952, 0.0
    %v2317 = vmax.f32 %v1554, 0.0
    %v2318 = vmax.f32 %v1955, 0.0
    %v2319 = vmax.f32 %v1557, 0.0
    %v2320 = vmax.f32 %v1958, 0.0
    %v2321 = vmax.f32 %v1560, 0.0
    %v2322 = vmax.f32 %v1961, 0.0
    %v2323 = vmax.f32 %v1563, 0.0
    %v2324 = vmax.f32 %v1964, 0.0
    %v2325 = vmax.f32 %v1566, 0.0
    %v2326 = vmax.f32 %v1967, 0.0
    %v2327 = vmax.f32 %v1569, 0.0
    %v2328 = vmax.f32 %v1970, 0.0
    %v2329 = vmax.f32 %v1572, 0.0
    %v2330 = vmax.f32 %v1973, 0.0
    %v2331 = vmax.f32 %v1575, 0.0
    %v2332 = vmax.f32 %v1976, 0.0
    %v2333 = vmax.f32 %v1578, 0.0
    %v2334 = vmax.f32 %v1979, 0.0
    %v2335 = vmax.f32 %v1581, 0.0
    %v2336 = vmax.f32 %v1982, 0.0
    %v2337 = vmax.f32 %v1584, 0.0
    %v2338 = vmax.f32 %v1985, 0.0
    %v2339 = vmax.f32 %v1587, 0.0
    %v2340 = vmax.f32 %v1988, 0.0
    %v2341 = vmax.f32 %v1590, 0.0
    %v2342 = vmax.f32 %v1991, 0.0
    %v2343 = vmax.f32 %v1593, 0.0
    %v2344 = vmax.f32 %v1994, 0.0
    %v2345 = vmax.f32 %v1596, 0.0
    %v2346 = vmax.f32 %v1997, 0.0
    %v2347 = vmax.f32 %v1599, 0.0
    %v2348 = vmax.f32 %v2000, 0.0
    %v2349 = vmax.f32 %v1602, 0.0
    %v2350 = vmax.f32 %v2003, 0.0
    %v2351 = vmax.f32 %v1605, 0.0
    %v2352 = vmax.f32 %v2006, 0.0
    %v2353 = vmax.f32 %v1608, 0.0
    %v2354 = vmax.f32 %v2009, 0.0
    %v2355 = vmax.f32 %v1611, 0.0
    %v2356 = vmax.f32 %v2012, 0.0
    %v2357 = vmax.f32 %v1614, 0.0
    %v2358 = vmax.f32 %v2015, 0.0
    %v2359 = vmax.f32 %v1617, 0.0
    %v2360 = vmax.f32 %v2018, 0.0
    %v2361 = vmax.f32 %v1620, 0.0
    %v2362 = vmax.f32 %v2021, 0.0
    %v2363 = vmax.f32 %v1623, 0.0
    %v2364 = vmax.f32 %v2024, 0.0
    %v2365 = vmax.f32 %v1626, 0.0
    %v2366 = vmax.f32 %v2027, 0.0
    %v2367 = vmax.f32 %v1629, 0.0
    %v2368 = vmax.f32 %v2030, 0.0
    %v2369 = vmax.f32 %v1632, 0.0
    %v2370 = vmax.f32 %v2033, 0.0
    %v2371 = vmax.f32 %v1635, 0.0
    %v2372 = vmax.f32 %v2036, 0.0
    %v2373 = vmax.f32 %v1638, 0.0
    %v2374 = vmax.f32 %v2039, 0.0
    %v2375 = vmax.f32 %v1641, 0.0
    %v2376 = vmax.f32 %v2042, 0.0
    %v2377 = vmax.f32 %v1644, 0.0
    %v2378 = vmax.f32 %v2045, 0.0
    %v2379 = vmax.f32 %v1647, 0.0
    %v2380 = vmax.f32 %v2048, 0.0
    %v2381 = vmax.f32 %v1650, 0.0
    %v2382 = vmax.f32 %v2051, 0.0
    %v2383 = vmax.f32 %v1653, 0.0
    %v2384 = vmax.f32 %v2054, 0.0
    %v2385 = vmax.f32 %v1656, 0.0
    %v2386 = vmax.f32 %v2057, 0.0
    %v2387 = vmax.f32 %v1659, 0.0
    %v2388 = vmax.f32 %v2060, 0.0
    %v2389 = vmax.f32 %v1662, 0.0
    %v2390 = vmax.f32 %v2063, 0.0
    %v2391 = vmax.f32 %v1665, 0.0
    %v2392 = vmax.f32 %v2066, 0.0
    %v2393 = vmax.f32 %v1668, 0.0
    %v2394 = vmax.f32 %v2069, 0.0
    %v2395 = vmax.f32 %v1671, 0.0
    %v2396 = vmax.f32 %v2072, 0.0
    %v2397 = vmax.f32 %v1674, 0.0
    %v2398 = vmax.f32 %v2075, 0.0
    %v2399 = vmax.f32 %v1677, 0.0
    %v2400 = vmax.f32 %v2078, 0.0
    %v2401 = vmax.f32 %v1680, 0.0
    %v2402 = vmax.f32 %v2081, 0.0
    %v2403 = vmax.f32 %v1683, 0.0
    %v2404 = vmax.f32 %v2084, 0.0
    %v2405 = vmax.f32 %v1686, 0.0
    %v2406 = vmax.f32 %v2087, 0.0
    %v2407 = vmax.f32 %v1689, 0.0
    %v2408 = vmax.f32 %v2090, 0.0
    %v2409 = vmax.f32 %v1692, 0.0
    %v2410 = vmax.f32 %v2093, 0.0
    %v2411 = vmax.f32 %v1695, 0.0
    %v2412 = vmax.f32 %v2096, 0.0
    %v2413 = vmax.f32 %v1698, 0.0
    %v2414 = vmax.f32 %v2099, 0.0
    %v2415 = vmax.f32 %v1701, 0.0
    %v2416 = vmax.f32 %v2102, 0.0
    %v2417 = vmax.f32 %v1704, 0.0
    %v2418 = vmax.f32 %v2105, 0.0
    %v2419 = vmax.f32 %v1707, 0.0
    %v2420 = vmax.f32 %v2108, 0.0
    %v2421 = vmax.f32 %v1710, 0.0
    %v2422 = vmax.f32 %v2111, 0.0
    %v2423 = vmax.f32 %v1713, 0.0
    %v2424 = vmax.f32 %v2114, 0.0
    %v2425 = vmax.f32 %v1716, 0.0
    %v2426 = vmax.f32 %v2117, 0.0
    %v2427 = vmax.f32 %v1719, 0.0
    %v2428 = vmax.f32 %v2120, 0.0
    %v2429 = vmax.f32 %v1722, 0.0
    %v2430 = vmax.f32 %v2123, 0.0
    %v2431 = vmax.f32 %v1725, 0.0
    %v2432 = vmax.f32 %v2126, 0.0
    %v2433 = vmax.f32 %v1728, 0.0
    %v2434 = vmax.f32 %v2129, 0.0
    %v2435 = vmax.f32 %v1731, 0.0
    %v2436 = vmax.f32 %v2132, 0.0
    %v2437 = vmax.f32 %v1734, 0.0
    %v2438 = vmax.f32 %v2135, 0.0
    %v2439 = vmax.f32 %v1737, 0.0
    %v2440 = vmax.f32 %v2138, 0.0
    %v2441 = vmax.f32 %v1740, 0.0
    %v2442 = vmax.f32 %v2141, 0.0
    %v2443 = vmax.f32 %v1743, 0.0
    %v2444 = vmax.f32 %v2144, 0.0
    %v2445 = vmax.f32 %v1746, 0.0
    %v2446 = vmax.f32 %v2147, 0.0
    %v2447 = vmax.f32 %v1749, 0.0
    %v2448 = vmax.f32 %v2150, 0.0
    %v2449 = vmax.f32 %v1752, 0.0
    %v2450 = vmax.f32 %v2153, 0.0
    %v2451 = vmax.f32 %v1755, 0.0
    %v2452 = vmax.f32 %v2156, 0.0
    %v2453 = vmax.f32 %v1758, 0.0
    %v2454 = vmax.f32 %v2159, 0.0
    %v2455 = vmax.f32 %v1761, 0.0
    %v2456 = vmax.f32 %v2162, 0.0
    %v2457 = vmax.f32 %v1764, 0.0
    %v2458 = vmax.f32 %v2165, 0.0
    %v2459 = vmax.f32 %v1767, 0.0
    %v2460 = vmax.f32 %v2168, 0.0
    %v2461 = vmax.f32 %v1770, 0.0
    %v2462 = vmax.f32 %v2171, 0.0
    %v2463 = vmax.f32 %v1773, 0.0
    %v2464 = vmax.f32 %v2174, 0.0
    %v2465 = vmax.f32 %v1776, 0.0
    %v2466 = vmax.f32 %v2177, 0.0
    %v2467 = vmax.f32 %v1779, 0.0
    %v2468 = vmax.f32 %v2180, 0.0
    %v2469 = vmax.f32 %v1782, 0.0
    %v2470 = vmax.f32 %v2183, 0.0
    %v2471 = vmax.f32 %v1785, 0.0
    %v2472 = vmax.f32 %v2186, 0.0
    %v2473 = vmax.f32 %v1788, 0.0
    %v2474 = vmax.f32 %v2189, 0.0
    %v2475 = vmax.f32 %v1791, 0.0
    %v2476 = vmax.f32 %v2192, 0.0
    %v2477 = vmax.f32 %v1794, 0.0
    %v2478 = vmax.f32 %v2195, 0.0
    %v2479 = vmax.f32 %v1797, 0.0
    %v2480 = vmax.f32 %v2198, 0.0
    %v2481 = vmax.f32 %v1800, 0.0
    %v2482 = vmax.f32 %v2201, 0.0
    %v2483 = vmax.f32 %v1803, 0.0
    %v2484 = vmax.f32 %v2204, 0.0
    %v2485 = vmax.f32 %v1806, 0.0
    %v2486 = vmax.f32 %v2207, 0.0
    %v2487 = vmax.f32 %v1809, 0.0
    %v2488 = vmax.f32 %v2210, 0.0
    %v2489 = vmax.f32 %v1812, 0.0
    %v2490 = vmax.f32 %v2213, 0.0
    %v2491 = vmax.f32 %v1815, 0.0
    %v2492 = vmax.f32 %v2216, 0.0
    %v2493 = vmax.f32 %v1818, 0.0
    %v2494 = vmax.f32 %v2219, 0.0
    %v2495 = vmax.f32 %v1821, 0.0
    %v2496 = vmax.f32 %v2222, 0.0
    %v2497 = vmax.f32 %v1824, 0.0
    %v2498 = vmax.f32 %v2225, 0.0
    %v2499 = vmax.f32 %v1827, 0.0
    %v2500 = vmax.f32 %v2228, 0.0
    %v2501 = vmax.f32 %v1830, 0.0
    %v2502 = vmax.f32 %v2231, 0.0
    %v2503 = vmax.f32 %v1833, 0.0
    %v2504 = vmax.f32 %v2234, 0.0
    %v2505 = vmax.f32 %v1836, 0.0
    %v2506 = vmax.f32 %v2237, 0.0
    %v2507 = vmax.f32 %v1839, 0.0
    %v2508 = vmax.f32 %v2240, 0.0
    %v2509 = vmax.f32 %v1842, 0.0
    %v2510 = vmax.f32 %v2243, 0.0
    %v2511 = vmax.f32 %v1845, 0.0
    %v2512 = vmax.f32 %v2246, 0.0
    %v2513 = vmax.f32 %v1848, 0.0
    %v2514 = vmax.f32 %v2249, 0.0
    %v2515 = vmax.f32 %v1851, 0.0
    %v2516 = vmax.f32 %v2252, 0.0
    %v2517 = vmax.f32 %v1854, 0.0
    %v2518 = vmax.f32 %v2255, 0.0
    %v2519 = vmax.f32 %v1857, 0.0
    %v2520 = vmax.f32 %v2258, 0.0
    %v2521 = vmax.f32 %v1860, 0.0
    %v2522 = vmax.f32 %v2261, 0.0
    %v2523 = vmax.f32 %v1863, 0.0
    %v2524 = vmax.f32 %v2264, 0.0
    %v2525 = vmax.f32 %v1866, 0.0
    %v2526 = vmax.f32 %v2267, 0.0
    %v2527 = vmax.f32 %v1869, 0.0
    %v2528 = vmax.f32 %v2270, 0.0
    %v2529 = vmax.f32 %v1872, 0.0
    %v2530 = vmax.f32 %v2273, 0.0
    %v2531 = vld [vmem:[%s3] sm:$0xff]
    %v2532 = vld [vmem:[%s3 + $0x8] sm:$0xff]
    %v2533 = vld [vmem:[%s3 + $0x10] sm:$0xff]
    %v2534 = vld [vmem:[%s3 + $0x18] sm:$0xff]
    %2539 = vst [vmem:[#allocation1] ss:$2 sm:$0xff] %v2531
    %s2540 = scalar_lea.vmem [#allocation1], 16
    %2541 = vst [vmem:[%s2540] ss:$2 sm:$0xff] %v2532
    %s2542 = scalar_lea.vmem [#allocation1], 32
    %2543 = vst [vmem:[%s2542] ss:$2 sm:$0xff] %v2533
    %s2544 = scalar_lea.vmem [#allocation1], 48
    %2545 = vst [vmem:[%s2544] ss:$2 sm:$0xff] %v2534
    %v2546 = vld.sshfl [vmem:[#allocation1] sm:$0xff pattern:$0x75316420]
    %v2547 = vld.sshfl [vmem:[#allocation1 + $0x8] sm:$0xff pattern:$0x75316420]
    %v2548 = vld.sshfl [vmem:[#allocation1 + $0x10] sm:$0xff pattern:$0x75316420]
    %v2549 = vld.sshfl [vmem:[#allocation1 + $0x18] sm:$0xff pattern:$0x75316420]
    %v2550 = vld.sshfl [vmem:[#allocation1 + $0x20] sm:$0xff pattern:$0x75316420]
    %v2551 = vld.sshfl [vmem:[#allocation1 + $0x28] sm:$0xff pattern:$0x75316420]
    %v2552 = vld.sshfl [vmem:[#allocation1 + $0x30] sm:$0xff pattern:$0x75316420]
    %v2553 = vld.sshfl [vmem:[#allocation1 + $0x38] sm:$0xff pattern:$0x75316420]
    %2562 = vmatpush.msra.mxu0 %v2305
    %2563 = vmatpush.msra.mxu0 %v2303
    %2564 = vmatpush.msra.mxu0 %v2301
    %2565 = vmatpush.msra.mxu0 %v2299
    %2566 = vmatpush.msra.mxu0 %v2297
    %2567 = vmatpush.msra.mxu0 %v2295
    %2568 = vmatpush.msra.mxu0 %v2293
    %2569 = vmatpush.msra.mxu0 %v2291
    %2570 = vmatpush.msra.mxu0 %v2289
    %2571 = vmatpush.msra.mxu0 %v2287
    %2572 = vmatpush.msra.mxu0 %v2285
    %2573 = vmatpush.msra.mxu0 %v2283
    %2574 = vmatpush.msra.mxu0 %v2281
    %2575 = vmatpush.msra.mxu0 %v2279
    %2576 = vmatpush.msra.mxu0 %v2277
    %2577 = vmatpush.msra.mxu0 %v2275
    %2578 = vmatmul.f32.gmra.mxu0 %v2546
    %v2579 = vpop.f32.mrf.mxu0
    %v2580 = vadd.f32 0.0, %v2579
    %2581 = vdwg.mxu0
    %2582 = vmatpush.msra.mxu0 %v2337
    %2583 = vmatpush.msra.mxu0 %v2335
    %2584 = vmatpush.msra.mxu0 %v2333
    %2585 = vmatpush.msra.mxu0 %v2331
    %2586 = vmatpush.msra.mxu0 %v2329
    %2587 = vmatpush.msra.mxu0 %v2327
    %2588 = vmatpush.msra.mxu0 %v2325
    %2589 = vmatpush.msra.mxu0 %v2323
    %2590 = vmatpush.msra.mxu0 %v2321
    %2591 = vmatpush.msra.mxu0 %v2319
    %2592 = vmatpush.msra.mxu0 %v2317
    %2593 = vmatpush.msra.mxu0 %v2315
    %2594 = vmatpush.msra.mxu0 %v2313
    %2595 = vmatpush.msra.mxu0 %v2311
    %2596 = vmatpush.msra.mxu0 %v2309
    %2597 = vmatpush.msra.mxu0 %v2307
    %2598 = vmatmul.f32.gmra.mxu0 %v2547
    %v2599 = vpop.f32.mrf.mxu0
    %v2600 = vadd.f32 %v2580, %v2599
    %2601 = vdwg.mxu0
    %2602 = vmatpush.msra.mxu0 %v2369
    %2603 = vmatpush.msra.mxu0 %v2367
    %2604 = vmatpush.msra.mxu0 %v2365
    %2605 = vmatpush.msra.mxu0 %v2363
    %2606 = vmatpush.msra.mxu0 %v2361
    %2607 = vmatpush.msra.mxu0 %v2359
    %2608 = vmatpush.msra.mxu0 %v2357
    %2609 = vmatpush.msra.mxu0 %v2355
    %2610 = vmatpush.msra.mxu0 %v2353
    %2611 = vmatpush.msra.mxu0 %v2351
    %2612 = vmatpush.msra.mxu0 %v2349
    %2613 = vmatpush.msra.mxu0 %v2347
    %2614 = vmatpush.msra.mxu0 %v2345
    %2615 = vmatpush.msra.mxu0 %v2343
    %2616 = vmatpush.msra.mxu0 %v2341
    %2617 = vmatpush.msra.mxu0 %v2339
    %2618 = vmatmul.f32.gmra.mxu0 %v2548
    %v2619 = vpop.f32.mrf.mxu0
    %v2620 = vadd.f32 %v2600, %v2619
    %2621 = vdwg.mxu0
    %2622 = vmatpush.msra.mxu0 %v2401
    %2623 = vmatpush.msra.mxu0 %v2399
    %2624 = vmatpush.msra.mxu0 %v2397
    %2625 = vmatpush.msra.mxu0 %v2395
    %2626 = vmatpush.msra.mxu0 %v2393
    %2627 = vmatpush.msra.mxu0 %v2391
    %2628 = vmatpush.msra.mxu0 %v2389
    %2629 = vmatpush.msra.mxu0 %v2387
    %2630 = vmatpush.msra.mxu0 %v2385
    %2631 = vmatpush.msra.mxu0 %v2383
    %2632 = vmatpush.msra.mxu0 %v2381
    %2633 = vmatpush.msra.mxu0 %v2379
    %2634 = vmatpush.msra.mxu0 %v2377
    %2635 = vmatpush.msra.mxu0 %v2375
    %2636 = vmatpush.msra.mxu0 %v2373
    %2637 = vmatpush.msra.mxu0 %v2371
    %2638 = vmatmul.f32.gmra.mxu0 %v2549
    %v2639 = vpop.f32.mrf.mxu0
    %v2640 = vadd.f32 %v2620, %v2639
    %2641 = vdwg.mxu0
    %2642 = vmatpush.msra.mxu0 %v2433
    %2643 = vmatpush.msra.mxu0 %v2431
    %2644 = vmatpush.msra.mxu0 %v2429
    %2645 = vmatpush.msra.mxu0 %v2427
    %2646 = vmatpush.msra.mxu0 %v2425
    %2647 = vmatpush.msra.mxu0 %v2423
    %2648 = vmatpush.msra.mxu0 %v2421
    %2649 = vmatpush.msra.mxu0 %v2419
    %2650 = vmatpush.msra.mxu0 %v2417
    %2651 = vmatpush.msra.mxu0 %v2415
    %2652 = vmatpush.msra.mxu0 %v2413
    %2653 = vmatpush.msra.mxu0 %v2411
    %2654 = vmatpush.msra.mxu0 %v2409
    %2655 = vmatpush.msra.mxu0 %v2407
    %2656 = vmatpush.msra.mxu0 %v2405
    %2657 = vmatpush.msra.mxu0 %v2403
    %2658 = vmatmul.f32.gmra.mxu0 %v2550
    %v2659 = vpop.f32.mrf.mxu0
    %v2660 = vadd.f32 %v2640, %v2659
    %2661 = vdwg.mxu0
    %2662 = vmatpush.msra.mxu0 %v2465
    %2663 = vmatpush.msra.mxu0 %v2463
    %2664 = vmatpush.msra.mxu0 %v2461
    %2665 = vmatpush.msra.mxu0 %v2459
    %2666 = vmatpush.msra.mxu0 %v2457
    %2667 = vmatpush.msra.mxu0 %v2455
    %2668 = vmatpush.msra.mxu0 %v2453
    %2669 = vmatpush.msra.mxu0 %v2451
    %2670 = vmatpush.msra.mxu0 %v2449
    %2671 = vmatpush.msra.mxu0 %v2447
    %2672 = vmatpush.msra.mxu0 %v2445
    %2673 = vmatpush.msra.mxu0 %v2443
    %2674 = vmatpush.msra.mxu0 %v2441
    %2675 = vmatpush.msra.mxu0 %v2439
    %2676 = vmatpush.msra.mxu0 %v2437
    %2677 = vmatpush.msra.mxu0 %v2435
    %2678 = vmatmul.f32.gmra.mxu0 %v2551
    %v2679 = vpop.f32.mrf.mxu0
    %v2680 = vadd.f32 %v2660, %v2679
    %2681 = vdwg.mxu0
    %2682 = vmatpush.msra.mxu0 %v2497
    %2683 = vmatpush.msra.mxu0 %v2495
    %2684 = vmatpush.msra.mxu0 %v2493
    %2685 = vmatpush.msra.mxu0 %v2491
    %2686 = vmatpush.msra.mxu0 %v2489
    %2687 = vmatpush.msra.mxu0 %v2487
    %2688 = vmatpush.msra.mxu0 %v2485
    %2689 = vmatpush.msra.mxu0 %v2483
    %2690 = vmatpush.msra.mxu0 %v2481
    %2691 = vmatpush.msra.mxu0 %v2479
    %2692 = vmatpush.msra.mxu0 %v2477
    %2693 = vmatpush.msra.mxu0 %v2475
    %2694 = vmatpush.msra.mxu0 %v2473
    %2695 = vmatpush.msra.mxu0 %v2471
    %2696 = vmatpush.msra.mxu0 %v2469
    %2697 = vmatpush.msra.mxu0 %v2467
    %2698 = vmatmul.f32.gmra.mxu0 %v2552
    %v2699 = vpop.f32.mrf.mxu0
    %v2700 = vadd.f32 %v2680, %v2699
    %2701 = vdwg.mxu0
    %2702 = vmatpush.msra.mxu0 %v2529
    %2703 = vmatpush.msra.mxu0 %v2527
    %2704 = vmatpush.msra.mxu0 %v2525
    %2705 = vmatpush.msra.mxu0 %v2523
    %2706 = vmatpush.msra.mxu0 %v2521
    %2707 = vmatpush.msra.mxu0 %v2519
    %2708 = vmatpush.msra.mxu0 %v2517
    %2709 = vmatpush.msra.mxu0 %v2515
    %2710 = vmatpush.msra.mxu0 %v2513
    %2711 = vmatpush.msra.mxu0 %v2511
    %2712 = vmatpush.msra.mxu0 %v2509
    %2713 = vmatpush.msra.mxu0 %v2507
    %2714 = vmatpush.msra.mxu0 %v2505
    %2715 = vmatpush.msra.mxu0 %v2503
    %2716 = vmatpush.msra.mxu0 %v2501
    %2717 = vmatpush.msra.mxu0 %v2499
    %2718 = vmatmul.f32.gmra.mxu0 %v2553
    %v2719 = vpop.f32.mrf.mxu0
    %v2720 = vadd.f32 %v2700, %v2719
    %2721 = vdwg.mxu0
    %2722 = vmatpush.msra.mxu0 %v2306
    %2723 = vmatpush.msra.mxu0 %v2304
    %2724 = vmatpush.msra.mxu0 %v2302
    %2725 = vmatpush.msra.mxu0 %v2300
    %2726 = vmatpush.msra.mxu0 %v2298
    %2727 = vmatpush.msra.mxu0 %v2296
    %2728 = vmatpush.msra.mxu0 %v2294
    %2729 = vmatpush.msra.mxu0 %v2292
    %2730 = vmatpush.msra.mxu0 %v2290
    %2731 = vmatpush.msra.mxu0 %v2288
    %2732 = vmatpush.msra.mxu0 %v2286
    %2733 = vmatpush.msra.mxu0 %v2284
    %2734 = vmatpush.msra.mxu0 %v2282
    %2735 = vmatpush.msra.mxu0 %v2280
    %2736 = vmatpush.msra.mxu0 %v2278
    %2737 = vmatpush.msra.mxu0 %v2276
    %2738 = vmatmul.f32.gmra.mxu0 %v2546
    %v2739 = vpop.f32.mrf.mxu0
    %v2740 = vadd.f32 0.0, %v2739
    %2741 = vdwg.mxu0
    %2742 = vmatpush.msra.mxu0 %v2338
    %2743 = vmatpush.msra.mxu0 %v2336
    %2744 = vmatpush.msra.mxu0 %v2334
    %2745 = vmatpush.msra.mxu0 %v2332
    %2746 = vmatpush.msra.mxu0 %v2330
    %2747 = vmatpush.msra.mxu0 %v2328
    %2748 = vmatpush.msra.mxu0 %v2326
    %2749 = vmatpush.msra.mxu0 %v2324
    %2750 = vmatpush.msra.mxu0 %v2322
    %2751 = vmatpush.msra.mxu0 %v2320
    %2752 = vmatpush.msra.mxu0 %v2318
    %2753 = vmatpush.msra.mxu0 %v2316
    %2754 = vmatpush.msra.mxu0 %v2314
    %2755 = vmatpush.msra.mxu0 %v2312
    %2756 = vmatpush.msra.mxu0 %v2310
    %2757 = vmatpush.msra.mxu0 %v2308
    %2758 = vmatmul.f32.gmra.mxu0 %v2547
    %v2759 = vpop.f32.mrf.mxu0
    %v2760 = vadd.f32 %v2740, %v2759
    %2761 = vdwg.mxu0
    %2762 = vmatpush.msra.mxu0 %v2370
    %2763 = vmatpush.msra.mxu0 %v2368
    %2764 = vmatpush.msra.mxu0 %v2366
    %2765 = vmatpush.msra.mxu0 %v2364
    %2766 = vmatpush.msra.mxu0 %v2362
    %2767 = vmatpush.msra.mxu0 %v2360
    %2768 = vmatpush.msra.mxu0 %v2358
    %2769 = vmatpush.msra.mxu0 %v2356
    %2770 = vmatpush.msra.mxu0 %v2354
    %2771 = vmatpush.msra.mxu0 %v2352
    %2772 = vmatpush.msra.mxu0 %v2350
    %2773 = vmatpush.msra.mxu0 %v2348
    %2774 = vmatpush.msra.mxu0 %v2346
    %2775 = vmatpush.msra.mxu0 %v2344
    %2776 = vmatpush.msra.mxu0 %v2342
    %2777 = vmatpush.msra.mxu0 %v2340
    %2778 = vmatmul.f32.gmra.mxu0 %v2548
    %v2779 = vpop.f32.mrf.mxu0
    %v2780 = vadd.f32 %v2760, %v2779
    %2781 = vdwg.mxu0
    %2782 = vmatpush.msra.mxu0 %v2402
    %2783 = vmatpush.msra.mxu0 %v2400
    %2784 = vmatpush.msra.mxu0 %v2398
    %2785 = vmatpush.msra.mxu0 %v2396
    %2786 = vmatpush.msra.mxu0 %v2394
    %2787 = vmatpush.msra.mxu0 %v2392
    %2788 = vmatpush.msra.mxu0 %v2390
    %2789 = vmatpush.msra.mxu0 %v2388
    %2790 = vmatpush.msra.mxu0 %v2386
    %2791 = vmatpush.msra.mxu0 %v2384
    %2792 = vmatpush.msra.mxu0 %v2382
    %2793 = vmatpush.msra.mxu0 %v2380
    %2794 = vmatpush.msra.mxu0 %v2378
    %2795 = vmatpush.msra.mxu0 %v2376
    %2796 = vmatpush.msra.mxu0 %v2374
    %2797 = vmatpush.msra.mxu0 %v2372
    %2798 = vmatmul.f32.gmra.mxu0 %v2549
    %v2799 = vpop.f32.mrf.mxu0
    %v2800 = vadd.f32 %v2780, %v2799
    %2801 = vdwg.mxu0
    %2802 = vmatpush.msra.mxu0 %v2434
    %2803 = vmatpush.msra.mxu0 %v2432
    %2804 = vmatpush.msra.mxu0 %v2430
    %2805 = vmatpush.msra.mxu0 %v2428
    %2806 = vmatpush.msra.mxu0 %v2426
    %2807 = vmatpush.msra.mxu0 %v2424
    %2808 = vmatpush.msra.mxu0 %v2422
    %2809 = vmatpush.msra.mxu0 %v2420
    %2810 = vmatpush.msra.mxu0 %v2418
    %2811 = vmatpush.msra.mxu0 %v2416
    %2812 = vmatpush.msra.mxu0 %v2414
    %2813 = vmatpush.msra.mxu0 %v2412
    %2814 = vmatpush.msra.mxu0 %v2410
    %2815 = vmatpush.msra.mxu0 %v2408
    %2816 = vmatpush.msra.mxu0 %v2406
    %2817 = vmatpush.msra.mxu0 %v2404
    %2818 = vmatmul.f32.gmra.mxu0 %v2550
    %v2819 = vpop.f32.mrf.mxu0
    %v2820 = vadd.f32 %v2800, %v2819
    %2821 = vdwg.mxu0
    %2822 = vmatpush.msra.mxu0 %v2466
    %2823 = vmatpush.msra.mxu0 %v2464
    %2824 = vmatpush.msra.mxu0 %v2462
    %2825 = vmatpush.msra.mxu0 %v2460
    %2826 = vmatpush.msra.mxu0 %v2458
    %2827 = vmatpush.msra.mxu0 %v2456
    %2828 = vmatpush.msra.mxu0 %v2454
    %2829 = vmatpush.msra.mxu0 %v2452
    %2830 = vmatpush.msra.mxu0 %v2450
    %2831 = vmatpush.msra.mxu0 %v2448
    %2832 = vmatpush.msra.mxu0 %v2446
    %2833 = vmatpush.msra.mxu0 %v2444
    %2834 = vmatpush.msra.mxu0 %v2442
    %2835 = vmatpush.msra.mxu0 %v2440
    %2836 = vmatpush.msra.mxu0 %v2438
    %2837 = vmatpush.msra.mxu0 %v2436
    %2838 = vmatmul.f32.gmra.mxu0 %v2551
    %v2839 = vpop.f32.mrf.mxu0
    %v2840 = vadd.f32 %v2820, %v2839
    %2841 = vdwg.mxu0
    %2842 = vmatpush.msra.mxu0 %v2498
    %2843 = vmatpush.msra.mxu0 %v2496
    %2844 = vmatpush.msra.mxu0 %v2494
    %2845 = vmatpush.msra.mxu0 %v2492
    %2846 = vmatpush.msra.mxu0 %v2490
    %2847 = vmatpush.msra.mxu0 %v2488
    %2848 = vmatpush.msra.mxu0 %v2486
    %2849 = vmatpush.msra.mxu0 %v2484
    %2850 = vmatpush.msra.mxu0 %v2482
    %2851 = vmatpush.msra.mxu0 %v2480
    %2852 = vmatpush.msra.mxu0 %v2478
    %2853 = vmatpush.msra.mxu0 %v2476
    %2854 = vmatpush.msra.mxu0 %v2474
    %2855 = vmatpush.msra.mxu0 %v2472
    %2856 = vmatpush.msra.mxu0 %v2470
    %2857 = vmatpush.msra.mxu0 %v2468
    %2858 = vmatmul.f32.gmra.mxu0 %v2552
    %v2859 = vpop.f32.mrf.mxu0
    %v2860 = vadd.f32 %v2840, %v2859
    %2861 = vdwg.mxu0
    %2862 = vmatpush.msra.mxu0 %v2530
    %2863 = vmatpush.msra.mxu0 %v2528
    %2864 = vmatpush.msra.mxu0 %v2526
    %2865 = vmatpush.msra.mxu0 %v2524
    %2866 = vmatpush.msra.mxu0 %v2522
    %2867 = vmatpush.msra.mxu0 %v2520
    %2868 = vmatpush.msra.mxu0 %v2518
    %2869 = vmatpush.msra.mxu0 %v2516
    %2870 = vmatpush.msra.mxu0 %v2514
    %2871 = vmatpush.msra.mxu0 %v2512
    %2872 = vmatpush.msra.mxu0 %v2510
    %2873 = vmatpush.msra.mxu0 %v2508
    %2874 = vmatpush.msra.mxu0 %v2506
    %2875 = vmatpush.msra.mxu0 %v2504
    %2876 = vmatpush.msra.mxu0 %v2502
    %2877 = vmatpush.msra.mxu0 %v2500
    %2878 = vmatmul.f32.gmra.mxu0 %v2553
    %v2879 = vpop.f32.mrf.mxu0
    %v2880 = vadd.f32 %v2860, %v2879
    %2881 = vdwg.mxu0
    %v2882 = vld [vmem:[#allocation5] sm:$0xff]
    %v2883 = vld [vmem:[#allocation5 + $0x8] sm:$0xff]
    %v2884 = vld [vmem:[#allocation5 + $0x10] sm:$0xff]
    %v2885 = vld [vmem:[#allocation5 + $0x18] sm:$0xff]
    %v2886 = vld [vmem:[#allocation5 + $0x20] sm:$0xff]
    %v2887 = vld [vmem:[#allocation5 + $0x28] sm:$0xff]
    %v2888 = vld [vmem:[#allocation5 + $0x30] sm:$0xff]
    %v2889 = vld [vmem:[#allocation5 + $0x38] sm:$0xff]
    %v2890 = vld [vmem:[#allocation5 + $0x40] sm:$0xff]
    %v2891 = vld [vmem:[#allocation5 + $0x48] sm:$0xff]
    %v2892 = vld [vmem:[#allocation5 + $0x50] sm:$0xff]
    %v2893 = vld [vmem:[#allocation5 + $0x58] sm:$0xff]
    %v2894 = vld [vmem:[#allocation5 + $0x60] sm:$0xff]
    %v2895 = vld [vmem:[#allocation5 + $0x68] sm:$0xff]
    %v2896 = vld [vmem:[#allocation5 + $0x70] sm:$0xff]
    %v2897 = vld [vmem:[#allocation5 + $0x78] sm:$0xff]
    %v2898 = vld [vmem:[#allocation5 + $0x80] sm:$0xff]
    %v2899 = vld [vmem:[#allocation5 + $0x88] sm:$0xff]
    %v2900 = vld [vmem:[#allocation5 + $0x90] sm:$0xff]
    %v2901 = vld [vmem:[#allocation5 + $0x98] sm:$0xff]
    %v2902 = vld [vmem:[#allocation5 + $0xa0] sm:$0xff]
    %v2903 = vld [vmem:[#allocation5 + $0xa8] sm:$0xff]
    %v2904 = vld [vmem:[#allocation5 + $0xb0] sm:$0xff]
    %v2905 = vld [vmem:[#allocation5 + $0xb8] sm:$0xff]
    %v2906 = vld [vmem:[#allocation5 + $0xc0] sm:$0xff]
    %v2907 = vld [vmem:[#allocation5 + $0xc8] sm:$0xff]
    %v2908 = vld [vmem:[#allocation5 + $0xd0] sm:$0xff]
    %v2909 = vld [vmem:[#allocation5 + $0xd8] sm:$0xff]
    %v2910 = vld [vmem:[#allocation5 + $0xe0] sm:$0xff]
    %v2911 = vld [vmem:[#allocation5 + $0xe8] sm:$0xff]
    %v2912 = vld [vmem:[#allocation5 + $0xf0] sm:$0xff]
    %v2913 = vld [vmem:[#allocation5 + $0xf8] sm:$0xff]
    %v2914 = vld [vmem:[#allocation5 + $0x100] sm:$0xff]
    %v2915 = vld [vmem:[#allocation5 + $0x108] sm:$0xff]
    %v2916 = vld [vmem:[#allocation5 + $0x110] sm:$0xff]
    %v2917 = vld [vmem:[#allocation5 + $0x118] sm:$0xff]
    %v2918 = vld [vmem:[#allocation5 + $0x120] sm:$0xff]
    %v2919 = vld [vmem:[#allocation5 + $0x128] sm:$0xff]
    %v2920 = vld [vmem:[#allocation5 + $0x130] sm:$0xff]
    %v2921 = vld [vmem:[#allocation5 + $0x138] sm:$0xff]
    %v2922 = vld [vmem:[#allocation5 + $0x140] sm:$0xff]
    %v2923 = vld [vmem:[#allocation5 + $0x148] sm:$0xff]
    %v2924 = vld [vmem:[#allocation5 + $0x150] sm:$0xff]
    %v2925 = vld [vmem:[#allocation5 + $0x158] sm:$0xff]
    %v2926 = vld [vmem:[#allocation5 + $0x160] sm:$0xff]
    %v2927 = vld [vmem:[#allocation5 + $0x168] sm:$0xff]
    %v2928 = vld [vmem:[#allocation5 + $0x170] sm:$0xff]
    %v2929 = vld [vmem:[#allocation5 + $0x178] sm:$0xff]
    %v2930 = vld [vmem:[#allocation5 + $0x180] sm:$0xff]
    %v2931 = vld [vmem:[#allocation5 + $0x188] sm:$0xff]
    %v2932 = vld [vmem:[#allocation5 + $0x190] sm:$0xff]
    %v2933 = vld [vmem:[#allocation5 + $0x198] sm:$0xff]
    %v2934 = vld [vmem:[#allocation5 + $0x1a0] sm:$0xff]
    %v2935 = vld [vmem:[#allocation5 + $0x1a8] sm:$0xff]
    %v2936 = vld [vmem:[#allocation5 + $0x1b0] sm:$0xff]
    %v2937 = vld [vmem:[#allocation5 + $0x1b8] sm:$0xff]
    %v2938 = vld [vmem:[#allocation5 + $0x1c0] sm:$0xff]
    %v2939 = vld [vmem:[#allocation5 + $0x1c8] sm:$0xff]
    %v2940 = vld [vmem:[#allocation5 + $0x1d0] sm:$0xff]
    %v2941 = vld [vmem:[#allocation5 + $0x1d8] sm:$0xff]
    %v2942 = vld [vmem:[#allocation5 + $0x1e0] sm:$0xff]
    %v2943 = vld [vmem:[#allocation5 + $0x1e8] sm:$0xff]
    %v2944 = vld [vmem:[#allocation5 + $0x1f0] sm:$0xff]
    %v2945 = vld [vmem:[#allocation5 + $0x1f8] sm:$0xff]
    %v2946 = vld [vmem:[#allocation5 + $0x200] sm:$0xff]
    %v2947 = vld [vmem:[#allocation5 + $0x208] sm:$0xff]
    %v2948 = vld [vmem:[#allocation5 + $0x210] sm:$0xff]
    %v2949 = vld [vmem:[#allocation5 + $0x218] sm:$0xff]
    %v2950 = vld [vmem:[#allocation5 + $0x220] sm:$0xff]
    %v2951 = vld [vmem:[#allocation5 + $0x228] sm:$0xff]
    %v2952 = vld [vmem:[#allocation5 + $0x230] sm:$0xff]
    %v2953 = vld [vmem:[#allocation5 + $0x238] sm:$0xff]
    %v2954 = vld [vmem:[#allocation5 + $0x240] sm:$0xff]
    %v2955 = vld [vmem:[#allocation5 + $0x248] sm:$0xff]
    %v2956 = vld [vmem:[#allocation5 + $0x250] sm:$0xff]
    %v2957 = vld [vmem:[#allocation5 + $0x258] sm:$0xff]
    %v2958 = vld [vmem:[#allocation5 + $0x260] sm:$0xff]
    %v2959 = vld [vmem:[#allocation5 + $0x268] sm:$0xff]
    %v2960 = vld [vmem:[#allocation5 + $0x270] sm:$0xff]
    %v2961 = vld [vmem:[#allocation5 + $0x278] sm:$0xff]
    %v2962 = vld [vmem:[#allocation5 + $0x280] sm:$0xff]
    %v2963 = vld [vmem:[#allocation5 + $0x288] sm:$0xff]
    %v2964 = vld [vmem:[#allocation5 + $0x290] sm:$0xff]
    %v2965 = vld [vmem:[#allocation5 + $0x298] sm:$0xff]
    %v2966 = vld [vmem:[#allocation5 + $0x2a0] sm:$0xff]
    %v2967 = vld [vmem:[#allocation5 + $0x2a8] sm:$0xff]
    %v2968 = vld [vmem:[#allocation5 + $0x2b0] sm:$0xff]
    %v2969 = vld [vmem:[#allocation5 + $0x2b8] sm:$0xff]
    %v2970 = vld [vmem:[#allocation5 + $0x2c0] sm:$0xff]
    %v2971 = vld [vmem:[#allocation5 + $0x2c8] sm:$0xff]
    %v2972 = vld [vmem:[#allocation5 + $0x2d0] sm:$0xff]
    %v2973 = vld [vmem:[#allocation5 + $0x2d8] sm:$0xff]
    %v2974 = vld [vmem:[#allocation5 + $0x2e0] sm:$0xff]
    %v2975 = vld [vmem:[#allocation5 + $0x2e8] sm:$0xff]
    %v2976 = vld [vmem:[#allocation5 + $0x2f0] sm:$0xff]
    %v2977 = vld [vmem:[#allocation5 + $0x2f8] sm:$0xff]
    %v2978 = vld [vmem:[#allocation5 + $0x300] sm:$0xff]
    %v2979 = vld [vmem:[#allocation5 + $0x308] sm:$0xff]
    %v2980 = vld [vmem:[#allocation5 + $0x310] sm:$0xff]
    %v2981 = vld [vmem:[#allocation5 + $0x318] sm:$0xff]
    %v2982 = vld [vmem:[#allocation5 + $0x320] sm:$0xff]
    %v2983 = vld [vmem:[#allocation5 + $0x328] sm:$0xff]
    %v2984 = vld [vmem:[#allocation5 + $0x330] sm:$0xff]
    %v2985 = vld [vmem:[#allocation5 + $0x338] sm:$0xff]
    %v2986 = vld [vmem:[#allocation5 + $0x340] sm:$0xff]
    %v2987 = vld [vmem:[#allocation5 + $0x348] sm:$0xff]
    %v2988 = vld [vmem:[#allocation5 + $0x350] sm:$0xff]
    %v2989 = vld [vmem:[#allocation5 + $0x358] sm:$0xff]
    %v2990 = vld [vmem:[#allocation5 + $0x360] sm:$0xff]
    %v2991 = vld [vmem:[#allocation5 + $0x368] sm:$0xff]
    %v2992 = vld [vmem:[#allocation5 + $0x370] sm:$0xff]
    %v2993 = vld [vmem:[#allocation5 + $0x378] sm:$0xff]
    %v2994 = vld [vmem:[#allocation5 + $0x380] sm:$0xff]
    %v2995 = vld [vmem:[#allocation5 + $0x388] sm:$0xff]
    %v2996 = vld [vmem:[#allocation5 + $0x390] sm:$0xff]
    %v2997 = vld [vmem:[#allocation5 + $0x398] sm:$0xff]
    %v2998 = vld [vmem:[#allocation5 + $0x3a0] sm:$0xff]
    %v2999 = vld [vmem:[#allocation5 + $0x3a8] sm:$0xff]
    %v3000 = vld [vmem:[#allocation5 + $0x3b0] sm:$0xff]
    %v3001 = vld [vmem:[#allocation5 + $0x3b8] sm:$0xff]
    %v3002 = vld [vmem:[#allocation5 + $0x3c0] sm:$0xff]
    %v3003 = vld [vmem:[#allocation5 + $0x3c8] sm:$0xff]
    %v3004 = vld [vmem:[#allocation5 + $0x3d0] sm:$0xff]
    %v3005 = vld [vmem:[#allocation5 + $0x3d8] sm:$0xff]
    %v3006 = vld [vmem:[#allocation5 + $0x3e0] sm:$0xff]
    %v3007 = vld [vmem:[#allocation5 + $0x3e8] sm:$0xff]
    %v3008 = vld [vmem:[#allocation5 + $0x3f0] sm:$0xff]
    %v3009 = vld [vmem:[#allocation5 + $0x3f8] sm:$0xff]
    %3010 = vmatpush.msra.mxu0 %v2942
    %3011 = vmatpush.msra.mxu0 %v2938
    %3012 = vmatpush.msra.mxu0 %v2934
    %3013 = vmatpush.msra.mxu0 %v2930
    %3014 = vmatpush.msra.mxu0 %v2926
    %3015 = vmatpush.msra.mxu0 %v2922
    %3016 = vmatpush.msra.mxu0 %v2918
    %3017 = vmatpush.msra.mxu0 %v2914
    %3018 = vmatpush.msra.mxu0 %v2910
    %3019 = vmatpush.msra.mxu0 %v2906
    %3020 = vmatpush.msra.mxu0 %v2902
    %3021 = vmatpush.msra.mxu0 %v2898
    %3022 = vmatpush.msra.mxu0 %v2894
    %3023 = vmatpush.msra.mxu0 %v2890
    %3024 = vmatpush.msra.mxu0 %v2886
    %3025 = vmatpush.msra.mxu0 %v2882
    %3026 = vmatmul.f32.gmra.mxu0 %v2720
    %v3027 = vpop.f32.mrf.mxu0
    %v3028 = vadd.f32 0.0, %v3027
    %3029 = vdwg.mxu0
    %3030 = vmatpush.msra.mxu0 %v3006
    %3031 = vmatpush.msra.mxu0 %v3002
    %3032 = vmatpush.msra.mxu0 %v2998
    %3033 = vmatpush.msra.mxu0 %v2994
    %3034 = vmatpush.msra.mxu0 %v2990
    %3035 = vmatpush.msra.mxu0 %v2986
    %3036 = vmatpush.msra.mxu0 %v2982
    %3037 = vmatpush.msra.mxu0 %v2978
    %3038 = vmatpush.msra.mxu0 %v2974
    %3039 = vmatpush.msra.mxu0 %v2970
    %3040 = vmatpush.msra.mxu0 %v2966
    %3041 = vmatpush.msra.mxu0 %v2962
    %3042 = vmatpush.msra.mxu0 %v2958
    %3043 = vmatpush.msra.mxu0 %v2954
    %3044 = vmatpush.msra.mxu0 %v2950
    %3045 = vmatpush.msra.mxu0 %v2946
    %3046 = vmatmul.f32.gmra.mxu0 %v2880
    %v3047 = vpop.f32.mrf.mxu0
    %v3048 = vadd.f32 %v3028, %v3047
    %3049 = vdwg.mxu0
    %3050 = vmatpush.msra.mxu0 %v2943
    %3051 = vmatpush.msra.mxu0 %v2939
    %3052 = vmatpush.msra.mxu0 %v2935
    %3053 = vmatpush.msra.mxu0 %v2931
    %3054 = vmatpush.msra.mxu0 %v2927
    %3055 = vmatpush.msra.mxu0 %v2923
    %3056 = vmatpush.msra.mxu0 %v2919
    %3057 = vmatpush.msra.mxu0 %v2915
    %3058 = vmatpush.msra.mxu0 %v2911
    %3059 = vmatpush.msra.mxu0 %v2907
    %3060 = vmatpush.msra.mxu0 %v2903
    %3061 = vmatpush.msra.mxu0 %v2899
    %3062 = vmatpush.msra.mxu0 %v2895
    %3063 = vmatpush.msra.mxu0 %v2891
    %3064 = vmatpush.msra.mxu0 %v2887
    %3065 = vmatpush.msra.mxu0 %v2883
    %3066 = vmatmul.f32.gmra.mxu0 %v2720
    %v3067 = vpop.f32.mrf.mxu0
    %v3068 = vadd.f32 0.0, %v3067
    %3069 = vdwg.mxu0
    %3070 = vmatpush.msra.mxu0 %v3007
    %3071 = vmatpush.msra.mxu0 %v3003
    %3072 = vmatpush.msra.mxu0 %v2999
    %3073 = vmatpush.msra.mxu0 %v2995
    %3074 = vmatpush.msra.mxu0 %v2991
    %3075 = vmatpush.msra.mxu0 %v2987
    %3076 = vmatpush.msra.mxu0 %v2983
    %3077 = vmatpush.msra.mxu0 %v2979
    %3078 = vmatpush.msra.mxu0 %v2975
    %3079 = vmatpush.msra.mxu0 %v2971
    %3080 = vmatpush.msra.mxu0 %v2967
    %3081 = vmatpush.msra.mxu0 %v2963
    %3082 = vmatpush.msra.mxu0 %v2959
    %3083 = vmatpush.msra.mxu0 %v2955
    %3084 = vmatpush.msra.mxu0 %v2951
    %3085 = vmatpush.msra.mxu0 %v2947
    %3086 = vmatmul.f32.gmra.mxu0 %v2880
    %v3087 = vpop.f32.mrf.mxu0
    %v3088 = vadd.f32 %v3068, %v3087
    %3089 = vdwg.mxu0
    %3090 = vmatpush.msra.mxu0 %v2944
    %3091 = vmatpush.msra.mxu0 %v2940
    %3092 = vmatpush.msra.mxu0 %v2936
    %3093 = vmatpush.msra.mxu0 %v2932
    %3094 = vmatpush.msra.mxu0 %v2928
    %3095 = vmatpush.msra.mxu0 %v2924
    %3096 = vmatpush.msra.mxu0 %v2920
    %3097 = vmatpush.msra.mxu0 %v2916
    %3098 = vmatpush.msra.mxu0 %v2912
    %3099 = vmatpush.msra.mxu0 %v2908
    %3100 = vmatpush.msra.mxu0 %v2904
    %3101 = vmatpush.msra.mxu0 %v2900
    %3102 = vmatpush.msra.mxu0 %v2896
    %3103 = vmatpush.msra.mxu0 %v2892
    %3104 = vmatpush.msra.mxu0 %v2888
    %3105 = vmatpush.msra.mxu0 %v2884
    %3106 = vmatmul.f32.gmra.mxu0 %v2720
    %v3107 = vpop.f32.mrf.mxu0
    %v3108 = vadd.f32 0.0, %v3107
    %3109 = vdwg.mxu0
    %3110 = vmatpush.msra.mxu0 %v3008
    %3111 = vmatpush.msra.mxu0 %v3004
    %3112 = vmatpush.msra.mxu0 %v3000
    %3113 = vmatpush.msra.mxu0 %v2996
    %3114 = vmatpush.msra.mxu0 %v2992
    %3115 = vmatpush.msra.mxu0 %v2988
    %3116 = vmatpush.msra.mxu0 %v2984
    %3117 = vmatpush.msra.mxu0 %v2980
    %3118 = vmatpush.msra.mxu0 %v2976
    %3119 = vmatpush.msra.mxu0 %v2972
    %3120 = vmatpush.msra.mxu0 %v2968
    %3121 = vmatpush.msra.mxu0 %v2964
    %3122 = vmatpush.msra.mxu0 %v2960
    %3123 = vmatpush.msra.mxu0 %v2956
    %3124 = vmatpush.msra.mxu0 %v2952
    %3125 = vmatpush.msra.mxu0 %v2948
    %3126 = vmatmul.f32.gmra.mxu0 %v2880
    %v3127 = vpop.f32.mrf.mxu0
    %v3128 = vadd.f32 %v3108, %v3127
    %3129 = vdwg.mxu0
    %3130 = vmatpush.msra.mxu0 %v2945
    %3131 = vmatpush.msra.mxu0 %v2941
    %3132 = vmatpush.msra.mxu0 %v2937
    %3133 = vmatpush.msra.mxu0 %v2933
    %3134 = vmatpush.msra.mxu0 %v2929
    %3135 = vmatpush.msra.mxu0 %v2925
    %3136 = vmatpush.msra.mxu0 %v2921
    %3137 = vmatpush.msra.mxu0 %v2917
    %3138 = vmatpush.msra.mxu0 %v2913
    %3139 = vmatpush.msra.mxu0 %v2909
    %3140 = vmatpush.msra.mxu0 %v2905
    %3141 = vmatpush.msra.mxu0 %v2901
    %3142 = vmatpush.msra.mxu0 %v2897
    %3143 = vmatpush.msra.mxu0 %v2893
    %3144 = vmatpush.msra.mxu0 %v2889
    %3145 = vmatpush.msra.mxu0 %v2885
    %3146 = vmatmul.f32.gmra.mxu0 %v2720
    %v3147 = vpop.f32.mrf.mxu0
    %v3148 = vadd.f32 0.0, %v3147
    %3149 = vdwg.mxu0
    %3150 = vmatpush.msra.mxu0 %v3009
    %3151 = vmatpush.msra.mxu0 %v3005
    %3152 = vmatpush.msra.mxu0 %v3001
    %3153 = vmatpush.msra.mxu0 %v2997
    %3154 = vmatpush.msra.mxu0 %v2993
    %3155 = vmatpush.msra.mxu0 %v2989
    %3156 = vmatpush.msra.mxu0 %v2985
    %3157 = vmatpush.msra.mxu0 %v2981
    %3158 = vmatpush.msra.mxu0 %v2977
    %3159 = vmatpush.msra.mxu0 %v2973
    %3160 = vmatpush.msra.mxu0 %v2969
    %3161 = vmatpush.msra.mxu0 %v2965
    %3162 = vmatpush.msra.mxu0 %v2961
    %3163 = vmatpush.msra.mxu0 %v2957
    %3164 = vmatpush.msra.mxu0 %v2953
    %3165 = vmatpush.msra.mxu0 %v2949
    %3166 = vmatmul.f32.gmra.mxu0 %v2880
    %v3167 = vpop.f32.mrf.mxu0
    %v3168 = vadd.f32 %v3148, %v3167
    %3169 = vdwg.mxu0
    %v3170 = vld [vmem:[%s4] sm:$0xf]
    %v3172 = vsel %vm144, %v3170, 0
    %v3175 = vsel %vm1468, %v3048, 0
    %v3178 = vsel %vm1468, %v3088, 0
    %v3181 = vsel %vm1468, %v3128, 0
    %v3184 = vsel %vm1468, %v3168, 0
    %3186 = vmatpush.msra.mxu0 0.0
    %3187 = vmatpush.msra.mxu0 0.0
    %3188 = vmatpush.msra.mxu0 0.0
    %3189 = vmatpush.msra.mxu0 0.0
    %3190 = vmatpush.msra.mxu0 0.0
    %3191 = vmatpush.msra.mxu0 0.0
    %3192 = vmatpush.msra.mxu0 0.0
    %3193 = vmatpush.msra.mxu0 0.0
    %3194 = vmatpush.msra.mxu0 0.0
    %3195 = vmatpush.msra.mxu0 0.0
    %3196 = vmatpush.msra.mxu0 0.0
    %3197 = vmatpush.msra.mxu0 0.0
    %3198 = vmatpush.msra.mxu0 0.0
    %3199 = vmatpush.msra.mxu0 0.0
    %3200 = vmatpush.msra.mxu0 0.0
    %3201 = vmatpush.msra.mxu0 %v3175
    %3202 = vmatmul.f32.gmra.mxu0 %v3172
    %v3203 = vpop.f32.mrf.mxu0
    %v3204 = vadd.f32 0.0, %v3203
    %3205 = vdwg.mxu0
    %3206 = vmatpush.msra.mxu0 0.0
    %3207 = vmatpush.msra.mxu0 0.0
    %3208 = vmatpush.msra.mxu0 0.0
    %3209 = vmatpush.msra.mxu0 0.0
    %3210 = vmatpush.msra.mxu0 0.0
    %3211 = vmatpush.msra.mxu0 0.0
    %3212 = vmatpush.msra.mxu0 0.0
    %3213 = vmatpush.msra.mxu0 0.0
    %3214 = vmatpush.msra.mxu0 0.0
    %3215 = vmatpush.msra.mxu0 0.0
    %3216 = vmatpush.msra.mxu0 0.0
    %3217 = vmatpush.msra.mxu0 0.0
    %3218 = vmatpush.msra.mxu0 0.0
    %3219 = vmatpush.msra.mxu0 0.0
    %3220 = vmatpush.msra.mxu0 0.0
    %3221 = vmatpush.msra.mxu0 %v3178
    %3222 = vmatmul.f32.gmra.mxu0 %v3172
    %v3223 = vpop.f32.mrf.mxu0
    %v3224 = vadd.f32 0.0, %v3223
    %3225 = vdwg.mxu0
    %3226 = vmatpush.msra.mxu0 0.0
    %3227 = vmatpush.msra.mxu0 0.0
    %3228 = vmatpush.msra.mxu0 0.0
    %3229 = vmatpush.msra.mxu0 0.0
    %3230 = vmatpush.msra.mxu0 0.0
    %3231 = vmatpush.msra.mxu0 0.0
    %3232 = vmatpush.msra.mxu0 0.0
    %3233 = vmatpush.msra.mxu0 0.0
    %3234 = vmatpush.msra.mxu0 0.0
    %3235 = vmatpush.msra.mxu0 0.0
    %3236 = vmatpush.msra.mxu0 0.0
    %3237 = vmatpush.msra.mxu0 0.0
    %3238 = vmatpush.msra.mxu0 0.0
    %3239 = vmatpush.msra.mxu0 0.0
    %3240 = vmatpush.msra.mxu0 0.0
    %3241 = vmatpush.msra.mxu0 %v3181
    %3242 = vmatmul.f32.gmra.mxu0 %v3172
    %v3243 = vpop.f32.mrf.mxu0
    %v3244 = vadd.f32 0.0, %v3243
    %3245 = vdwg.mxu0
    %3246 = vmatpush.msra.mxu0 0.0
    %3247 = vmatpush.msra.mxu0 0.0
    %3248 = vmatpush.msra.mxu0 0.0
    %3249 = vmatpush.msra.mxu0 0.0
    %3250 = vmatpush.msra.mxu0 0.0
    %3251 = vmatpush.msra.mxu0 0.0
    %3252 = vmatpush.msra.mxu0 0.0
    %3253 = vmatpush.msra.mxu0 0.0
    %3254 = vmatpush.msra.mxu0 0.0
    %3255 = vmatpush.msra.mxu0 0.0
    %3256 = vmatpush.msra.mxu0 0.0
    %3257 = vmatpush.msra.mxu0 0.0
    %3258 = vmatpush.msra.mxu0 0.0
    %3259 = vmatpush.msra.mxu0 0.0
    %3260 = vmatpush.msra.mxu0 0.0
    %3261 = vmatpush.msra.mxu0 %v3184
    %3262 = vmatmul.f32.gmra.mxu0 %v3172
    %v3263 = vpop.f32.mrf.mxu0
    %v3264 = vadd.f32 0.0, %v3263
    %3265 = vdwg.mxu0
    %v3266 = vsub.f32 %v3048, %v3204
    %v3267 = vsub.f32 %v3088, %v3224
    %v3268 = vsub.f32 %v3128, %v3244
    %v3269 = vsub.f32 %v3168, %v3264
    %v3270 = vmul.f32 %v3266, %v3266
    %v3271 = vmul.f32 %v3267, %v3267
    %v3272 = vmul.f32 %v3268, %v3268
    %v3273 = vmul.f32 %v3269, %v3269
    %v3275 = vsel %vm1468, %v3270, 0
    %v3278 = vsel %vm1468, %v3271, 0
    %v3281 = vsel %vm1468, %v3272, 0
    %v3284 = vsel %vm1468, %v3273, 0
    %3286 = vmatpush.msra.mxu0 0.0
    %3287 = vmatpush.msra.mxu0 0.0
    %3288 = vmatpush.msra.mxu0 0.0
    %3289 = vmatpush.msra.mxu0 0.0
    %3290 = vmatpush.msra.mxu0 0.0
    %3291 = vmatpush.msra.mxu0 0.0
    %3292 = vmatpush.msra.mxu0 0.0
    %3293 = vmatpush.msra.mxu0 0.0
    %3294 = vmatpush.msra.mxu0 0.0
    %3295 = vmatpush.msra.mxu0 0.0
    %3296 = vmatpush.msra.mxu0 0.0
    %3297 = vmatpush.msra.mxu0 0.0
    %3298 = vmatpush.msra.mxu0 0.0
    %3299 = vmatpush.msra.mxu0 0.0
    %3300 = vmatpush.msra.mxu0 0.0
    %3301 = vmatpush.msra.mxu0 %v3275
    %3302 = vmatmul.f32.gmra.mxu0 %v3172
    %v3303 = vpop.f32.mrf.mxu0
    %v3304 = vadd.f32 1e-05, %v3303
    %3305 = vdwg.mxu0
    %3306 = vmatpush.msra.mxu0 0.0
    %3307 = vmatpush.msra.mxu0 0.0
    %3308 = vmatpush.msra.mxu0 0.0
    %3309 = vmatpush.msra.mxu0 0.0
    %3310 = vmatpush.msra.mxu0 0.0
    %3311 = vmatpush.msra.mxu0 0.0
    %3312 = vmatpush.msra.mxu0 0.0
    %3313 = vmatpush.msra.mxu0 0.0
    %3314 = vmatpush.msra.mxu0 0.0
    %3315 = vmatpush.msra.mxu0 0.0
    %3316 = vmatpush.msra.mxu0 0.0
    %3317 = vmatpush.msra.mxu0 0.0
    %3318 = vmatpush.msra.mxu0 0.0
    %3319 = vmatpush.msra.mxu0 0.0
    %3320 = vmatpush.msra.mxu0 0.0
    %3321 = vmatpush.msra.mxu0 %v3278
    %3322 = vmatmul.f32.gmra.mxu0 %v3172
    %v3323 = vpop.f32.mrf.mxu0
    %v3324 = vadd.f32 1e-05, %v3323
    %3325 = vdwg.mxu0
    %3326 = vmatpush.msra.mxu0 0.0
    %3327 = vmatpush.msra.mxu0 0.0
    %3328 = vmatpush.msra.mxu0 0.0
    %3329 = vmatpush.msra.mxu0 0.0
    %3330 = vmatpush.msra.mxu0 0.0
    %3331 = vmatpush.msra.mxu0 0.0
    %3332 = vmatpush.msra.mxu0 0.0
    %3333 = vmatpush.msra.mxu0 0.0
    %3334 = vmatpush.msra.mxu0 0.0
    %3335 = vmatpush.msra.mxu0 0.0
    %3336 = vmatpush.msra.mxu0 0.0
    %3337 = vmatpush.msra.mxu0 0.0
    %3338 = vmatpush.msra.mxu0 0.0
    %3339 = vmatpush.msra.mxu0 0.0
    %3340 = vmatpush.msra.mxu0 0.0
    %3341 = vmatpush.msra.mxu0 %v3281
    %3342 = vmatmul.f32.gmra.mxu0 %v3172
    %v3343 = vpop.f32.mrf.mxu0
    %v3344 = vadd.f32 1e-05, %v3343
    %3345 = vdwg.mxu0
    %3346 = vmatpush.msra.mxu0 0.0
    %3347 = vmatpush.msra.mxu0 0.0
    %3348 = vmatpush.msra.mxu0 0.0
    %3349 = vmatpush.msra.mxu0 0.0
    %3350 = vmatpush.msra.mxu0 0.0
    %3351 = vmatpush.msra.mxu0 0.0
    %3352 = vmatpush.msra.mxu0 0.0
    %3353 = vmatpush.msra.mxu0 0.0
    %3354 = vmatpush.msra.mxu0 0.0
    %3355 = vmatpush.msra.mxu0 0.0
    %3356 = vmatpush.msra.mxu0 0.0
    %3357 = vmatpush.msra.mxu0 0.0
    %3358 = vmatpush.msra.mxu0 0.0
    %3359 = vmatpush.msra.mxu0 0.0
    %3360 = vmatpush.msra.mxu0 0.0
    %3361 = vmatpush.msra.mxu0 %v3284
    %3362 = vmatmul.f32.gmra.mxu0 %v3172
    %v3363 = vpop.f32.mrf.mxu0
    %v3364 = vadd.f32 1e-05, %v3363
    %3365 = vdwg.mxu0
    %v3366 = vrsqrt.pop %v3304
    %v3367 = vmul.f32 %v3366, %v3304
    %v3368 = vmul.f32 %v3367, %v3366
    %v3369 = vmul.f32 0.5, %v3368
    %v3370 = vsub.f32 1.5, %v3369
    %v3371 = vmul.f32 %v3366, %v3370
    %vm3372 = vweird.f32 %v3304
    %vm3373 = vweird.f32 %v3366
    %vm3374 = vmor %vm3372, %vm3373
    %v3375 = vsel %vm3374, %v3366, %v3371
    %v3376 = vrsqrt.pop %v3324
    %v3377 = vmul.f32 %v3376, %v3324
    %v3378 = vmul.f32 %v3377, %v3376
    %v3379 = vmul.f32 0.5, %v3378
    %v3380 = vsub.f32 1.5, %v3379
    %v3381 = vmul.f32 %v3376, %v3380
    %vm3382 = vweird.f32 %v3324
    %vm3383 = vweird.f32 %v3376
    %vm3384 = vmor %vm3382, %vm3383
    %v3385 = vsel %vm3384, %v3376, %v3381
    %v3386 = vrsqrt.pop %v3344
    %v3387 = vmul.f32 %v3386, %v3344
    %v3388 = vmul.f32 %v3387, %v3386
    %v3389 = vmul.f32 0.5, %v3388
    %v3390 = vsub.f32 1.5, %v3389
    %v3391 = vmul.f32 %v3386, %v3390
    %vm3392 = vweird.f32 %v3344
    %vm3393 = vweird.f32 %v3386
    %vm3394 = vmor %vm3392, %vm3393
    %v3395 = vsel %vm3394, %v3386, %v3391
    %v3396 = vrsqrt.pop %v3364
    %v3397 = vmul.f32 %v3396, %v3364
    %v3398 = vmul.f32 %v3397, %v3396
    %v3399 = vmul.f32 0.5, %v3398
    %v3400 = vsub.f32 1.5, %v3399
    %v3401 = vmul.f32 %v3396, %v3400
    %vm3402 = vweird.f32 %v3364
    %vm3403 = vweird.f32 %v3396
    %vm3404 = vmor %vm3402, %vm3403
    %v3405 = vsel %vm3404, %v3396, %v3401
    %v3406 = vmul.f32 %v3266, %v3375
    %v3407 = vmul.f32 %v3267, %v3385
    %v3408 = vmul.f32 %v3268, %v3395
    %v3409 = vmul.f32 %v3269, %v3405
    %v3410 = vld [vmem:[%s6] sm:$0xf]
    %v3412 = vperm.slane %v3410, 0
    %v3413 = vperm.slane %v3410, 1
    %v3414 = vperm.slane %v3410, 2
    %v3415 = vperm.slane %v3410, 3
    %v3420 = vmul.f32 %v3406, %v3412
    %v3421 = vmul.f32 %v3407, %v3413
    %v3422 = vmul.f32 %v3408, %v3414
    %v3423 = vmul.f32 %v3409, %v3415
    %v3424 = vld [vmem:[%s7] sm:$0xf]
    %v3426 = vperm.slane %v3424, 0
    %v3427 = vperm.slane %v3424, 1
    %v3428 = vperm.slane %v3424, 2
    %v3429 = vperm.slane %v3424, 3
    %v3434 = vadd.f32 %v3420, %v3426
    %v3435 = vadd.f32 %v3421, %v3427
    %v3436 = vadd.f32 %v3422, %v3428
    %v3437 = vadd.f32 %v3423, %v3429
    %v3438 = vmul.f32 %v3434, 0.5
    %v3439 = vmul.f32 %v3435, 0.5
    %v3440 = vmul.f32 %v3436, 0.5
    %v3441 = vmul.f32 %v3437, 0.5
    %v3442 = vmul.f32 %v3434, 0.70710677
    %v3443 = vmul.f32 %v3435, 0.70710677
    %v3444 = vmul.f32 %v3436, 0.70710677
    %v3445 = vmul.f32 %v3437, 0.70710677
    %v3446 = vmul.f32 %v3442, %v3442
    %v3447 = vmin.f32 16.0, %v3446
    %v3448 = vmul.f32 %v3447, 2.1237322e-06
    %v3449 = vadd.f32 %v3448, 0.00028619796
    %v3450 = vmul.f32 %v3447, %v3449
    %v3451 = vadd.f32 %v3450, 0.0036580483
    %v3452 = vmul.f32 %v3447, %v3451
    %v3453 = vadd.f32 %v3452, 0.05243302
    %v3454 = vmul.f32 %v3447, %v3453
    %v3455 = vadd.f32 %v3454, 0.18741608
    %v3456 = vmul.f32 %v3447, %v3455
    %v3457 = vadd.f32 %v3456, 1.1283791
    %v3458 = vmul.f32 %v3442, %v3457
    %v3459 = vmul.f32 %v3447, 3.8918573e-05
    %v3460 = vadd.f32 %v3459, 0.001143296
    %v3461 = vmul.f32 %v3447, %v3460
    %v3462 = vadd.f32 %v3461, 0.014752088
    %v3463 = vmul.f32 %v3447, %v3462
    %v3464 = vadd.f32 %v3463, 0.112945676
    %v3465 = vmul.f32 %v3447, %v3464
    %v3466 = vadd.f32 %v3465, 0.4994258
    %v3467 = vmul.f32 %v3447, %v3466
    %v3468 = vadd.f32 %v3467, 1.0
    %v3469 = vrcp.pop %v3468
    %v3470 = vmul.f32 %v3468, %v3469
    %v3471 = vsub.f32 1.0, %v3470
    %v3472 = vmul.f32 %v3469, %v3471
    %v3473 = vadd.f32 %v3469, %v3472
    %vm3474 = vweird.f32 %v3468
    %vm3475 = vweird.f32 %v3469
    %vm3476 = vmor %vm3474, %vm3475
    %v3477 = vsel %vm3476, %v3469, %v3473
    %v3478 = vand.u32 2147483647, %v3468
    %vm3479 = vcmp.eq.f32.partialorder %v3478, 8.507059e+37
    %v3480 = vand.u32 %v3468, 2147483648
    %v3481 = vor.u32 1.1754944e-38, %v3480
    %v3482 = vsel %vm3479, %v3481, %v3477
    %v3483 = vmul.f32 %v3458, %v3482
    %v3484 = vmin.f32 %v3483, 1.0
    %v3485 = vmax.f32 %v3484, -1.0
    %v3486 = vmul.f32 %v3443, %v3443
    %v3487 = vmin.f32 16.0, %v3486
    %v3488 = vmul.f32 %v3487, 2.1237322e-06
    %v3489 = vadd.f32 %v3488, 0.00028619796
    %v3490 = vmul.f32 %v3487, %v3489
    %v3491 = vadd.f32 %v3490, 0.0036580483
    %v3492 = vmul.f32 %v3487, %v3491
    %v3493 = vadd.f32 %v3492, 0.05243302
    %v3494 = vmul.f32 %v3487, %v3493
    %v3495 = vadd.f32 %v3494, 0.18741608
    %v3496 = vmul.f32 %v3487, %v3495
    %v3497 = vadd.f32 %v3496, 1.1283791
    %v3498 = vmul.f32 %v3443, %v3497
    %v3499 = vmul.f32 %v3487, 3.8918573e-05
    %v3500 = vadd.f32 %v3499, 0.001143296
    %v3501 = vmul.f32 %v3487, %v3500
    %v3502 = vadd.f32 %v3501, 0.014752088
    %v3503 = vmul.f32 %v3487, %v3502
    %v3504 = vadd.f32 %v3503, 0.112945676
    %v3505 = vmul.f32 %v3487, %v3504
    %v3506 = vadd.f32 %v3505, 0.4994258
    %v3507 = vmul.f32 %v3487, %v3506
    %v3508 = vadd.f32 %v3507, 1.0
    %v3509 = vrcp.pop %v3508
    %v3510 = vmul.f32 %v3508, %v3509
    %v3511 = vsub.f32 1.0, %v3510
    %v3512 = vmul.f32 %v3509, %v3511
    %v3513 = vadd.f32 %v3509, %v3512
    %vm3514 = vweird.f32 %v3508
    %vm3515 = vweird.f32 %v3509
    %vm3516 = vmor %vm3514, %vm3515
    %v3517 = vsel %vm3516, %v3509, %v3513
    %v3518 = vand.u32 2147483647, %v3508
    %vm3519 = vcmp.eq.f32.partialorder %v3518, 8.507059e+37
    %v3520 = vand.u32 %v3508, 2147483648
    %v3521 = vor.u32 1.1754944e-38, %v3520
    %v3522 = vsel %vm3519, %v3521, %v3517
    %v3523 = vmul.f32 %v3498, %v3522
    %v3524 = vmin.f32 %v3523, 1.0
    %v3525 = vmax.f32 %v3524, -1.0
    %v3526 = vmul.f32 %v3444, %v3444
    %v3527 = vmin.f32 16.0, %v3526
    %v3528 = vmul.f32 %v3527, 2.1237322e-06
    %v3529 = vadd.f32 %v3528, 0.00028619796
    %v3530 = vmul.f32 %v3527, %v3529
    %v3531 = vadd.f32 %v3530, 0.0036580483
    %v3532 = vmul.f32 %v3527, %v3531
    %v3533 = vadd.f32 %v3532, 0.05243302
    %v3534 = vmul.f32 %v3527, %v3533
    %v3535 = vadd.f32 %v3534, 0.18741608
    %v3536 = vmul.f32 %v3527, %v3535
    %v3537 = vadd.f32 %v3536, 1.1283791
    %v3538 = vmul.f32 %v3444, %v3537
    %v3539 = vmul.f32 %v3527, 3.8918573e-05
    %v3540 = vadd.f32 %v3539, 0.001143296
    %v3541 = vmul.f32 %v3527, %v3540
    %v3542 = vadd.f32 %v3541, 0.014752088
    %v3543 = vmul.f32 %v3527, %v3542
    %v3544 = vadd.f32 %v3543, 0.112945676
    %v3545 = vmul.f32 %v3527, %v3544
    %v3546 = vadd.f32 %v3545, 0.4994258
    %v3547 = vmul.f32 %v3527, %v3546
    %v3548 = vadd.f32 %v3547, 1.0
    %v3549 = vrcp.pop %v3548
    %v3550 = vmul.f32 %v3548, %v3549
    %v3551 = vsub.f32 1.0, %v3550
    %v3552 = vmul.f32 %v3549, %v3551
    %v3553 = vadd.f32 %v3549, %v3552
    %vm3554 = vweird.f32 %v3548
    %vm3555 = vweird.f32 %v3549
    %vm3556 = vmor %vm3554, %vm3555
    %v3557 = vsel %vm3556, %v3549, %v3553
    %v3558 = vand.u32 2147483647, %v3548
    %vm3559 = vcmp.eq.f32.partialorder %v3558, 8.507059e+37
    %v3560 = vand.u32 %v3548, 2147483648
    %v3561 = vor.u32 1.1754944e-38, %v3560
    %v3562 = vsel %vm3559, %v3561, %v3557
    %v3563 = vmul.f32 %v3538, %v3562
    %v3564 = vmin.f32 %v3563, 1.0
    %v3565 = vmax.f32 %v3564, -1.0
    %v3566 = vmul.f32 %v3445, %v3445
    %v3567 = vmin.f32 16.0, %v3566
    %v3568 = vmul.f32 %v3567, 2.1237322e-06
    %v3569 = vadd.f32 %v3568, 0.00028619796
    %v3570 = vmul.f32 %v3567, %v3569
    %v3571 = vadd.f32 %v3570, 0.0036580483
    %v3572 = vmul.f32 %v3567, %v3571
    %v3573 = vadd.f32 %v3572, 0.05243302
    %v3574 = vmul.f32 %v3567, %v3573
    %v3575 = vadd.f32 %v3574, 0.18741608
    %v3576 = vmul.f32 %v3567, %v3575
    %v3577 = vadd.f32 %v3576, 1.1283791
    %v3578 = vmul.f32 %v3445, %v3577
    %v3579 = vmul.f32 %v3567, 3.8918573e-05
    %v3580 = vadd.f32 %v3579, 0.001143296
    %v3581 = vmul.f32 %v3567, %v3580
    %v3582 = vadd.f32 %v3581, 0.014752088
    %v3583 = vmul.f32 %v3567, %v3582
    %v3584 = vadd.f32 %v3583, 0.112945676
    %v3585 = vmul.f32 %v3567, %v3584
    %v3586 = vadd.f32 %v3585, 0.4994258
    %v3587 = vmul.f32 %v3567, %v3586
    %v3588 = vadd.f32 %v3587, 1.0
    %v3589 = vrcp.pop %v3588
    %v3590 = vmul.f32 %v3588, %v3589
    %v3591 = vsub.f32 1.0, %v3590
    %v3592 = vmul.f32 %v3589, %v3591
    %v3593 = vadd.f32 %v3589, %v3592
    %vm3594 = vweird.f32 %v3588
    %vm3595 = vweird.f32 %v3589
    %vm3596 = vmor %vm3594, %vm3595
    %v3597 = vsel %vm3596, %v3589, %v3593
    %v3598 = vand.u32 2147483647, %v3588
    %vm3599 = vcmp.eq.f32.partialorder %v3598, 8.507059e+37
    %v3600 = vand.u32 %v3588, 2147483648
    %v3601 = vor.u32 1.1754944e-38, %v3600
    %v3602 = vsel %vm3599, %v3601, %v3597
    %v3603 = vmul.f32 %v3578, %v3602
    %v3604 = vmin.f32 %v3603, 1.0
    %v3605 = vmax.f32 %v3604, -1.0
    %v3606 = vadd.f32 %v3485, 1.0
    %v3607 = vadd.f32 %v3525, 1.0
    %v3608 = vadd.f32 %v3565, 1.0
    %v3609 = vadd.f32 %v3605, 1.0
    %v3610 = vmul.f32 %v3438, %v3606
    %v3611 = vmul.f32 %v3439, %v3607
    %v3612 = vmul.f32 %v3440, %v3608
    %v3613 = vmul.f32 %v3441, %v3609
    %v3614 = vld [vmem:[#allocation6] sm:$0xff]
    %v3615 = vld [vmem:[#allocation6 + $0x8] sm:$0xff]
    %v3616 = vld [vmem:[#allocation6 + $0x10] sm:$0xff]
    %v3617 = vld [vmem:[#allocation6 + $0x18] sm:$0xff]
    %v3618 = vld [vmem:[#allocation6 + $0x20] sm:$0xff]
    %v3619 = vld [vmem:[#allocation6 + $0x28] sm:$0xff]
    %v3620 = vld [vmem:[#allocation6 + $0x30] sm:$0xff]
    %v3621 = vld [vmem:[#allocation6 + $0x38] sm:$0xff]
    %v3622 = vld [vmem:[#allocation6 + $0x40] sm:$0xff]
    %v3623 = vld [vmem:[#allocation6 + $0x48] sm:$0xff]
    %v3624 = vld [vmem:[#allocation6 + $0x50] sm:$0xff]
    %v3625 = vld [vmem:[#allocation6 + $0x58] sm:$0xff]
    %v3626 = vld [vmem:[#allocation6 + $0x60] sm:$0xff]
    %v3627 = vld [vmem:[#allocation6 + $0x68] sm:$0xff]
    %v3628 = vld [vmem:[#allocation6 + $0x70] sm:$0xff]
    %v3629 = vld [vmem:[#allocation6 + $0x78] sm:$0xff]
    %v3630 = vld [vmem:[#allocation6 + $0x80] sm:$0xff]
    %v3631 = vld [vmem:[#allocation6 + $0x88] sm:$0xff]
    %v3632 = vld [vmem:[#allocation6 + $0x90] sm:$0xff]
    %v3633 = vld [vmem:[#allocation6 + $0x98] sm:$0xff]
    %v3634 = vld [vmem:[#allocation6 + $0xa0] sm:$0xff]
    %v3635 = vld [vmem:[#allocation6 + $0xa8] sm:$0xff]
    %v3636 = vld [vmem:[#allocation6 + $0xb0] sm:$0xff]
    %v3637 = vld [vmem:[#allocation6 + $0xb8] sm:$0xff]
    %v3638 = vld [vmem:[#allocation6 + $0xc0] sm:$0xff]
    %v3639 = vld [vmem:[#allocation6 + $0xc8] sm:$0xff]
    %v3640 = vld [vmem:[#allocation6 + $0xd0] sm:$0xff]
    %v3641 = vld [vmem:[#allocation6 + $0xd8] sm:$0xff]
    %v3642 = vld [vmem:[#allocation6 + $0xe0] sm:$0xff]
    %v3643 = vld [vmem:[#allocation6 + $0xe8] sm:$0xff]
    %v3644 = vld [vmem:[#allocation6 + $0xf0] sm:$0xff]
    %v3645 = vld [vmem:[#allocation6 + $0xf8] sm:$0xff]
    %v3646 = vld [vmem:[#allocation6 + $0x100] sm:$0xff]
    %v3647 = vld [vmem:[#allocation6 + $0x108] sm:$0xff]
    %v3648 = vld [vmem:[#allocation6 + $0x110] sm:$0xff]
    %v3649 = vld [vmem:[#allocation6 + $0x118] sm:$0xff]
    %v3650 = vld [vmem:[#allocation6 + $0x120] sm:$0xff]
    %v3651 = vld [vmem:[#allocation6 + $0x128] sm:$0xff]
    %v3652 = vld [vmem:[#allocation6 + $0x130] sm:$0xff]
    %v3653 = vld [vmem:[#allocation6 + $0x138] sm:$0xff]
    %v3654 = vld [vmem:[#allocation6 + $0x140] sm:$0xff]
    %v3655 = vld [vmem:[#allocation6 + $0x148] sm:$0xff]
    %v3656 = vld [vmem:[#allocation6 + $0x150] sm:$0xff]
    %v3657 = vld [vmem:[#allocation6 + $0x158] sm:$0xff]
    %v3658 = vld [vmem:[#allocation6 + $0x160] sm:$0xff]
    %v3659 = vld [vmem:[#allocation6 + $0x168] sm:$0xff]
    %v3660 = vld [vmem:[#allocation6 + $0x170] sm:$0xff]
    %v3661 = vld [vmem:[#allocation6 + $0x178] sm:$0xff]
    %v3662 = vld [vmem:[#allocation6 + $0x180] sm:$0xff]
    %v3663 = vld [vmem:[#allocation6 + $0x188] sm:$0xff]
    %v3664 = vld [vmem:[#allocation6 + $0x190] sm:$0xff]
    %v3665 = vld [vmem:[#allocation6 + $0x198] sm:$0xff]
    %v3666 = vld [vmem:[#allocation6 + $0x1a0] sm:$0xff]
    %v3667 = vld [vmem:[#allocation6 + $0x1a8] sm:$0xff]
    %v3668 = vld [vmem:[#allocation6 + $0x1b0] sm:$0xff]
    %v3669 = vld [vmem:[#allocation6 + $0x1b8] sm:$0xff]
    %v3670 = vld [vmem:[#allocation6 + $0x1c0] sm:$0xff]
    %v3671 = vld [vmem:[#allocation6 + $0x1c8] sm:$0xff]
    %v3672 = vld [vmem:[#allocation6 + $0x1d0] sm:$0xff]
    %v3673 = vld [vmem:[#allocation6 + $0x1d8] sm:$0xff]
    %v3674 = vld [vmem:[#allocation6 + $0x1e0] sm:$0xff]
    %v3675 = vld [vmem:[#allocation6 + $0x1e8] sm:$0xff]
    %v3676 = vld [vmem:[#allocation6 + $0x1f0] sm:$0xff]
    %v3677 = vld [vmem:[#allocation6 + $0x1f8] sm:$0xff]
    %v3678 = vld [vmem:[#allocation6 + $0x200] sm:$0xff]
    %v3679 = vld [vmem:[#allocation6 + $0x208] sm:$0xff]
    %v3680 = vld [vmem:[#allocation6 + $0x210] sm:$0xff]
    %v3681 = vld [vmem:[#allocation6 + $0x218] sm:$0xff]
    %v3682 = vld [vmem:[#allocation6 + $0x220] sm:$0xff]
    %v3683 = vld [vmem:[#allocation6 + $0x228] sm:$0xff]
    %v3684 = vld [vmem:[#allocation6 + $0x230] sm:$0xff]
    %v3685 = vld [vmem:[#allocation6 + $0x238] sm:$0xff]
    %v3686 = vld [vmem:[#allocation6 + $0x240] sm:$0xff]
    %v3687 = vld [vmem:[#allocation6 + $0x248] sm:$0xff]
    %v3688 = vld [vmem:[#allocation6 + $0x250] sm:$0xff]
    %v3689 = vld [vmem:[#allocation6 + $0x258] sm:$0xff]
    %v3690 = vld [vmem:[#allocation6 + $0x260] sm:$0xff]
    %v3691 = vld [vmem:[#allocation6 + $0x268] sm:$0xff]
    %v3692 = vld [vmem:[#allocation6 + $0x270] sm:$0xff]
    %v3693 = vld [vmem:[#allocation6 + $0x278] sm:$0xff]
    %v3694 = vld [vmem:[#allocation6 + $0x280] sm:$0xff]
    %v3695 = vld [vmem:[#allocation6 + $0x288] sm:$0xff]
    %v3696 = vld [vmem:[#allocation6 + $0x290] sm:$0xff]
    %v3697 = vld [vmem:[#allocation6 + $0x298] sm:$0xff]
    %v3698 = vld [vmem:[#allocation6 + $0x2a0] sm:$0xff]
    %v3699 = vld [vmem:[#allocation6 + $0x2a8] sm:$0xff]
    %v3700 = vld [vmem:[#allocation6 + $0x2b0] sm:$0xff]
    %v3701 = vld [vmem:[#allocation6 + $0x2b8] sm:$0xff]
    %v3702 = vld [vmem:[#allocation6 + $0x2c0] sm:$0xff]
    %v3703 = vld [vmem:[#allocation6 + $0x2c8] sm:$0xff]
    %v3704 = vld [vmem:[#allocation6 + $0x2d0] sm:$0xff]
    %v3705 = vld [vmem:[#allocation6 + $0x2d8] sm:$0xff]
    %v3706 = vld [vmem:[#allocation6 + $0x2e0] sm:$0xff]
    %v3707 = vld [vmem:[#allocation6 + $0x2e8] sm:$0xff]
    %v3708 = vld [vmem:[#allocation6 + $0x2f0] sm:$0xff]
    %v3709 = vld [vmem:[#allocation6 + $0x2f8] sm:$0xff]
    %v3710 = vld [vmem:[#allocation6 + $0x300] sm:$0xff]
    %v3711 = vld [vmem:[#allocation6 + $0x308] sm:$0xff]
    %v3712 = vld [vmem:[#allocation6 + $0x310] sm:$0xff]
    %v3713 = vld [vmem:[#allocation6 + $0x318] sm:$0xff]
    %v3714 = vld [vmem:[#allocation6 + $0x320] sm:$0xff]
    %v3715 = vld [vmem:[#allocation6 + $0x328] sm:$0xff]
    %v3716 = vld [vmem:[#allocation6 + $0x330] sm:$0xff]
    %v3717 = vld [vmem:[#allocation6 + $0x338] sm:$0xff]
    %v3718 = vld [vmem:[#allocation6 + $0x340] sm:$0xff]
    %v3719 = vld [vmem:[#allocation6 + $0x348] sm:$0xff]
    %v3720 = vld [vmem:[#allocation6 + $0x350] sm:$0xff]
    %v3721 = vld [vmem:[#allocation6 + $0x358] sm:$0xff]
    %v3722 = vld [vmem:[#allocation6 + $0x360] sm:$0xff]
    %v3723 = vld [vmem:[#allocation6 + $0x368] sm:$0xff]
    %v3724 = vld [vmem:[#allocation6 + $0x370] sm:$0xff]
    %v3725 = vld [vmem:[#allocation6 + $0x378] sm:$0xff]
    %v3726 = vld [vmem:[#allocation6 + $0x380] sm:$0xff]
    %v3727 = vld [vmem:[#allocation6 + $0x388] sm:$0xff]
    %v3728 = vld [vmem:[#allocation6 + $0x390] sm:$0xff]
    %v3729 = vld [vmem:[#allocation6 + $0x398] sm:$0xff]
    %v3730 = vld [vmem:[#allocation6 + $0x3a0] sm:$0xff]
    %v3731 = vld [vmem:[#allocation6 + $0x3a8] sm:$0xff]
    %v3732 = vld [vmem:[#allocation6 + $0x3b0] sm:$0xff]
    %v3733 = vld [vmem:[#allocation6 + $0x3b8] sm:$0xff]
    %v3734 = vld [vmem:[#allocation6 + $0x3c0] sm:$0xff]
    %v3735 = vld [vmem:[#allocation6 + $0x3c8] sm:$0xff]
    %v3736 = vld [vmem:[#allocation6 + $0x3d0] sm:$0xff]
    %v3737 = vld [vmem:[#allocation6 + $0x3d8] sm:$0xff]
    %v3738 = vld [vmem:[#allocation6 + $0x3e0] sm:$0xff]
    %v3739 = vld [vmem:[#allocation6 + $0x3e8] sm:$0xff]
    %v3740 = vld [vmem:[#allocation6 + $0x3f0] sm:$0xff]
    %v3741 = vld [vmem:[#allocation6 + $0x3f8] sm:$0xff]
    %v3742 = vld [vmem:[%s9] sm:$0x3]
    %v3744 = vperm.slane %v3742, 0
    %v3745 = vperm.slane %v3742, 1
    %3748 = vmatpush.msra.mxu0 %v3644
    %3749 = vmatpush.msra.mxu0 %v3642
    %3750 = vmatpush.msra.mxu0 %v3640
    %3751 = vmatpush.msra.mxu0 %v3638
    %3752 = vmatpush.msra.mxu0 %v3636
    %3753 = vmatpush.msra.mxu0 %v3634
    %3754 = vmatpush.msra.mxu0 %v3632
    %3755 = vmatpush.msra.mxu0 %v3630
    %3756 = vmatpush.msra.mxu0 %v3628
    %3757 = vmatpush.msra.mxu0 %v3626
    %3758 = vmatpush.msra.mxu0 %v3624
    %3759 = vmatpush.msra.mxu0 %v3622
    %3760 = vmatpush.msra.mxu0 %v3620
    %3761 = vmatpush.msra.mxu0 %v3618
    %3762 = vmatpush.msra.mxu0 %v3616
    %3763 = vmatpush.msra.mxu0 %v3614
    %3764 = vmatmul.f32.gmra.mxu0 %v3610
    %v3765 = vpop.f32.mrf.mxu0
    %v3766 = vadd.f32 %v3744, %v3765
    %3767 = vdwg.mxu0
    %3768 = vmatpush.msra.mxu0 %v3676
    %3769 = vmatpush.msra.mxu0 %v3674
    %3770 = vmatpush.msra.mxu0 %v3672
    %3771 = vmatpush.msra.mxu0 %v3670
    %3772 = vmatpush.msra.mxu0 %v3668
    %3773 = vmatpush.msra.mxu0 %v3666
    %3774 = vmatpush.msra.mxu0 %v3664
    %3775 = vmatpush.msra.mxu0 %v3662
    %3776 = vmatpush.msra.mxu0 %v3660
    %3777 = vmatpush.msra.mxu0 %v3658
    %3778 = vmatpush.msra.mxu0 %v3656
    %3779 = vmatpush.msra.mxu0 %v3654
    %3780 = vmatpush.msra.mxu0 %v3652
    %3781 = vmatpush.msra.mxu0 %v3650
    %3782 = vmatpush.msra.mxu0 %v3648
    %3783 = vmatpush.msra.mxu0 %v3646
    %3784 = vmatmul.f32.gmra.mxu0 %v3611
    %v3785 = vpop.f32.mrf.mxu0
    %v3786 = vadd.f32 %v3766, %v3785
    %3787 = vdwg.mxu0
    %3788 = vmatpush.msra.mxu0 %v3708
    %3789 = vmatpush.msra.mxu0 %v3706
    %3790 = vmatpush.msra.mxu0 %v3704
    %3791 = vmatpush.msra.mxu0 %v3702
    %3792 = vmatpush.msra.mxu0 %v3700
    %3793 = vmatpush.msra.mxu0 %v3698
    %3794 = vmatpush.msra.mxu0 %v3696
    %3795 = vmatpush.msra.mxu0 %v3694
    %3796 = vmatpush.msra.mxu0 %v3692
    %3797 = vmatpush.msra.mxu0 %v3690
    %3798 = vmatpush.msra.mxu0 %v3688
    %3799 = vmatpush.msra.mxu0 %v3686
    %3800 = vmatpush.msra.mxu0 %v3684
    %3801 = vmatpush.msra.mxu0 %v3682
    %3802 = vmatpush.msra.mxu0 %v3680
    %3803 = vmatpush.msra.mxu0 %v3678
    %3804 = vmatmul.f32.gmra.mxu0 %v3612
    %v3805 = vpop.f32.mrf.mxu0
    %v3806 = vadd.f32 %v3786, %v3805
    %3807 = vdwg.mxu0
    %3808 = vmatpush.msra.mxu0 %v3740
    %3809 = vmatpush.msra.mxu0 %v3738
    %3810 = vmatpush.msra.mxu0 %v3736
    %3811 = vmatpush.msra.mxu0 %v3734
    %3812 = vmatpush.msra.mxu0 %v3732
    %3813 = vmatpush.msra.mxu0 %v3730
    %3814 = vmatpush.msra.mxu0 %v3728
    %3815 = vmatpush.msra.mxu0 %v3726
    %3816 = vmatpush.msra.mxu0 %v3724
    %3817 = vmatpush.msra.mxu0 %v3722
    %3818 = vmatpush.msra.mxu0 %v3720
    %3819 = vmatpush.msra.mxu0 %v3718
    %3820 = vmatpush.msra.mxu0 %v3716
    %3821 = vmatpush.msra.mxu0 %v3714
    %3822 = vmatpush.msra.mxu0 %v3712
    %3823 = vmatpush.msra.mxu0 %v3710
    %3824 = vmatmul.f32.gmra.mxu0 %v3613
    %v3825 = vpop.f32.mrf.mxu0
    %v3826 = vadd.f32 %v3806, %v3825
    %3827 = vdwg.mxu0
    %3828 = vmatpush.msra.mxu0 %v3645
    %3829 = vmatpush.msra.mxu0 %v3643
    %3830 = vmatpush.msra.mxu0 %v3641
    %3831 = vmatpush.msra.mxu0 %v3639
    %3832 = vmatpush.msra.mxu0 %v3637
    %3833 = vmatpush.msra.mxu0 %v3635
    %3834 = vmatpush.msra.mxu0 %v3633
    %3835 = vmatpush.msra.mxu0 %v3631
    %3836 = vmatpush.msra.mxu0 %v3629
    %3837 = vmatpush.msra.mxu0 %v3627
    %3838 = vmatpush.msra.mxu0 %v3625
    %3839 = vmatpush.msra.mxu0 %v3623
    %3840 = vmatpush.msra.mxu0 %v3621
    %3841 = vmatpush.msra.mxu0 %v3619
    %3842 = vmatpush.msra.mxu0 %v3617
    %3843 = vmatpush.msra.mxu0 %v3615
    %3844 = vmatmul.f32.gmra.mxu0 %v3610
    %v3845 = vpop.f32.mrf.mxu0
    %v3846 = vadd.f32 %v3745, %v3845
    %3847 = vdwg.mxu0
    %3848 = vmatpush.msra.mxu0 %v3677
    %3849 = vmatpush.msra.mxu0 %v3675
    %3850 = vmatpush.msra.mxu0 %v3673
    %3851 = vmatpush.msra.mxu0 %v3671
    %3852 = vmatpush.msra.mxu0 %v3669
    %3853 = vmatpush.msra.mxu0 %v3667
    %3854 = vmatpush.msra.mxu0 %v3665
    %3855 = vmatpush.msra.mxu0 %v3663
    %3856 = vmatpush.msra.mxu0 %v3661
    %3857 = vmatpush.msra.mxu0 %v3659
    %3858 = vmatpush.msra.mxu0 %v3657
    %3859 = vmatpush.msra.mxu0 %v3655
    %3860 = vmatpush.msra.mxu0 %v3653
    %3861 = vmatpush.msra.mxu0 %v3651
    %3862 = vmatpush.msra.mxu0 %v3649
    %3863 = vmatpush.msra.mxu0 %v3647
    %3864 = vmatmul.f32.gmra.mxu0 %v3611
    %v3865 = vpop.f32.mrf.mxu0
    %v3866 = vadd.f32 %v3846, %v3865
    %3867 = vdwg.mxu0
    %3868 = vmatpush.msra.mxu0 %v3709
    %3869 = vmatpush.msra.mxu0 %v3707
    %3870 = vmatpush.msra.mxu0 %v3705
    %3871 = vmatpush.msra.mxu0 %v3703
    %3872 = vmatpush.msra.mxu0 %v3701
    %3873 = vmatpush.msra.mxu0 %v3699
    %3874 = vmatpush.msra.mxu0 %v3697
    %3875 = vmatpush.msra.mxu0 %v3695
    %3876 = vmatpush.msra.mxu0 %v3693
    %3877 = vmatpush.msra.mxu0 %v3691
    %3878 = vmatpush.msra.mxu0 %v3689
    %3879 = vmatpush.msra.mxu0 %v3687
    %3880 = vmatpush.msra.mxu0 %v3685
    %3881 = vmatpush.msra.mxu0 %v3683
    %3882 = vmatpush.msra.mxu0 %v3681
    %3883 = vmatpush.msra.mxu0 %v3679
    %3884 = vmatmul.f32.gmra.mxu0 %v3612
    %v3885 = vpop.f32.mrf.mxu0
    %v3886 = vadd.f32 %v3866, %v3885
    %3887 = vdwg.mxu0
    %3888 = vmatpush.msra.mxu0 %v3741
    %3889 = vmatpush.msra.mxu0 %v3739
    %3890 = vmatpush.msra.mxu0 %v3737
    %3891 = vmatpush.msra.mxu0 %v3735
    %3892 = vmatpush.msra.mxu0 %v3733
    %3893 = vmatpush.msra.mxu0 %v3731
    %3894 = vmatpush.msra.mxu0 %v3729
    %3895 = vmatpush.msra.mxu0 %v3727
    %3896 = vmatpush.msra.mxu0 %v3725
    %3897 = vmatpush.msra.mxu0 %v3723
    %3898 = vmatpush.msra.mxu0 %v3721
    %3899 = vmatpush.msra.mxu0 %v3719
    %3900 = vmatpush.msra.mxu0 %v3717
    %3901 = vmatpush.msra.mxu0 %v3715
    %3902 = vmatpush.msra.mxu0 %v3713
    %3903 = vmatpush.msra.mxu0 %v3711
    %3904 = vmatmul.f32.gmra.mxu0 %v3613
    %v3905 = vpop.f32.mrf.mxu0
    %v3906 = vadd.f32 %v3886, %v3905
    %3907 = vdwg.mxu0
    %v3909 = vsel %vm1468, %v3826, 0
    %v3912 = vsel %vm1468, %v3906, 0
    %3914 = vmatpush.msra.mxu0 0.0
    %3915 = vmatpush.msra.mxu0 0.0
    %3916 = vmatpush.msra.mxu0 0.0
    %3917 = vmatpush.msra.mxu0 0.0
    %3918 = vmatpush.msra.mxu0 0.0
    %3919 = vmatpush.msra.mxu0 0.0
    %3920 = vmatpush.msra.mxu0 0.0
    %3921 = vmatpush.msra.mxu0 0.0
    %3922 = vmatpush.msra.mxu0 0.0
    %3923 = vmatpush.msra.mxu0 0.0
    %3924 = vmatpush.msra.mxu0 0.0
    %3925 = vmatpush.msra.mxu0 0.0
    %3926 = vmatpush.msra.mxu0 0.0
    %3927 = vmatpush.msra.mxu0 0.0
    %3928 = vmatpush.msra.mxu0 0.0
    %3929 = vmatpush.msra.mxu0 %v3909
    %3930 = vmatmul.f32.gmra.mxu0 %v3172
    %v3931 = vpop.f32.mrf.mxu0
    %v3932 = vadd.f32 0.0, %v3931
    %3933 = vdwg.mxu0
    %3934 = vmatpush.msra.mxu0 0.0
    %3935 = vmatpush.msra.mxu0 0.0
    %3936 = vmatpush.msra.mxu0 0.0
    %3937 = vmatpush.msra.mxu0 0.0
    %3938 = vmatpush.msra.mxu0 0.0
    %3939 = vmatpush.msra.mxu0 0.0
    %3940 = vmatpush.msra.mxu0 0.0
    %3941 = vmatpush.msra.mxu0 0.0
    %3942 = vmatpush.msra.mxu0 0.0
    %3943 = vmatpush.msra.mxu0 0.0
    %3944 = vmatpush.msra.mxu0 0.0
    %3945 = vmatpush.msra.mxu0 0.0
    %3946 = vmatpush.msra.mxu0 0.0
    %3947 = vmatpush.msra.mxu0 0.0
    %3948 = vmatpush.msra.mxu0 0.0
    %3949 = vmatpush.msra.mxu0 %v3912
    %3950 = vmatmul.f32.gmra.mxu0 %v3172
    %v3951 = vpop.f32.mrf.mxu0
    %v3952 = vadd.f32 0.0, %v3951
    %3953 = vdwg.mxu0
    %v3954 = vsub.f32 %v3826, %v3932
    %v3955 = vsub.f32 %v3906, %v3952
    %v3956 = vmul.f32 %v3954, %v3954
    %v3957 = vmul.f32 %v3955, %v3955
    %v3959 = vsel %vm1468, %v3956, 0
    %v3962 = vsel %vm1468, %v3957, 0
    %3964 = vmatpush.msra.mxu0 0.0
    %3965 = vmatpush.msra.mxu0 0.0
    %3966 = vmatpush.msra.mxu0 0.0
    %3967 = vmatpush.msra.mxu0 0.0
    %3968 = vmatpush.msra.mxu0 0.0
    %3969 = vmatpush.msra.mxu0 0.0
    %3970 = vmatpush.msra.mxu0 0.0
    %3971 = vmatpush.msra.mxu0 0.0
    %3972 = vmatpush.msra.mxu0 0.0
    %3973 = vmatpush.msra.mxu0 0.0
    %3974 = vmatpush.msra.mxu0 0.0
    %3975 = vmatpush.msra.mxu0 0.0
    %3976 = vmatpush.msra.mxu0 0.0
    %3977 = vmatpush.msra.mxu0 0.0
    %3978 = vmatpush.msra.mxu0 0.0
    %3979 = vmatpush.msra.mxu0 %v3959
    %3980 = vmatmul.f32.gmra.mxu0 %v3172
    %v3981 = vpop.f32.mrf.mxu0
    %v3982 = vadd.f32 1e-05, %v3981
    %3983 = vdwg.mxu0
    %3984 = vmatpush.msra.mxu0 0.0
    %3985 = vmatpush.msra.mxu0 0.0
    %3986 = vmatpush.msra.mxu0 0.0
    %3987 = vmatpush.msra.mxu0 0.0
    %3988 = vmatpush.msra.mxu0 0.0
    %3989 = vmatpush.msra.mxu0 0.0
    %3990 = vmatpush.msra.mxu0 0.0
    %3991 = vmatpush.msra.mxu0 0.0
    %3992 = vmatpush.msra.mxu0 0.0
    %3993 = vmatpush.msra.mxu0 0.0
    %3994 = vmatpush.msra.mxu0 0.0
    %3995 = vmatpush.msra.mxu0 0.0
    %3996 = vmatpush.msra.mxu0 0.0
    %3997 = vmatpush.msra.mxu0 0.0
    %3998 = vmatpush.msra.mxu0 0.0
    %3999 = vmatpush.msra.mxu0 %v3962
    %4000 = vmatmul.f32.gmra.mxu0 %v3172
    %v4001 = vpop.f32.mrf.mxu0
    %v4002 = vadd.f32 1e-05, %v4001
    %4003 = vdwg.mxu0
    %v4004 = vrsqrt.pop %v3982
    %v4005 = vmul.f32 %v4004, %v3982
    %v4006 = vmul.f32 %v4005, %v4004
    %v4007 = vmul.f32 0.5, %v4006
    %v4008 = vsub.f32 1.5, %v4007
    %v4009 = vmul.f32 %v4004, %v4008
    %vm4010 = vweird.f32 %v3982
    %vm4011 = vweird.f32 %v4004
    %vm4012 = vmor %vm4010, %vm4011
    %v4013 = vsel %vm4012, %v4004, %v4009
    %v4014 = vrsqrt.pop %v4002
    %v4015 = vmul.f32 %v4014, %v4002
    %v4016 = vmul.f32 %v4015, %v4014
    %v4017 = vmul.f32 0.5, %v4016
    %v4018 = vsub.f32 1.5, %v4017
    %v4019 = vmul.f32 %v4014, %v4018
    %vm4020 = vweird.f32 %v4002
    %vm4021 = vweird.f32 %v4014
    %vm4022 = vmor %vm4020, %vm4021
    %v4023 = vsel %vm4022, %v4014, %v4019
    %v4024 = vmul.f32 %v3954, %v4013
    %v4025 = vmul.f32 %v3955, %v4023
    %v4028 = vrot.slane %v4025, 4
    %v4029 = vsel %vm1468, %v4024, %v4028
    %4031 = vst [vmem:[%s10] sm:$0xff] %v4029
    // Predicated region
    $region54: #{forward.1} parent=1 // pred_check
      _
    $region55: #{forward.1} parent=1 // pred_check_branch
      %4033 = sbr.rel (0) target = $region57
    $region56: #{forward.1} parent=1 // pred_region
      _
    $region57: #{forward.1} parent=1 // pred_fallthru
      _
    // Predicated region
    $region58: #{forward.1} parent=1 // pred_check
      _
    $region59: #{forward.1} parent=1 // pred_check_branch
      %4035 = sbr.rel (0) target = $region61
    $region60: #{forward.1} parent=1 // pred_region
      _
    $region61: #{forward.1} parent=1 // pred_fallthru
      _
    %4036 = vsyncpa [#allocation3], 1
    %4037 = vsyncpa [#allocation7], 1
    %4038 = vsyncpa [#allocation4], 1

</llo_original>
